<compile_context>
chip_gen: v7x
topology: tpu7x:2x2x1
jax: 0.10.0
libtpu: 0.0.40
codegen_flags: <defaults>
</compile_context>

<pallas_src>
import jax
import jax.numpy as jnp
import numpy as np
from jax.experimental import pallas as pl
from jax.experimental.pallas import tpu as pltpu

C_IN = 1024          # hardcoded in Adapter_tc(1024, 4)
C_HID = C_IN // 4    # 256
RATIO = 0.4


def _clip_adapter_kernel(scale_ref, x_ref, w1_ref, w2_ref, t_ref, o_ref):
    # scale_ref: (1,)          f32 SMEM -- exp(logit_scale)
    # x_ref:     (1, 1024, ts) bf16     -- channel-major token columns
    # w1_ref:    (256, 1024)   bf16     -- Linear1.weight (used as W1 @ x)
    # w2_ref:    (1024, 256)   bf16     -- Linear2.weight * ratio/(1-ratio)
    # t_ref:     (n_cls, 1024) bf16     -- L2-normalized text features
    # o_ref:     (1, n_cls, ts) f32
    xb = x_ref[0]                                   # (1024, ts) bf16
    x = xb.astype(jnp.float32)

    # Adapter_tc: ReLU(Linear) -> ReLU(Linear), no biases (channel-major, MXU).
    h = jnp.maximum(
        jnp.dot(w1_ref[...], xb, preferred_element_type=jnp.float32), 0.0)
    a = jnp.maximum(
        jnp.dot(w2_ref[...], h.astype(jnp.bfloat16),
                preferred_element_type=jnp.float32), 0.0)

    # residual blend with the ratio folded into w2 (exact: the L2 norm below
    # cancels any uniform per-column scale)
    y = a + x

    # L2 normalize along the channel axis.  The tiny floor only matters for
    # all-garbage ragged/padded columns, whose output lanes are masked on store.
    sq = jnp.maximum(jnp.sum(y * y, axis=0, keepdims=True), 1e-30)
    y_n = (y * jax.lax.rsqrt(sq)).astype(jnp.bfloat16)

    # logits = exp(logit_scale) * (text_norm @ img_norm)  -> (n_cls, ts), f32
    o_ref[0] = scale_ref[0] * jnp.dot(t_ref[...], y_n,
                                      preferred_element_type=jnp.float32)


def custom_clip_forward(image_features, w1, w2, text_features, logit_scale):
    """image_features: (B, 1024, H, W) (NCHW, as in PyTorch).

    w1: (256, 1024)  Linear(1024->256).weight
    w2: (1024, 256)  Linear(256->1024).weight
    text_features: (num_classes, 1024)
    logit_scale: scalar parameter (pre-exp), may be a traced array
    Returns logits: (B, num_classes, H, W) float32.
    """
    B, C, H, W = image_features.shape
    assert C == C_IN
    n_cls = text_features.shape[0]
    S = H * W

    # channel-major (free reshape, no NCHW->NHWC transpose), streamed as bf16
    x = image_features.reshape(B, C_IN, S).astype(jnp.bfloat16)

    # Small feature maps: pack every image's columns into one lane slab so the
    # <=127-lane pad is shared by the whole batch (tiny transpose, bf16).
    pack = (B > 1) and (S < 128)
    if pack:
        x = jnp.transpose(x, (1, 0, 2)).reshape(1, C_IN, B * S)
        G, L = 1, B * S
    else:
        G, L = B, S

    # Lane-aligned spatial tile, balanced across tiles, capped at 1024 so the
    # f32 epilogue intermediates fit v7x's 64 MiB VMEM without spilling.
    max_ts = 1024
    ntiles = pl.cdiv(L, max_ts)
    ts = min(max_ts, ((pl.cdiv(L, ntiles) + 127) // 128) * 128)
    grid = (G, pl.cdiv(L, ts))        # ragged last tile handled by masking

    # Parameters stay in PyTorch layout (channel-major math needs no transpose).
    w1b = w1.astype(jnp.bfloat16)                                    # (256,1024)
    w2b = (w2.astype(jnp.float32) * (RATIO / (1.0 - RATIO))).astype(
        jnp.bfloat16)                                                # (1024,256)
    t = text_features.astype(jnp.float32)
    t = (t / jnp.linalg.norm(t, axis=-1, keepdims=True)).astype(jnp.bfloat16)
    # exp(logit_scale) applied to the f32 logits in-kernel (trace/jit-safe)
    scale = jnp.exp(jnp.asarray(logit_scale, jnp.float32)).reshape(1)

    n_tok = G * L
    flops = 2 * n_tok * (2 * C_IN * C_HID + C_IN * n_cls)
    bytes_accessed = (n_tok * C_IN * 2            # x (bf16)
                      + 2 * C_IN * C_HID * 2      # w1 + w2 (bf16)
                      + n_cls * C_IN * 2          # text (bf16)
                      + n_tok * n_cls * 4)        # output (f32)

    out = pl.pallas_call(
        _clip_adapter_kernel,
        out_shape=jax.ShapeDtypeStruct((G, n_cls, L), jnp.float32),
        grid_spec=pltpu.PrefetchScalarGridSpec(
            num_scalar_prefetch=0,
            grid=grid,
            in_specs=[
                pl.BlockSpec(memory_space=pltpu.MemorySpace.SMEM),   # scale
                pl.BlockSpec((1, C_IN, ts), lambda g, s: (g, 0, s)),  # x
                pl.BlockSpec((C_HID, C_IN), lambda g, s: (0, 0)),     # w1
                pl.BlockSpec((C_IN, C_HID), lambda g, s: (0, 0)),     # w2
                pl.BlockSpec((n_cls, C_IN), lambda g, s: (0, 0)),     # text
            ],
            out_specs=pl.BlockSpec((1, n_cls, ts), lambda g, s: (g, 0, s)),
        ),
        compiler_params=pltpu.CompilerParams(
            dimension_semantics=("parallel", "parallel"),
            vmem_limit_bytes=48 * 1024 * 1024),
        cost_estimate=pl.CostEstimate(
            flops=flops,
            transcendentals=n_tok,
            bytes_accessed=bytes_accessed),
    )(scale, x, w1b, w2b, t)

    if pack:
        # (1, n_cls, B*S) -> (n_cls, B, S) -> (B, n_cls, S); tiny transpose
        out = out.reshape(n_cls, B, S).transpose(1, 0, 2)
    return out.reshape(B, n_cls, H, W)


def _reference(image_features, w1, w2, text_features, logit_scale):
    """Pure-JAX f32 reference mirroring the PyTorch token-major forward."""
    B, C, H, W = image_features.shape
    x = jnp.transpose(image_features, (0, 2, 3, 1)).reshape(-1, C_IN)
    x = x.astype(jnp.float32)
    h = jax.nn.relu(x @ w1.T)
    a = jax.nn.relu(h @ w2.T)
    y = RATIO * a + (1.0 - RATIO) * x
    y = y / jnp.linalg.norm(y, axis=-1, keepdims=True)
    t = text_features / jnp.linalg.norm(text_features, axis=-1, keepdims=True)
    logits = jnp.exp(logit_scale) * (y @ t.T)
    return logits.reshape(B, H, W, -1).transpose(0, 3, 1, 2)


if __name__ == "__main__":
    key = jax.random.PRNGKey(0)
    k_img, k_w1, k_w2, k_txt = jax.random.split(key, 4)

    # small spatial/batch shapes; feature dim 1024 is hardcoded by the module
    B, H, W = 2, 4, 4
    N_CLS = 8

    image_features = jax.random.normal(k_img, (B, C_IN, H, W), jnp.float32)

    # deterministic parameter init (Linear weights, no bias)
    w1 = jax.random.normal(k_w1, (C_HID, C_IN), jnp.float32) * 0.02
    w2 = jax.random.normal(k_w2, (C_IN, C_HID), jnp.float32) * 0.02

    # TODO(synk): TextEncoder_tc wraps a full CLIP text transformer + tokenizer;
    # synthesize deterministic text features of the correct shape instead.
    text_features = jax.random.normal(k_txt, (N_CLS, C_IN), jnp.float32)

    # CLIP's logit_scale init: ln(1/0.07)
    logit_scale = jnp.float32(np.log(1.0 / 0.07))

    fwd = jax.jit(custom_clip_forward)
    logits = fwd(image_features, w1, w2, text_features, logit_scale)
    jax.block_until_ready(logits)

    ref = _reference(image_features, w1, w2, text_features, logit_scale)
    # bf16 input stream + bf16 MXU matmuls -> relaxed tolerance vs f32 reference
    np.testing.assert_allclose(np.asarray(logits), np.asarray(ref),
                               rtol=3e-2, atol=3e-2)
    assert logits.shape == (B, N_CLS, H, W)
    print("KERNEL_OK")
</pallas_src>

<mosaic_0001>
module attributes {stable_mosaic.version = 11 : i64} {
  func.func @_clip_adapter_kernel(%arg0: i32, %arg1: i32, %arg2: memref<1xf32, #tpu.memory_space<smem>>, %arg3: memref<1x1024x128xbf16, #tpu.memory_space<vmem>>, %arg4: memref<256x1024xbf16, #tpu.memory_space<vmem>>, %arg5: memref<1024x256xbf16, #tpu.memory_space<vmem>>, %arg6: memref<8x1024xbf16, #tpu.memory_space<vmem>>, %arg7: memref<1x8x128xf32, #tpu.memory_space<vmem>>) attributes {dimension_semantics = [#tpu.dimension_semantics<parallel>, #tpu.dimension_semantics<parallel>], iteration_bounds = array<i64: 1, 1>, scalar_prefetch = 0 : i64, scratch_operands = 0 : i64, tpu.core_type = #tpu.core_type<tc>, window_params = [{transform_indices = @transform_0, window_bounds = array<i64: 1>}, {transform_indices = @transform_1, window_bounds = array<i64: 1, 1024, 128>}, {pipeline_mode = #tpu.pipeline_mode<synchronous>, transform_indices = @transform_2, window_bounds = array<i64: 256, 1024>}, {pipeline_mode = #tpu.pipeline_mode<synchronous>, transform_indices = @transform_3, window_bounds = array<i64: 1024, 256>}, {pipeline_mode = #tpu.pipeline_mode<synchronous>, transform_indices = @transform_4, window_bounds = array<i64: 8, 1024>}, {transform_indices = @transform_5, window_bounds = array<i64: 1, 8, 128>}]} {
    %c0 = arith.constant 0 : index
    %c0_0 = arith.constant 0 : index
    %c0_1 = arith.constant 0 : index
    %0 = vector.load %arg3[%c0, %c0_0, %c0_1] : memref<1x1024x128xbf16, #tpu.memory_space<vmem>>, vector<1x1024x128xbf16>
    %1 = vector.shape_cast %0 : vector<1x1024x128xbf16> to vector<1024x128xbf16>
    %2 = arith.extf %1 : vector<1024x128xbf16> to vector<1024x128xf32>
    %c0_2 = arith.constant 0 : index
    %c0_3 = arith.constant 0 : index
    %3 = vector.load %arg4[%c0_2, %c0_3] : memref<256x1024xbf16, #tpu.memory_space<vmem>>, vector<256x1024xbf16>
    %cst = arith.constant dense<0.000000e+00> : vector<256x128xf32>
    %4 = tpu.matmul %3, %1, %cst {dimension_numbers = #tpu.dot_dimension_numbers<[1], [0], [0], [1], [0, 0, 1, 1], [], []>} : vector<256x1024xbf16>, vector<1024x128xbf16>, vector<256x128xf32> -> vector<256x128xf32>
    %cst_4 = arith.constant 0.000000e+00 : f32
    %5 = vector.broadcast %cst_4 : f32 to vector<256x128xf32>
    %6 = arith.maximumf %4, %5 : vector<256x128xf32>
    %c0_5 = arith.constant 0 : index
    %c0_6 = arith.constant 0 : index
    %7 = vector.load %arg5[%c0_5, %c0_6] : memref<1024x256xbf16, #tpu.memory_space<vmem>>, vector<1024x256xbf16>
    %8 = arith.truncf %6 : vector<256x128xf32> to vector<256x128xbf16>
    %cst_7 = arith.constant dense<0.000000e+00> : vector<1024x128xf32>
    %9 = tpu.matmul %7, %8, %cst_7 {dimension_numbers = #tpu.dot_dimension_numbers<[1], [0], [0], [1], [0, 0, 1, 1], [], []>} : vector<1024x256xbf16>, vector<256x128xbf16>, vector<1024x128xf32> -> vector<1024x128xf32>
    %cst_8 = arith.constant 0.000000e+00 : f32
    %10 = vector.broadcast %cst_8 : f32 to vector<1024x128xf32>
    %11 = arith.maximumf %9, %10 : vector<1024x128xf32>
    %12 = arith.addf %11, %2 : vector<1024x128xf32>
    %13 = arith.mulf %12, %12 : vector<1024x128xf32>
    %cst_9 = arith.constant dense<0.000000e+00> : vector<128xf32>
    %14 = vector.multi_reduction <add>, %13, %cst_9 [0] : vector<1024x128xf32> to vector<128xf32>
    %15 = vector.shape_cast %14 : vector<128xf32> to vector<1x128xf32>
    %cst_10 = arith.constant 1.000000e-30 : f32
    %16 = vector.broadcast %cst_10 : f32 to vector<1x128xf32>
    %17 = arith.maximumf %15, %16 : vector<1x128xf32>
    %18 = math.rsqrt %17 : vector<1x128xf32>
    %19 = vector.broadcast %18 : vector<1x128xf32> to vector<1024x128xf32>
    %20 = arith.mulf %12, %19 : vector<1024x128xf32>
    %21 = arith.truncf %20 : vector<1024x128xf32> to vector<1024x128xbf16>
    %c0_11 = arith.constant 0 : index
    %22 = memref.load %arg2[%c0_11] : memref<1xf32, #tpu.memory_space<smem>>
    %c0_12 = arith.constant 0 : index
    %c0_13 = arith.constant 0 : index
    %23 = vector.load %arg6[%c0_12, %c0_13] : memref<8x1024xbf16, #tpu.memory_space<vmem>>, vector<8x1024xbf16>
    %cst_14 = arith.constant dense<0.000000e+00> : vector<8x128xf32>
    %24 = tpu.matmul %23, %21, %cst_14 {dimension_numbers = #tpu.dot_dimension_numbers<[1], [0], [0], [1], [0, 0, 1, 1], [], []>} : vector<8x1024xbf16>, vector<1024x128xbf16>, vector<8x128xf32> -> vector<8x128xf32>
    %25 = vector.broadcast %22 : f32 to vector<8x128xf32>
    %26 = arith.mulf %25, %24 : vector<8x128xf32>
    %c0_15 = arith.constant 0 : index
    %c0_16 = arith.constant 0 : index
    %c0_17 = arith.constant 0 : index
    %27 = vector.load %arg7[%c0_15, %c0_16, %c0_17] : memref<1x8x128xf32, #tpu.memory_space<vmem>>, vector<1x8x128xf32>
    %28 = vector.shape_cast %27 : vector<1x8x128xf32> to vector<8x128xf32>
    %29 = vector.shape_cast %26 : vector<8x128xf32> to vector<1x8x128xf32>
    tpu.vector_store %arg7[%c0_15, %c0_16, %c0_17], %29 {strides = array<i32>} : memref<1x8x128xf32, #tpu.memory_space<vmem>>, vector<1x8x128xf32>,
    return
  }
  func.func @transform_0(%arg0: i32, %arg1: i32) -> i32 {
    %c0_i32 = arith.constant 0 : i32
    %c0_i32_0 = arith.constant 0 : i32
    return %c0_i32 : i32
  }
  func.func @transform_1(%arg0: i32, %arg1: i32) -> (i32, i32, i32) {
    %c0_i32 = arith.constant 0 : i32
    %c0_i32_0 = arith.constant 0 : i32
    return %arg0, %c0_i32, %arg1 : i32, i32, i32
  }
  func.func @transform_2(%arg0: i32, %arg1: i32) -> (i32, i32) {
    %c0_i32 = arith.constant 0 : i32
    %c0_i32_0 = arith.constant 0 : i32
    %c0_i32_1 = arith.constant 0 : i32
    return %c0_i32, %c0_i32_0 : i32, i32
  }
  func.func @transform_3(%arg0: i32, %arg1: i32) -> (i32, i32) {
    %c0_i32 = arith.constant 0 : i32
    %c0_i32_0 = arith.constant 0 : i32
    %c0_i32_1 = arith.constant 0 : i32
    return %c0_i32, %c0_i32_0 : i32, i32
  }
  func.func @transform_4(%arg0: i32, %arg1: i32) -> (i32, i32) {
    %c0_i32 = arith.constant 0 : i32
    %c0_i32_0 = arith.constant 0 : i32
    %c0_i32_1 = arith.constant 0 : i32
    return %c0_i32, %c0_i32_0 : i32, i32
  }
  func.func @transform_5(%arg0: i32, %arg1: i32) -> (i32, i32, i32) {
    %c0_i32 = arith.constant 0 : i32
    %c0_i32_0 = arith.constant 0 : i32
    return %arg0, %c0_i32, %arg1 : i32, i32, i32
  }
}

</mosaic_0001>

<llo_original>
// kernel: custom_clip_forward.1
$region0: #{custom_clip_forward.1}
  #allocation0 [shape = 'u32[]', space=smem, size = 0x4, offset = 0x4, fixed_abs, tag = 'smem constant byte address 0x4 - core index']
  #allocation1 [shape = 'u32[144,128]{1,0:T(1,128)}', space=vmem, size = 0x12000, scoped, tag = 'internal scratch']
  #allocation2 [shape = 'f32[1]{0:T(128)S(6)}', space=smem, size = 0x200, scoped, tag = 'scoped memory for custom_clip_forward.1']
  %s0 = inlined_call_operand.<no memory space> [shape: f32[1], index: 0, kind: input, shape index: {}]
  %s1 = inlined_call_operand.vmem [shape: bf16[1,1024,32], index: 1, kind: input, shape index: {}]
  %s2 = inlined_call_operand.vmem [shape: bf16[256,1024], index: 2, kind: input, shape index: {}]
  %s3 = inlined_call_operand.vmem [shape: bf16[1024,256], index: 3, kind: input, shape index: {}]
  %s4 = inlined_call_operand.vmem [shape: bf16[8,1024], index: 4, kind: input, shape index: {}]
  %s5 = inlined_call_operand.vmem [shape: f32[1,8,32], index: 5, kind: output, shape index: {}]
  %s6 = sld [smem:[#allocation0]]
  $region30: #{custom_clip_forward.1} parent=0
    _
  %s8 = ssub.s32 1, %s6
  %s9 = scalar_select 0, %s8, %s6
  %10 = sst [smem:[#allocation2]] %s0
  // Predicated region
  $region2: #{custom_clip_forward.1} parent=0 // pred_check
    _
  $region3: #{custom_clip_forward.1} parent=0 // pred_check_branch
    %12 = sbr.rel (0) target = $region5
  $region4: #{custom_clip_forward.1} parent=0 // pred_region
    _
  $region5: #{custom_clip_forward.1} parent=0 // pred_fallthru
    _
  // Predicated region
  $region6: #{custom_clip_forward.1} parent=0 // pred_check
    _
  $region7: #{custom_clip_forward.1} parent=0 // pred_check_branch
    %14 = sbr.rel (0) target = $region9
  $region8: #{custom_clip_forward.1} parent=0 // pred_region
    _
  $region9: #{custom_clip_forward.1} parent=0 // pred_fallthru
    _
  // Predicated region
  $region10: #{custom_clip_forward.1} parent=0 // pred_check
    _
  $region11: #{custom_clip_forward.1} parent=0 // pred_check_branch
    %16 = sbr.rel (0) target = $region13
  $region12: #{custom_clip_forward.1} parent=0 // pred_region
    _
  $region13: #{custom_clip_forward.1} parent=0 // pred_fallthru
    _
  // Predicated region
  $region14: #{custom_clip_forward.1} parent=0 // pred_check
    _
  $region15: #{custom_clip_forward.1} parent=0 // pred_check_branch
    %18 = sbr.rel (0) target = $region17
  $region16: #{custom_clip_forward.1} parent=0 // pred_region
    _
  $region17: #{custom_clip_forward.1} parent=0 // pred_fallthru
    _
  // Predicated region
  $region18: #{custom_clip_forward.1} parent=0 // pred_check
    _
  $region19: #{custom_clip_forward.1} parent=0 // pred_check_branch
    %20 = sbr.rel (0) target = $region21
  $region20: #{custom_clip_forward.1} parent=0 // pred_region
    _
  $region21: #{custom_clip_forward.1} parent=0 // pred_fallthru
    _
  %v22 = vld [vmem:[%s1] sm:$0xf]
  %v23 = vld [vmem:[%s1 + $0x4] sm:$0xf]
  %v24 = vld [vmem:[%s1 + $0x8] sm:$0xf]
  %v25 = vld [vmem:[%s1 + $0xc] sm:$0xf]
  %v26 = vld [vmem:[%s1 + $0x10] sm:$0xf]
  %v27 = vld [vmem:[%s1 + $0x14] sm:$0xf]
  %v28 = vld [vmem:[%s1 + $0x18] sm:$0xf]
  %v29 = vld [vmem:[%s1 + $0x1c] sm:$0xf]
  %v30 = vld [vmem:[%s1 + $0x20] sm:$0xf]
  %v31 = vld [vmem:[%s1 + $0x24] sm:$0xf]
  %v32 = vld [vmem:[%s1 + $0x28] sm:$0xf]
  %v33 = vld [vmem:[%s1 + $0x2c] sm:$0xf]
  %v34 = vld [vmem:[%s1 + $0x30] sm:$0xf]
  %v35 = vld [vmem:[%s1 + $0x34] sm:$0xf]
  %v36 = vld [vmem:[%s1 + $0x38] sm:$0xf]
  %v37 = vld [vmem:[%s1 + $0x3c] sm:$0xf]
  %v38 = vld [vmem:[%s1 + $0x40] sm:$0xf]
  %v39 = vld [vmem:[%s1 + $0x44] sm:$0xf]
  %v40 = vld [vmem:[%s1 + $0x48] sm:$0xf]
  %v41 = vld [vmem:[%s1 + $0x4c] sm:$0xf]
  %v42 = vld [vmem:[%s1 + $0x50] sm:$0xf]
  %v43 = vld [vmem:[%s1 + $0x54] sm:$0xf]
  %v44 = vld [vmem:[%s1 + $0x58] sm:$0xf]
  %v45 = vld [vmem:[%s1 + $0x5c] sm:$0xf]
  %v46 = vld [vmem:[%s1 + $0x60] sm:$0xf]
  %v47 = vld [vmem:[%s1 + $0x64] sm:$0xf]
  %v48 = vld [vmem:[%s1 + $0x68] sm:$0xf]
  %v49 = vld [vmem:[%s1 + $0x6c] sm:$0xf]
  %v50 = vld [vmem:[%s1 + $0x70] sm:$0xf]
  %v51 = vld [vmem:[%s1 + $0x74] sm:$0xf]
  %v52 = vld [vmem:[%s1 + $0x78] sm:$0xf]
  %v53 = vld [vmem:[%s1 + $0x7c] sm:$0xf]
  %v54 = vld [vmem:[%s1 + $0x80] sm:$0xf]
  %v55 = vld [vmem:[%s1 + $0x84] sm:$0xf]
  %v56 = vld [vmem:[%s1 + $0x88] sm:$0xf]
  %v57 = vld [vmem:[%s1 + $0x8c] sm:$0xf]
  %v58 = vld [vmem:[%s1 + $0x90] sm:$0xf]
  %v59 = vld [vmem:[%s1 + $0x94] sm:$0xf]
  %v60 = vld [vmem:[%s1 + $0x98] sm:$0xf]
  %v61 = vld [vmem:[%s1 + $0x9c] sm:$0xf]
  %v62 = vld [vmem:[%s1 + $0xa0] sm:$0xf]
  %v63 = vld [vmem:[%s1 + $0xa4] sm:$0xf]
  %v64 = vld [vmem:[%s1 + $0xa8] sm:$0xf]
  %v65 = vld [vmem:[%s1 + $0xac] sm:$0xf]
  %v66 = vld [vmem:[%s1 + $0xb0] sm:$0xf]
  %v67 = vld [vmem:[%s1 + $0xb4] sm:$0xf]
  %v68 = vld [vmem:[%s1 + $0xb8] sm:$0xf]
  %v69 = vld [vmem:[%s1 + $0xbc] sm:$0xf]
  %v70 = vld [vmem:[%s1 + $0xc0] sm:$0xf]
  %v71 = vld [vmem:[%s1 + $0xc4] sm:$0xf]
  %v72 = vld [vmem:[%s1 + $0xc8] sm:$0xf]
  %v73 = vld [vmem:[%s1 + $0xcc] sm:$0xf]
  %v74 = vld [vmem:[%s1 + $0xd0] sm:$0xf]
  %v75 = vld [vmem:[%s1 + $0xd4] sm:$0xf]
  %v76 = vld [vmem:[%s1 + $0xd8] sm:$0xf]
  %v77 = vld [vmem:[%s1 + $0xdc] sm:$0xf]
  %v78 = vld [vmem:[%s1 + $0xe0] sm:$0xf]
  %v79 = vld [vmem:[%s1 + $0xe4] sm:$0xf]
  %v80 = vld [vmem:[%s1 + $0xe8] sm:$0xf]
  %v81 = vld [vmem:[%s1 + $0xec] sm:$0xf]
  %v82 = vld [vmem:[%s1 + $0xf0] sm:$0xf]
  %v83 = vld [vmem:[%s1 + $0xf4] sm:$0xf]
  %v84 = vld [vmem:[%s1 + $0xf8] sm:$0xf]
  %v85 = vld [vmem:[%s1 + $0xfc] sm:$0xf]
  %v86 = vld [vmem:[%s1 + $0x100] sm:$0xf]
  %v87 = vld [vmem:[%s1 + $0x104] sm:$0xf]
  %v88 = vld [vmem:[%s1 + $0x108] sm:$0xf]
  %v89 = vld [vmem:[%s1 + $0x10c] sm:$0xf]
  %v90 = vld [vmem:[%s1 + $0x110] sm:$0xf]
  %v91 = vld [vmem:[%s1 + $0x114] sm:$0xf]
  %v92 = vld [vmem:[%s1 + $0x118] sm:$0xf]
  %v93 = vld [vmem:[%s1 + $0x11c] sm:$0xf]
  %v94 = vld [vmem:[%s1 + $0x120] sm:$0xf]
  %v95 = vld [vmem:[%s1 + $0x124] sm:$0xf]
  %v96 = vld [vmem:[%s1 + $0x128] sm:$0xf]
  %v97 = vld [vmem:[%s1 + $0x12c] sm:$0xf]
  %v98 = vld [vmem:[%s1 + $0x130] sm:$0xf]
  %v99 = vld [vmem:[%s1 + $0x134] sm:$0xf]
  %v100 = vld [vmem:[%s1 + $0x138] sm:$0xf]
  %v101 = vld [vmem:[%s1 + $0x13c] sm:$0xf]
  %v102 = vld [vmem:[%s1 + $0x140] sm:$0xf]
  %v103 = vld [vmem:[%s1 + $0x144] sm:$0xf]
  %v104 = vld [vmem:[%s1 + $0x148] sm:$0xf]
  %v105 = vld [vmem:[%s1 + $0x14c] sm:$0xf]
  %v106 = vld [vmem:[%s1 + $0x150] sm:$0xf]
  %v107 = vld [vmem:[%s1 + $0x154] sm:$0xf]
  %v108 = vld [vmem:[%s1 + $0x158] sm:$0xf]
  %v109 = vld [vmem:[%s1 + $0x15c] sm:$0xf]
  %v110 = vld [vmem:[%s1 + $0x160] sm:$0xf]
  %v111 = vld [vmem:[%s1 + $0x164] sm:$0xf]
  %v112 = vld [vmem:[%s1 + $0x168] sm:$0xf]
  %v113 = vld [vmem:[%s1 + $0x16c] sm:$0xf]
  %v114 = vld [vmem:[%s1 + $0x170] sm:$0xf]
  %v115 = vld [vmem:[%s1 + $0x174] sm:$0xf]
  %v116 = vld [vmem:[%s1 + $0x178] sm:$0xf]
  %v117 = vld [vmem:[%s1 + $0x17c] sm:$0xf]
  %v118 = vld [vmem:[%s1 + $0x180] sm:$0xf]
  %v119 = vld [vmem:[%s1 + $0x184] sm:$0xf]
  %v120 = vld [vmem:[%s1 + $0x188] sm:$0xf]
  %v121 = vld [vmem:[%s1 + $0x18c] sm:$0xf]
  %v122 = vld [vmem:[%s1 + $0x190] sm:$0xf]
  %v123 = vld [vmem:[%s1 + $0x194] sm:$0xf]
  %v124 = vld [vmem:[%s1 + $0x198] sm:$0xf]
  %v125 = vld [vmem:[%s1 + $0x19c] sm:$0xf]
  %v126 = vld [vmem:[%s1 + $0x1a0] sm:$0xf]
  %v127 = vld [vmem:[%s1 + $0x1a4] sm:$0xf]
  %v128 = vld [vmem:[%s1 + $0x1a8] sm:$0xf]
  %v129 = vld [vmem:[%s1 + $0x1ac] sm:$0xf]
  %v130 = vld [vmem:[%s1 + $0x1b0] sm:$0xf]
  %v131 = vld [vmem:[%s1 + $0x1b4] sm:$0xf]
  %v132 = vld [vmem:[%s1 + $0x1b8] sm:$0xf]
  %v133 = vld [vmem:[%s1 + $0x1bc] sm:$0xf]
  %v134 = vld [vmem:[%s1 + $0x1c0] sm:$0xf]
  %v135 = vld [vmem:[%s1 + $0x1c4] sm:$0xf]
  %v136 = vld [vmem:[%s1 + $0x1c8] sm:$0xf]
  %v137 = vld [vmem:[%s1 + $0x1cc] sm:$0xf]
  %v138 = vld [vmem:[%s1 + $0x1d0] sm:$0xf]
  %v139 = vld [vmem:[%s1 + $0x1d4] sm:$0xf]
  %v140 = vld [vmem:[%s1 + $0x1d8] sm:$0xf]
  %v141 = vld [vmem:[%s1 + $0x1dc] sm:$0xf]
  %v142 = vld [vmem:[%s1 + $0x1e0] sm:$0xf]
  %v143 = vld [vmem:[%s1 + $0x1e4] sm:$0xf]
  %v144 = vld [vmem:[%s1 + $0x1e8] sm:$0xf]
  %v145 = vld [vmem:[%s1 + $0x1ec] sm:$0xf]
  %v146 = vld [vmem:[%s1 + $0x1f0] sm:$0xf]
  %v147 = vld [vmem:[%s1 + $0x1f4] sm:$0xf]
  %v148 = vld [vmem:[%s1 + $0x1f8] sm:$0xf]
  %v149 = vld [vmem:[%s1 + $0x1fc] sm:$0xf]
  %v150 = vunpack.c.l.bf16 %v22
  %v151 = vunpack.c.l.bf16 %v23
  %v152 = vunpack.c.l.bf16 %v24
  %v153 = vunpack.c.l.bf16 %v25
  %v154 = vunpack.c.l.bf16 %v26
  %v155 = vunpack.c.l.bf16 %v27
  %v156 = vunpack.c.l.bf16 %v28
  %v157 = vunpack.c.l.bf16 %v29
  %v158 = vunpack.c.l.bf16 %v30
  %v159 = vunpack.c.l.bf16 %v31
  %v160 = vunpack.c.l.bf16 %v32
  %v161 = vunpack.c.l.bf16 %v33
  %v162 = vunpack.c.l.bf16 %v34
  %v163 = vunpack.c.l.bf16 %v35
  %v164 = vunpack.c.l.bf16 %v36
  %v165 = vunpack.c.l.bf16 %v37
  %v166 = vunpack.c.l.bf16 %v38
  %v167 = vunpack.c.l.bf16 %v39
  %v168 = vunpack.c.l.bf16 %v40
  %v169 = vunpack.c.l.bf16 %v41
  %v170 = vunpack.c.l.bf16 %v42
  %v171 = vunpack.c.l.bf16 %v43
  %v172 = vunpack.c.l.bf16 %v44
  %v173 = vunpack.c.l.bf16 %v45
  %v174 = vunpack.c.l.bf16 %v46
  %v175 = vunpack.c.l.bf16 %v47
  %v176 = vunpack.c.l.bf16 %v48
  %v177 = vunpack.c.l.bf16 %v49
  %v178 = vunpack.c.l.bf16 %v50
  %v179 = vunpack.c.l.bf16 %v51
  %v180 = vunpack.c.l.bf16 %v52
  %v181 = vunpack.c.l.bf16 %v53
  %v182 = vunpack.c.l.bf16 %v54
  %v183 = vunpack.c.l.bf16 %v55
  %v184 = vunpack.c.l.bf16 %v56
  %v185 = vunpack.c.l.bf16 %v57
  %v186 = vunpack.c.l.bf16 %v58
  %v187 = vunpack.c.l.bf16 %v59
  %v188 = vunpack.c.l.bf16 %v60
  %v189 = vunpack.c.l.bf16 %v61
  %v190 = vunpack.c.l.bf16 %v62
  %v191 = vunpack.c.l.bf16 %v63
  %v192 = vunpack.c.l.bf16 %v64
  %v193 = vunpack.c.l.bf16 %v65
  %v194 = vunpack.c.l.bf16 %v66
  %v195 = vunpack.c.l.bf16 %v67
  %v196 = vunpack.c.l.bf16 %v68
  %v197 = vunpack.c.l.bf16 %v69
  %v198 = vunpack.c.l.bf16 %v70
  %v199 = vunpack.c.l.bf16 %v71
  %v200 = vunpack.c.l.bf16 %v72
  %v201 = vunpack.c.l.bf16 %v73
  %v202 = vunpack.c.l.bf16 %v74
  %v203 = vunpack.c.l.bf16 %v75
  %v204 = vunpack.c.l.bf16 %v76
  %v205 = vunpack.c.l.bf16 %v77
  %v206 = vunpack.c.l.bf16 %v78
  %v207 = vunpack.c.l.bf16 %v79
  %v208 = vunpack.c.l.bf16 %v80
  %v209 = vunpack.c.l.bf16 %v81
  %v210 = vunpack.c.l.bf16 %v82
  %v211 = vunpack.c.l.bf16 %v83
  %v212 = vunpack.c.l.bf16 %v84
  %v213 = vunpack.c.l.bf16 %v85
  %v214 = vunpack.c.l.bf16 %v86
  %v215 = vunpack.c.l.bf16 %v87
  %v216 = vunpack.c.l.bf16 %v88
  %v217 = vunpack.c.l.bf16 %v89
  %v218 = vunpack.c.l.bf16 %v90
  %v219 = vunpack.c.l.bf16 %v91
  %v220 = vunpack.c.l.bf16 %v92
  %v221 = vunpack.c.l.bf16 %v93
  %v222 = vunpack.c.l.bf16 %v94
  %v223 = vunpack.c.l.bf16 %v95
  %v224 = vunpack.c.l.bf16 %v96
  %v225 = vunpack.c.l.bf16 %v97
  %v226 = vunpack.c.l.bf16 %v98
  %v227 = vunpack.c.l.bf16 %v99
  %v228 = vunpack.c.l.bf16 %v100
  %v229 = vunpack.c.l.bf16 %v101
  %v230 = vunpack.c.l.bf16 %v102
  %v231 = vunpack.c.l.bf16 %v103
  %v232 = vunpack.c.l.bf16 %v104
  %v233 = vunpack.c.l.bf16 %v105
  %v234 = vunpack.c.l.bf16 %v106
  %v235 = vunpack.c.l.bf16 %v107
  %v236 = vunpack.c.l.bf16 %v108
  %v237 = vunpack.c.l.bf16 %v109
  %v238 = vunpack.c.l.bf16 %v110
  %v239 = vunpack.c.l.bf16 %v111
  %v240 = vunpack.c.l.bf16 %v112
  %v241 = vunpack.c.l.bf16 %v113
  %v242 = vunpack.c.l.bf16 %v114
  %v243 = vunpack.c.l.bf16 %v115
  %v244 = vunpack.c.l.bf16 %v116
  %v245 = vunpack.c.l.bf16 %v117
  %v246 = vunpack.c.l.bf16 %v118
  %v247 = vunpack.c.l.bf16 %v119
  %v248 = vunpack.c.l.bf16 %v120
  %v249 = vunpack.c.l.bf16 %v121
  %v250 = vunpack.c.l.bf16 %v122
  %v251 = vunpack.c.l.bf16 %v123
  %v252 = vunpack.c.l.bf16 %v124
  %v253 = vunpack.c.l.bf16 %v125
  %v254 = vunpack.c.l.bf16 %v126
  %v255 = vunpack.c.l.bf16 %v127
  %v256 = vunpack.c.l.bf16 %v128
  %v257 = vunpack.c.l.bf16 %v129
  %v258 = vunpack.c.l.bf16 %v130
  %v259 = vunpack.c.l.bf16 %v131
  %v260 = vunpack.c.l.bf16 %v132
  %v261 = vunpack.c.l.bf16 %v133
  %v262 = vunpack.c.l.bf16 %v134
  %v263 = vunpack.c.l.bf16 %v135
  %v264 = vunpack.c.l.bf16 %v136
  %v265 = vunpack.c.l.bf16 %v137
  %v266 = vunpack.c.l.bf16 %v138
  %v267 = vunpack.c.l.bf16 %v139
  %v268 = vunpack.c.l.bf16 %v140
  %v269 = vunpack.c.l.bf16 %v141
  %v270 = vunpack.c.l.bf16 %v142
  %v271 = vunpack.c.l.bf16 %v143
  %v272 = vunpack.c.l.bf16 %v144
  %v273 = vunpack.c.l.bf16 %v145
  %v274 = vunpack.c.l.bf16 %v146
  %v275 = vunpack.c.l.bf16 %v147
  %v276 = vunpack.c.l.bf16 %v148
  %v277 = vunpack.c.l.bf16 %v149
  %v278 = vld [vmem:[%s2] sm:$0xff]
  %v279 = vld [vmem:[%s2 + $0x8] sm:$0xff]
  %v280 = vld [vmem:[%s2 + $0x10] sm:$0xff]
  %v281 = vld [vmem:[%s2 + $0x18] sm:$0xff]
  %v282 = vld [vmem:[%s2 + $0x20] sm:$0xff]
  %v283 = vld [vmem:[%s2 + $0x28] sm:$0xff]
  %v284 = vld [vmem:[%s2 + $0x30] sm:$0xff]
  %v285 = vld [vmem:[%s2 + $0x38] sm:$0xff]
  %v286 = vld [vmem:[%s2 + $0x40] sm:$0xff]
  %v287 = vld [vmem:[%s2 + $0x48] sm:$0xff]
  %v288 = vld [vmem:[%s2 + $0x50] sm:$0xff]
  %v289 = vld [vmem:[%s2 + $0x58] sm:$0xff]
  %v290 = vld [vmem:[%s2 + $0x60] sm:$0xff]
  %v291 = vld [vmem:[%s2 + $0x68] sm:$0xff]
  %v292 = vld [vmem:[%s2 + $0x70] sm:$0xff]
  %v293 = vld [vmem:[%s2 + $0x78] sm:$0xff]
  %v294 = vld [vmem:[%s2 + $0x80] sm:$0xff]
  %v295 = vld [vmem:[%s2 + $0x88] sm:$0xff]
  %v296 = vld [vmem:[%s2 + $0x90] sm:$0xff]
  %v297 = vld [vmem:[%s2 + $0x98] sm:$0xff]
  %v298 = vld [vmem:[%s2 + $0xa0] sm:$0xff]
  %v299 = vld [vmem:[%s2 + $0xa8] sm:$0xff]
  %v300 = vld [vmem:[%s2 + $0xb0] sm:$0xff]
  %v301 = vld [vmem:[%s2 + $0xb8] sm:$0xff]
  %v302 = vld [vmem:[%s2 + $0xc0] sm:$0xff]
  %v303 = vld [vmem:[%s2 + $0xc8] sm:$0xff]
  %v304 = vld [vmem:[%s2 + $0xd0] sm:$0xff]
  %v305 = vld [vmem:[%s2 + $0xd8] sm:$0xff]
  %v306 = vld [vmem:[%s2 + $0xe0] sm:$0xff]
  %v307 = vld [vmem:[%s2 + $0xe8] sm:$0xff]
  %v308 = vld [vmem:[%s2 + $0xf0] sm:$0xff]
  %v309 = vld [vmem:[%s2 + $0xf8] sm:$0xff]
  %v310 = vld [vmem:[%s2 + $0x100] sm:$0xff]
  %v311 = vld [vmem:[%s2 + $0x108] sm:$0xff]
  %v312 = vld [vmem:[%s2 + $0x110] sm:$0xff]
  %v313 = vld [vmem:[%s2 + $0x118] sm:$0xff]
  %v314 = vld [vmem:[%s2 + $0x120] sm:$0xff]
  %v315 = vld [vmem:[%s2 + $0x128] sm:$0xff]
  %v316 = vld [vmem:[%s2 + $0x130] sm:$0xff]
  %v317 = vld [vmem:[%s2 + $0x138] sm:$0xff]
  %v318 = vld [vmem:[%s2 + $0x140] sm:$0xff]
  %v319 = vld [vmem:[%s2 + $0x148] sm:$0xff]
  %v320 = vld [vmem:[%s2 + $0x150] sm:$0xff]
  %v321 = vld [vmem:[%s2 + $0x158] sm:$0xff]
  %v322 = vld [vmem:[%s2 + $0x160] sm:$0xff]
  %v323 = vld [vmem:[%s2 + $0x168] sm:$0xff]
  %v324 = vld [vmem:[%s2 + $0x170] sm:$0xff]
  %v325 = vld [vmem:[%s2 + $0x178] sm:$0xff]
  %v326 = vld [vmem:[%s2 + $0x180] sm:$0xff]
  %v327 = vld [vmem:[%s2 + $0x188] sm:$0xff]
  %v328 = vld [vmem:[%s2 + $0x190] sm:$0xff]
  %v329 = vld [vmem:[%s2 + $0x198] sm:$0xff]
  %v330 = vld [vmem:[%s2 + $0x1a0] sm:$0xff]
  %v331 = vld [vmem:[%s2 + $0x1a8] sm:$0xff]
  %v332 = vld [vmem:[%s2 + $0x1b0] sm:$0xff]
  %v333 = vld [vmem:[%s2 + $0x1b8] sm:$0xff]
  %v334 = vld [vmem:[%s2 + $0x1c0] sm:$0xff]
  %v335 = vld [vmem:[%s2 + $0x1c8] sm:$0xff]
  %v336 = vld [vmem:[%s2 + $0x1d0] sm:$0xff]
  %v337 = vld [vmem:[%s2 + $0x1d8] sm:$0xff]
  %v338 = vld [vmem:[%s2 + $0x1e0] sm:$0xff]
  %v339 = vld [vmem:[%s2 + $0x1e8] sm:$0xff]
  %v340 = vld [vmem:[%s2 + $0x1f0] sm:$0xff]
  %v341 = vld [vmem:[%s2 + $0x1f8] sm:$0xff]
  %v342 = vld [vmem:[%s2 + $0x200] sm:$0xff]
  %v343 = vld [vmem:[%s2 + $0x208] sm:$0xff]
  %v344 = vld [vmem:[%s2 + $0x210] sm:$0xff]
  %v345 = vld [vmem:[%s2 + $0x218] sm:$0xff]
  %v346 = vld [vmem:[%s2 + $0x220] sm:$0xff]
  %v347 = vld [vmem:[%s2 + $0x228] sm:$0xff]
  %v348 = vld [vmem:[%s2 + $0x230] sm:$0xff]
  %v349 = vld [vmem:[%s2 + $0x238] sm:$0xff]
  %v350 = vld [vmem:[%s2 + $0x240] sm:$0xff]
  %v351 = vld [vmem:[%s2 + $0x248] sm:$0xff]
  %v352 = vld [vmem:[%s2 + $0x250] sm:$0xff]
  %v353 = vld [vmem:[%s2 + $0x258] sm:$0xff]
  %v354 = vld [vmem:[%s2 + $0x260] sm:$0xff]
  %v355 = vld [vmem:[%s2 + $0x268] sm:$0xff]
  %v356 = vld [vmem:[%s2 + $0x270] sm:$0xff]
  %v357 = vld [vmem:[%s2 + $0x278] sm:$0xff]
  %v358 = vld [vmem:[%s2 + $0x280] sm:$0xff]
  %v359 = vld [vmem:[%s2 + $0x288] sm:$0xff]
  %v360 = vld [vmem:[%s2 + $0x290] sm:$0xff]
  %v361 = vld [vmem:[%s2 + $0x298] sm:$0xff]
  %v362 = vld [vmem:[%s2 + $0x2a0] sm:$0xff]
  %v363 = vld [vmem:[%s2 + $0x2a8] sm:$0xff]
  %v364 = vld [vmem:[%s2 + $0x2b0] sm:$0xff]
  %v365 = vld [vmem:[%s2 + $0x2b8] sm:$0xff]
  %v366 = vld [vmem:[%s2 + $0x2c0] sm:$0xff]
  %v367 = vld [vmem:[%s2 + $0x2c8] sm:$0xff]
  %v368 = vld [vmem:[%s2 + $0x2d0] sm:$0xff]
  %v369 = vld [vmem:[%s2 + $0x2d8] sm:$0xff]
  %v370 = vld [vmem:[%s2 + $0x2e0] sm:$0xff]
  %v371 = vld [vmem:[%s2 + $0x2e8] sm:$0xff]
  %v372 = vld [vmem:[%s2 + $0x2f0] sm:$0xff]
  %v373 = vld [vmem:[%s2 + $0x2f8] sm:$0xff]
  %v374 = vld [vmem:[%s2 + $0x300] sm:$0xff]
  %v375 = vld [vmem:[%s2 + $0x308] sm:$0xff]
  %v376 = vld [vmem:[%s2 + $0x310] sm:$0xff]
  %v377 = vld [vmem:[%s2 + $0x318] sm:$0xff]
  %v378 = vld [vmem:[%s2 + $0x320] sm:$0xff]
  %v379 = vld [vmem:[%s2 + $0x328] sm:$0xff]
  %v380 = vld [vmem:[%s2 + $0x330] sm:$0xff]
  %v381 = vld [vmem:[%s2 + $0x338] sm:$0xff]
  %v382 = vld [vmem:[%s2 + $0x340] sm:$0xff]
  %v383 = vld [vmem:[%s2 + $0x348] sm:$0xff]
  %v384 = vld [vmem:[%s2 + $0x350] sm:$0xff]
  %v385 = vld [vmem:[%s2 + $0x358] sm:$0xff]
  %v386 = vld [vmem:[%s2 + $0x360] sm:$0xff]
  %v387 = vld [vmem:[%s2 + $0x368] sm:$0xff]
  %v388 = vld [vmem:[%s2 + $0x370] sm:$0xff]
  %v389 = vld [vmem:[%s2 + $0x378] sm:$0xff]
  %v390 = vld [vmem:[%s2 + $0x380] sm:$0xff]
  %v391 = vld [vmem:[%s2 + $0x388] sm:$0xff]
  %v392 = vld [vmem:[%s2 + $0x390] sm:$0xff]
  %v393 = vld [vmem:[%s2 + $0x398] sm:$0xff]
  %v394 = vld [vmem:[%s2 + $0x3a0] sm:$0xff]
  %v395 = vld [vmem:[%s2 + $0x3a8] sm:$0xff]
  %v396 = vld [vmem:[%s2 + $0x3b0] sm:$0xff]
  %v397 = vld [vmem:[%s2 + $0x3b8] sm:$0xff]
  %v398 = vld [vmem:[%s2 + $0x3c0] sm:$0xff]
  %v399 = vld [vmem:[%s2 + $0x3c8] sm:$0xff]
  %v400 = vld [vmem:[%s2 + $0x3d0] sm:$0xff]
  %v401 = vld [vmem:[%s2 + $0x3d8] sm:$0xff]
  %v402 = vld [vmem:[%s2 + $0x3e0] sm:$0xff]
  %v403 = vld [vmem:[%s2 + $0x3e8] sm:$0xff]
  %v404 = vld [vmem:[%s2 + $0x3f0] sm:$0xff]
  %v405 = vld [vmem:[%s2 + $0x3f8] sm:$0xff]
  %v534 = vunpack.c.l.b16 %v278
  %v535 = vunpack.c.h.b16 %v278
  %v536 = vunpack.c.l.b16 %v279
  %v537 = vunpack.c.h.b16 %v279
  %v538 = vunpack.c.l.b16 %v280
  %v539 = vunpack.c.h.b16 %v280
  %v540 = vunpack.c.l.b16 %v281
  %v541 = vunpack.c.h.b16 %v281
  %v542 = vunpack.c.l.b16 %v282
  %v543 = vunpack.c.h.b16 %v282
  %v544 = vunpack.c.l.b16 %v283
  %v545 = vunpack.c.h.b16 %v283
  %v546 = vunpack.c.l.b16 %v284
  %v547 = vunpack.c.h.b16 %v284
  %v548 = vunpack.c.l.b16 %v285
  %v549 = vunpack.c.h.b16 %v285
  %v550 = vunpack.c.l.b16 %v286
  %v551 = vunpack.c.h.b16 %v286
  %v552 = vunpack.c.l.b16 %v287
  %v553 = vunpack.c.h.b16 %v287
  %v554 = vunpack.c.l.b16 %v288
  %v555 = vunpack.c.h.b16 %v288
  %v556 = vunpack.c.l.b16 %v289
  %v557 = vunpack.c.h.b16 %v289
  %v558 = vunpack.c.l.b16 %v290
  %v559 = vunpack.c.h.b16 %v290
  %v560 = vunpack.c.l.b16 %v291
  %v561 = vunpack.c.h.b16 %v291
  %v562 = vunpack.c.l.b16 %v292
  %v563 = vunpack.c.h.b16 %v292
  %v564 = vunpack.c.l.b16 %v293
  %v565 = vunpack.c.h.b16 %v293
  %v566 = vunpack.c.l.b16 %v294
  %v567 = vunpack.c.h.b16 %v294
  %v568 = vunpack.c.l.b16 %v295
  %v569 = vunpack.c.h.b16 %v295
  %v570 = vunpack.c.l.b16 %v296
  %v571 = vunpack.c.h.b16 %v296
  %v572 = vunpack.c.l.b16 %v297
  %v573 = vunpack.c.h.b16 %v297
  %v574 = vunpack.c.l.b16 %v298
  %v575 = vunpack.c.h.b16 %v298
  %v576 = vunpack.c.l.b16 %v299
  %v577 = vunpack.c.h.b16 %v299
  %v578 = vunpack.c.l.b16 %v300
  %v579 = vunpack.c.h.b16 %v300
  %v580 = vunpack.c.l.b16 %v301
  %v581 = vunpack.c.h.b16 %v301
  %v582 = vunpack.c.l.b16 %v302
  %v583 = vunpack.c.h.b16 %v302
  %v584 = vunpack.c.l.b16 %v303
  %v585 = vunpack.c.h.b16 %v303
  %v586 = vunpack.c.l.b16 %v304
  %v587 = vunpack.c.h.b16 %v304
  %v588 = vunpack.c.l.b16 %v305
  %v589 = vunpack.c.h.b16 %v305
  %v590 = vunpack.c.l.b16 %v306
  %v591 = vunpack.c.h.b16 %v306
  %v592 = vunpack.c.l.b16 %v307
  %v593 = vunpack.c.h.b16 %v307
  %v594 = vunpack.c.l.b16 %v308
  %v595 = vunpack.c.h.b16 %v308
  %v596 = vunpack.c.l.b16 %v309
  %v597 = vunpack.c.h.b16 %v309
  %v598 = vunpack.c.l.b16 %v310
  %v599 = vunpack.c.h.b16 %v310
  %v600 = vunpack.c.l.b16 %v311
  %v601 = vunpack.c.h.b16 %v311
  %v602 = vunpack.c.l.b16 %v312
  %v603 = vunpack.c.h.b16 %v312
  %v604 = vunpack.c.l.b16 %v313
  %v605 = vunpack.c.h.b16 %v313
  %v606 = vunpack.c.l.b16 %v314
  %v607 = vunpack.c.h.b16 %v314
  %v608 = vunpack.c.l.b16 %v315
  %v609 = vunpack.c.h.b16 %v315
  %v610 = vunpack.c.l.b16 %v316
  %v611 = vunpack.c.h.b16 %v316
  %v612 = vunpack.c.l.b16 %v317
  %v613 = vunpack.c.h.b16 %v317
  %v614 = vunpack.c.l.b16 %v318
  %v615 = vunpack.c.h.b16 %v318
  %v616 = vunpack.c.l.b16 %v319
  %v617 = vunpack.c.h.b16 %v319
  %v618 = vunpack.c.l.b16 %v320
  %v619 = vunpack.c.h.b16 %v320
  %v620 = vunpack.c.l.b16 %v321
  %v621 = vunpack.c.h.b16 %v321
  %v622 = vunpack.c.l.b16 %v322
  %v623 = vunpack.c.h.b16 %v322
  %v624 = vunpack.c.l.b16 %v323
  %v625 = vunpack.c.h.b16 %v323
  %v626 = vunpack.c.l.b16 %v324
  %v627 = vunpack.c.h.b16 %v324
  %v628 = vunpack.c.l.b16 %v325
  %v629 = vunpack.c.h.b16 %v325
  %v630 = vunpack.c.l.b16 %v326
  %v631 = vunpack.c.h.b16 %v326
  %v632 = vunpack.c.l.b16 %v327
  %v633 = vunpack.c.h.b16 %v327
  %v634 = vunpack.c.l.b16 %v328
  %v635 = vunpack.c.h.b16 %v328
  %v636 = vunpack.c.l.b16 %v329
  %v637 = vunpack.c.h.b16 %v329
  %v638 = vunpack.c.l.b16 %v330
  %v639 = vunpack.c.h.b16 %v330
  %v640 = vunpack.c.l.b16 %v331
  %v641 = vunpack.c.h.b16 %v331
  %v642 = vunpack.c.l.b16 %v332
  %v643 = vunpack.c.h.b16 %v332
  %v644 = vunpack.c.l.b16 %v333
  %v645 = vunpack.c.h.b16 %v333
  %v646 = vunpack.c.l.b16 %v334
  %v647 = vunpack.c.h.b16 %v334
  %v648 = vunpack.c.l.b16 %v335
  %v649 = vunpack.c.h.b16 %v335
  %v650 = vunpack.c.l.b16 %v336
  %v651 = vunpack.c.h.b16 %v336
  %v652 = vunpack.c.l.b16 %v337
  %v653 = vunpack.c.h.b16 %v337
  %v654 = vunpack.c.l.b16 %v338
  %v655 = vunpack.c.h.b16 %v338
  %v656 = vunpack.c.l.b16 %v339
  %v657 = vunpack.c.h.b16 %v339
  %v658 = vunpack.c.l.b16 %v340
  %v659 = vunpack.c.h.b16 %v340
  %v660 = vunpack.c.l.b16 %v341
  %v661 = vunpack.c.h.b16 %v341
  %v662 = vunpack.c.l.b16 %v342
  %v663 = vunpack.c.h.b16 %v342
  %v664 = vunpack.c.l.b16 %v343
  %v665 = vunpack.c.h.b16 %v343
  %v666 = vunpack.c.l.b16 %v344
  %v667 = vunpack.c.h.b16 %v344
  %v668 = vunpack.c.l.b16 %v345
  %v669 = vunpack.c.h.b16 %v345
  %v670 = vunpack.c.l.b16 %v346
  %v671 = vunpack.c.h.b16 %v346
  %v672 = vunpack.c.l.b16 %v347
  %v673 = vunpack.c.h.b16 %v347
  %v674 = vunpack.c.l.b16 %v348
  %v675 = vunpack.c.h.b16 %v348
  %v676 = vunpack.c.l.b16 %v349
  %v677 = vunpack.c.h.b16 %v349
  %v678 = vunpack.c.l.b16 %v350
  %v679 = vunpack.c.h.b16 %v350
  %v680 = vunpack.c.l.b16 %v351
  %v681 = vunpack.c.h.b16 %v351
  %v682 = vunpack.c.l.b16 %v352
  %v683 = vunpack.c.h.b16 %v352
  %v684 = vunpack.c.l.b16 %v353
  %v685 = vunpack.c.h.b16 %v353
  %v686 = vunpack.c.l.b16 %v354
  %v687 = vunpack.c.h.b16 %v354
  %v688 = vunpack.c.l.b16 %v355
  %v689 = vunpack.c.h.b16 %v355
  %v690 = vunpack.c.l.b16 %v356
  %v691 = vunpack.c.h.b16 %v356
  %v692 = vunpack.c.l.b16 %v357
  %v693 = vunpack.c.h.b16 %v357
  %v694 = vunpack.c.l.b16 %v358
  %v695 = vunpack.c.h.b16 %v358
  %v696 = vunpack.c.l.b16 %v359
  %v697 = vunpack.c.h.b16 %v359
  %v698 = vunpack.c.l.b16 %v360
  %v699 = vunpack.c.h.b16 %v360
  %v700 = vunpack.c.l.b16 %v361
  %v701 = vunpack.c.h.b16 %v361
  %v702 = vunpack.c.l.b16 %v362
  %v703 = vunpack.c.h.b16 %v362
  %v704 = vunpack.c.l.b16 %v363
  %v705 = vunpack.c.h.b16 %v363
  %v706 = vunpack.c.l.b16 %v364
  %v707 = vunpack.c.h.b16 %v364
  %v708 = vunpack.c.l.b16 %v365
  %v709 = vunpack.c.h.b16 %v365
  %v710 = vunpack.c.l.b16 %v366
  %v711 = vunpack.c.h.b16 %v366
  %v712 = vunpack.c.l.b16 %v367
  %v713 = vunpack.c.h.b16 %v367
  %v714 = vunpack.c.l.b16 %v368
  %v715 = vunpack.c.h.b16 %v368
  %v716 = vunpack.c.l.b16 %v369
  %v717 = vunpack.c.h.b16 %v369
  %v718 = vunpack.c.l.b16 %v370
  %v719 = vunpack.c.h.b16 %v370
  %v720 = vunpack.c.l.b16 %v371
  %v721 = vunpack.c.h.b16 %v371
  %v722 = vunpack.c.l.b16 %v372
  %v723 = vunpack.c.h.b16 %v372
  %v724 = vunpack.c.l.b16 %v373
  %v725 = vunpack.c.h.b16 %v373
  %v726 = vunpack.c.l.b16 %v374
  %v727 = vunpack.c.h.b16 %v374
  %v728 = vunpack.c.l.b16 %v375
  %v729 = vunpack.c.h.b16 %v375
  %v730 = vunpack.c.l.b16 %v376
  %v731 = vunpack.c.h.b16 %v376
  %v732 = vunpack.c.l.b16 %v377
  %v733 = vunpack.c.h.b16 %v377
  %v734 = vunpack.c.l.b16 %v378
  %v735 = vunpack.c.h.b16 %v378
  %v736 = vunpack.c.l.b16 %v379
  %v737 = vunpack.c.h.b16 %v379
  %v738 = vunpack.c.l.b16 %v380
  %v739 = vunpack.c.h.b16 %v380
  %v740 = vunpack.c.l.b16 %v381
  %v741 = vunpack.c.h.b16 %v381
  %v742 = vunpack.c.l.b16 %v382
  %v743 = vunpack.c.h.b16 %v382
  %v744 = vunpack.c.l.b16 %v383
  %v745 = vunpack.c.h.b16 %v383
  %v746 = vunpack.c.l.b16 %v384
  %v747 = vunpack.c.h.b16 %v384
  %v748 = vunpack.c.l.b16 %v385
  %v749 = vunpack.c.h.b16 %v385
  %v750 = vunpack.c.l.b16 %v386
  %v751 = vunpack.c.h.b16 %v386
  %v752 = vunpack.c.l.b16 %v387
  %v753 = vunpack.c.h.b16 %v387
  %v754 = vunpack.c.l.b16 %v388
  %v755 = vunpack.c.h.b16 %v388
  %v756 = vunpack.c.l.b16 %v389
  %v757 = vunpack.c.h.b16 %v389
  %v758 = vunpack.c.l.b16 %v390
  %v759 = vunpack.c.h.b16 %v390
  %v760 = vunpack.c.l.b16 %v391
  %v761 = vunpack.c.h.b16 %v391
  %v762 = vunpack.c.l.b16 %v392
  %v763 = vunpack.c.h.b16 %v392
  %v764 = vunpack.c.l.b16 %v393
  %v765 = vunpack.c.h.b16 %v393
  %v766 = vunpack.c.l.b16 %v394
  %v767 = vunpack.c.h.b16 %v394
  %v768 = vunpack.c.l.b16 %v395
  %v769 = vunpack.c.h.b16 %v395
  %v770 = vunpack.c.l.b16 %v396
  %v771 = vunpack.c.h.b16 %v396
  %v772 = vunpack.c.l.b16 %v397
  %v773 = vunpack.c.h.b16 %v397
  %v774 = vunpack.c.l.b16 %v398
  %v775 = vunpack.c.h.b16 %v398
  %v776 = vunpack.c.l.b16 %v399
  %v777 = vunpack.c.h.b16 %v399
  %v778 = vunpack.c.l.b16 %v400
  %v779 = vunpack.c.h.b16 %v400
  %v780 = vunpack.c.l.b16 %v401
  %v781 = vunpack.c.h.b16 %v401
  %v782 = vunpack.c.l.b16 %v402
  %v783 = vunpack.c.h.b16 %v402
  %v784 = vunpack.c.l.b16 %v403
  %v785 = vunpack.c.h.b16 %v403
  %v786 = vunpack.c.l.b16 %v404
  %v787 = vunpack.c.h.b16 %v404
  %v788 = vunpack.c.l.b16 %v405
  %v789 = vunpack.c.h.b16 %v405
  %v790 = vpack.c.b16 %v542, %v534
  %v791 = vpack.c.b16 %v543, %v535
  %v792 = vpack.c.b16 %v544, %v536
  %v793 = vpack.c.b16 %v545, %v537
  %v794 = vpack.c.b16 %v546, %v538
  %v795 = vpack.c.b16 %v547, %v539
  %v796 = vpack.c.b16 %v548, %v540
  %v797 = vpack.c.b16 %v549, %v541
  %v798 = vpack.c.b16 %v558, %v550
  %v799 = vpack.c.b16 %v559, %v551
  %v800 = vpack.c.b16 %v560, %v552
  %v801 = vpack.c.b16 %v561, %v553
  %v802 = vpack.c.b16 %v562, %v554
  %v803 = vpack.c.b16 %v563, %v555
  %v804 = vpack.c.b16 %v564, %v556
  %v805 = vpack.c.b16 %v565, %v557
  %v806 = vpack.c.b16 %v574, %v566
  %v807 = vpack.c.b16 %v575, %v567
  %v808 = vpack.c.b16 %v576, %v568
  %v809 = vpack.c.b16 %v577, %v569
  %v810 = vpack.c.b16 %v578, %v570
  %v811 = vpack.c.b16 %v579, %v571
  %v812 = vpack.c.b16 %v580, %v572
  %v813 = vpack.c.b16 %v581, %v573
  %v814 = vpack.c.b16 %v590, %v582
  %v815 = vpack.c.b16 %v591, %v583
  %v816 = vpack.c.b16 %v592, %v584
  %v817 = vpack.c.b16 %v593, %v585
  %v818 = vpack.c.b16 %v594, %v586
  %v819 = vpack.c.b16 %v595, %v587
  %v820 = vpack.c.b16 %v596, %v588
  %v821 = vpack.c.b16 %v597, %v589
  %v822 = vpack.c.b16 %v606, %v598
  %v823 = vpack.c.b16 %v607, %v599
  %v824 = vpack.c.b16 %v608, %v600
  %v825 = vpack.c.b16 %v609, %v601
  %v826 = vpack.c.b16 %v610, %v602
  %v827 = vpack.c.b16 %v611, %v603
  %v828 = vpack.c.b16 %v612, %v604
  %v829 = vpack.c.b16 %v613, %v605
  %v830 = vpack.c.b16 %v622, %v614
  %v831 = vpack.c.b16 %v623, %v615
  %v832 = vpack.c.b16 %v624, %v616
  %v833 = vpack.c.b16 %v625, %v617
  %v834 = vpack.c.b16 %v626, %v618
  %v835 = vpack.c.b16 %v627, %v619
  %v836 = vpack.c.b16 %v628, %v620
  %v837 = vpack.c.b16 %v629, %v621
  %v838 = vpack.c.b16 %v638, %v630
  %v839 = vpack.c.b16 %v639, %v631
  %v840 = vpack.c.b16 %v640, %v632
  %v841 = vpack.c.b16 %v641, %v633
  %v842 = vpack.c.b16 %v642, %v634
  %v843 = vpack.c.b16 %v643, %v635
  %v844 = vpack.c.b16 %v644, %v636
  %v845 = vpack.c.b16 %v645, %v637
  %v846 = vpack.c.b16 %v654, %v646
  %v847 = vpack.c.b16 %v655, %v647
  %v848 = vpack.c.b16 %v656, %v648
  %v849 = vpack.c.b16 %v657, %v649
  %v850 = vpack.c.b16 %v658, %v650
  %v851 = vpack.c.b16 %v659, %v651
  %v852 = vpack.c.b16 %v660, %v652
  %v853 = vpack.c.b16 %v661, %v653
  %v854 = vpack.c.b16 %v670, %v662
  %v855 = vpack.c.b16 %v671, %v663
  %v856 = vpack.c.b16 %v672, %v664
  %v857 = vpack.c.b16 %v673, %v665
  %v858 = vpack.c.b16 %v674, %v666
  %v859 = vpack.c.b16 %v675, %v667
  %v860 = vpack.c.b16 %v676, %v668
  %v861 = vpack.c.b16 %v677, %v669
  %v862 = vpack.c.b16 %v686, %v678
  %v863 = vpack.c.b16 %v687, %v679
  %v864 = vpack.c.b16 %v688, %v680
  %v865 = vpack.c.b16 %v689, %v681
  %v866 = vpack.c.b16 %v690, %v682
  %v867 = vpack.c.b16 %v691, %v683
  %v868 = vpack.c.b16 %v692, %v684
  %v869 = vpack.c.b16 %v693, %v685
  %v870 = vpack.c.b16 %v702, %v694
  %v871 = vpack.c.b16 %v703, %v695
  %v872 = vpack.c.b16 %v704, %v696
  %v873 = vpack.c.b16 %v705, %v697
  %v874 = vpack.c.b16 %v706, %v698
  %v875 = vpack.c.b16 %v707, %v699
  %v876 = vpack.c.b16 %v708, %v700
  %v877 = vpack.c.b16 %v709, %v701
  %v878 = vpack.c.b16 %v718, %v710
  %v879 = vpack.c.b16 %v719, %v711
  %v880 = vpack.c.b16 %v720, %v712
  %v881 = vpack.c.b16 %v721, %v713
  %v882 = vpack.c.b16 %v722, %v714
  %v883 = vpack.c.b16 %v723, %v715
  %v884 = vpack.c.b16 %v724, %v716
  %v885 = vpack.c.b16 %v725, %v717
  %v886 = vpack.c.b16 %v734, %v726
  %v887 = vpack.c.b16 %v735, %v727
  %v888 = vpack.c.b16 %v736, %v728
  %v889 = vpack.c.b16 %v737, %v729
  %v890 = vpack.c.b16 %v738, %v730
  %v891 = vpack.c.b16 %v739, %v731
  %v892 = vpack.c.b16 %v740, %v732
  %v893 = vpack.c.b16 %v741, %v733
  %v894 = vpack.c.b16 %v750, %v742
  %v895 = vpack.c.b16 %v751, %v743
  %v896 = vpack.c.b16 %v752, %v744
  %v897 = vpack.c.b16 %v753, %v745
  %v898 = vpack.c.b16 %v754, %v746
  %v899 = vpack.c.b16 %v755, %v747
  %v900 = vpack.c.b16 %v756, %v748
  %v901 = vpack.c.b16 %v757, %v749
  %v902 = vpack.c.b16 %v766, %v758
  %v903 = vpack.c.b16 %v767, %v759
  %v904 = vpack.c.b16 %v768, %v760
  %v905 = vpack.c.b16 %v769, %v761
  %v906 = vpack.c.b16 %v770, %v762
  %v907 = vpack.c.b16 %v771, %v763
  %v908 = vpack.c.b16 %v772, %v764
  %v909 = vpack.c.b16 %v773, %v765
  %v910 = vpack.c.b16 %v782, %v774
  %v911 = vpack.c.b16 %v783, %v775
  %v912 = vpack.c.b16 %v784, %v776
  %v913 = vpack.c.b16 %v785, %v777
  %v914 = vpack.c.b16 %v786, %v778
  %v915 = vpack.c.b16 %v787, %v779
  %v916 = vpack.c.b16 %v788, %v780
  %v917 = vpack.c.b16 %v789, %v781
  %v1174 = vunpack.c.l.b16 %v22
  %v1175 = vunpack.c.l.b16 %v23
  %v1176 = vunpack.c.l.b16 %v24
  %v1177 = vunpack.c.l.b16 %v25
  %v1178 = vunpack.c.l.b16 %v26
  %v1179 = vunpack.c.l.b16 %v27
  %v1180 = vunpack.c.l.b16 %v28
  %v1181 = vunpack.c.l.b16 %v29
  %v1182 = vunpack.c.l.b16 %v30
  %v1183 = vunpack.c.l.b16 %v31
  %v1184 = vunpack.c.l.b16 %v32
  %v1185 = vunpack.c.l.b16 %v33
  %v1186 = vunpack.c.l.b16 %v34
  %v1187 = vunpack.c.l.b16 %v35
  %v1188 = vunpack.c.l.b16 %v36
  %v1189 = vunpack.c.l.b16 %v37
  %v1190 = vunpack.c.l.b16 %v38
  %v1191 = vunpack.c.l.b16 %v39
  %v1192 = vunpack.c.l.b16 %v40
  %v1193 = vunpack.c.l.b16 %v41
  %v1194 = vunpack.c.l.b16 %v42
  %v1195 = vunpack.c.l.b16 %v43
  %v1196 = vunpack.c.l.b16 %v44
  %v1197 = vunpack.c.l.b16 %v45
  %v1198 = vunpack.c.l.b16 %v46
  %v1199 = vunpack.c.l.b16 %v47
  %v1200 = vunpack.c.l.b16 %v48
  %v1201 = vunpack.c.l.b16 %v49
  %v1202 = vunpack.c.l.b16 %v50
  %v1203 = vunpack.c.l.b16 %v51
  %v1204 = vunpack.c.l.b16 %v52
  %v1205 = vunpack.c.l.b16 %v53
  %v1206 = vunpack.c.l.b16 %v54
  %v1207 = vunpack.c.l.b16 %v55
  %v1208 = vunpack.c.l.b16 %v56
  %v1209 = vunpack.c.l.b16 %v57
  %v1210 = vunpack.c.l.b16 %v58
  %v1211 = vunpack.c.l.b16 %v59
  %v1212 = vunpack.c.l.b16 %v60
  %v1213 = vunpack.c.l.b16 %v61
  %v1214 = vunpack.c.l.b16 %v62
  %v1215 = vunpack.c.l.b16 %v63
  %v1216 = vunpack.c.l.b16 %v64
  %v1217 = vunpack.c.l.b16 %v65
  %v1218 = vunpack.c.l.b16 %v66
  %v1219 = vunpack.c.l.b16 %v67
  %v1220 = vunpack.c.l.b16 %v68
  %v1221 = vunpack.c.l.b16 %v69
  %v1222 = vunpack.c.l.b16 %v70
  %v1223 = vunpack.c.l.b16 %v71
  %v1224 = vunpack.c.l.b16 %v72
  %v1225 = vunpack.c.l.b16 %v73
  %v1226 = vunpack.c.l.b16 %v74
  %v1227 = vunpack.c.l.b16 %v75
  %v1228 = vunpack.c.l.b16 %v76
  %v1229 = vunpack.c.l.b16 %v77
  %v1230 = vunpack.c.l.b16 %v78
  %v1231 = vunpack.c.l.b16 %v79
  %v1232 = vunpack.c.l.b16 %v80
  %v1233 = vunpack.c.l.b16 %v81
  %v1234 = vunpack.c.l.b16 %v82
  %v1235 = vunpack.c.l.b16 %v83
  %v1236 = vunpack.c.l.b16 %v84
  %v1237 = vunpack.c.l.b16 %v85
  %v1238 = vunpack.c.l.b16 %v86
  %v1239 = vunpack.c.l.b16 %v87
  %v1240 = vunpack.c.l.b16 %v88
  %v1241 = vunpack.c.l.b16 %v89
  %v1242 = vunpack.c.l.b16 %v90
  %v1243 = vunpack.c.l.b16 %v91
  %v1244 = vunpack.c.l.b16 %v92
  %v1245 = vunpack.c.l.b16 %v93
  %v1246 = vunpack.c.l.b16 %v94
  %v1247 = vunpack.c.l.b16 %v95
  %v1248 = vunpack.c.l.b16 %v96
  %v1249 = vunpack.c.l.b16 %v97
  %v1250 = vunpack.c.l.b16 %v98
  %v1251 = vunpack.c.l.b16 %v99
  %v1252 = vunpack.c.l.b16 %v100
  %v1253 = vunpack.c.l.b16 %v101
  %v1254 = vunpack.c.l.b16 %v102
  %v1255 = vunpack.c.l.b16 %v103
  %v1256 = vunpack.c.l.b16 %v104
  %v1257 = vunpack.c.l.b16 %v105
  %v1258 = vunpack.c.l.b16 %v106
  %v1259 = vunpack.c.l.b16 %v107
  %v1260 = vunpack.c.l.b16 %v108
  %v1261 = vunpack.c.l.b16 %v109
  %v1262 = vunpack.c.l.b16 %v110
  %v1263 = vunpack.c.l.b16 %v111
  %v1264 = vunpack.c.l.b16 %v112
  %v1265 = vunpack.c.l.b16 %v113
  %v1266 = vunpack.c.l.b16 %v114
  %v1267 = vunpack.c.l.b16 %v115
  %v1268 = vunpack.c.l.b16 %v116
  %v1269 = vunpack.c.l.b16 %v117
  %v1270 = vunpack.c.l.b16 %v118
  %v1271 = vunpack.c.l.b16 %v119
  %v1272 = vunpack.c.l.b16 %v120
  %v1273 = vunpack.c.l.b16 %v121
  %v1274 = vunpack.c.l.b16 %v122
  %v1275 = vunpack.c.l.b16 %v123
  %v1276 = vunpack.c.l.b16 %v124
  %v1277 = vunpack.c.l.b16 %v125
  %v1278 = vunpack.c.l.b16 %v126
  %v1279 = vunpack.c.l.b16 %v127
  %v1280 = vunpack.c.l.b16 %v128
  %v1281 = vunpack.c.l.b16 %v129
  %v1282 = vunpack.c.l.b16 %v130
  %v1283 = vunpack.c.l.b16 %v131
  %v1284 = vunpack.c.l.b16 %v132
  %v1285 = vunpack.c.l.b16 %v133
  %v1286 = vunpack.c.l.b16 %v134
  %v1287 = vunpack.c.l.b16 %v135
  %v1288 = vunpack.c.l.b16 %v136
  %v1289 = vunpack.c.l.b16 %v137
  %v1290 = vunpack.c.l.b16 %v138
  %v1291 = vunpack.c.l.b16 %v139
  %v1292 = vunpack.c.l.b16 %v140
  %v1293 = vunpack.c.l.b16 %v141
  %v1294 = vunpack.c.l.b16 %v142
  %v1295 = vunpack.c.l.b16 %v143
  %v1296 = vunpack.c.l.b16 %v144
  %v1297 = vunpack.c.l.b16 %v145
  %v1298 = vunpack.c.l.b16 %v146
  %v1299 = vunpack.c.l.b16 %v147
  %v1300 = vunpack.c.l.b16 %v148
  %v1301 = vunpack.c.l.b16 %v149
  %v1302 = vpack.c.b16 %v1175, %v1174
  %v1303 = vpack.c.b16 %v1177, %v1176
  %v1304 = vpack.c.b16 %v1179, %v1178
  %v1305 = vpack.c.b16 %v1181, %v1180
  %v1306 = vpack.c.b16 %v1183, %v1182
  %v1307 = vpack.c.b16 %v1185, %v1184
  %v1308 = vpack.c.b16 %v1187, %v1186
  %v1309 = vpack.c.b16 %v1189, %v1188
  %v1310 = vpack.c.b16 %v1191, %v1190
  %v1311 = vpack.c.b16 %v1193, %v1192
  %v1312 = vpack.c.b16 %v1195, %v1194
  %v1313 = vpack.c.b16 %v1197, %v1196
  %v1314 = vpack.c.b16 %v1199, %v1198
  %v1315 = vpack.c.b16 %v1201, %v1200
  %v1316 = vpack.c.b16 %v1203, %v1202
  %v1317 = vpack.c.b16 %v1205, %v1204
  %v1318 = vpack.c.b16 %v1207, %v1206
  %v1319 = vpack.c.b16 %v1209, %v1208
  %v1320 = vpack.c.b16 %v1211, %v1210
  %v1321 = vpack.c.b16 %v1213, %v1212
  %v1322 = vpack.c.b16 %v1215, %v1214
  %v1323 = vpack.c.b16 %v1217, %v1216
  %v1324 = vpack.c.b16 %v1219, %v1218
  %v1325 = vpack.c.b16 %v1221, %v1220
  %v1326 = vpack.c.b16 %v1223, %v1222
  %v1327 = vpack.c.b16 %v1225, %v1224
  %v1328 = vpack.c.b16 %v1227, %v1226
  %v1329 = vpack.c.b16 %v1229, %v1228
  %v1330 = vpack.c.b16 %v1231, %v1230
  %v1331 = vpack.c.b16 %v1233, %v1232
  %v1332 = vpack.c.b16 %v1235, %v1234
  %v1333 = vpack.c.b16 %v1237, %v1236
  %v1334 = vpack.c.b16 %v1239, %v1238
  %v1335 = vpack.c.b16 %v1241, %v1240
  %v1336 = vpack.c.b16 %v1243, %v1242
  %v1337 = vpack.c.b16 %v1245, %v1244
  %v1338 = vpack.c.b16 %v1247, %v1246
  %v1339 = vpack.c.b16 %v1249, %v1248
  %v1340 = vpack.c.b16 %v1251, %v1250
  %v1341 = vpack.c.b16 %v1253, %v1252
  %v1342 = vpack.c.b16 %v1255, %v1254
  %v1343 = vpack.c.b16 %v1257, %v1256
  %v1344 = vpack.c.b16 %v1259, %v1258
  %v1345 = vpack.c.b16 %v1261, %v1260
  %v1346 = vpack.c.b16 %v1263, %v1262
  %v1347 = vpack.c.b16 %v1265, %v1264
  %v1348 = vpack.c.b16 %v1267, %v1266
  %v1349 = vpack.c.b16 %v1269, %v1268
  %v1350 = vpack.c.b16 %v1271, %v1270
  %v1351 = vpack.c.b16 %v1273, %v1272
  %v1352 = vpack.c.b16 %v1275, %v1274
  %v1353 = vpack.c.b16 %v1277, %v1276
  %v1354 = vpack.c.b16 %v1279, %v1278
  %v1355 = vpack.c.b16 %v1281, %v1280
  %v1356 = vpack.c.b16 %v1283, %v1282
  %v1357 = vpack.c.b16 %v1285, %v1284
  %v1358 = vpack.c.b16 %v1287, %v1286
  %v1359 = vpack.c.b16 %v1289, %v1288
  %v1360 = vpack.c.b16 %v1291, %v1290
  %v1361 = vpack.c.b16 %v1293, %v1292
  %v1362 = vpack.c.b16 %v1295, %v1294
  %v1363 = vpack.c.b16 %v1297, %v1296
  %v1364 = vpack.c.b16 %v1299, %v1298
  %v1365 = vpack.c.b16 %v1301, %v1300
  %1430 = vmatprep.subr.bf16.mxu0 0
  %1431 = vmatpush1.bf16.msra.mxu0 %v1302
  %1432 = vmatprep.subr.bf16.mxu0 0
  %1433 = vmatpush1.bf16.msra.mxu0 %v1303
  %1434 = vmatprep.subr.bf16.mxu0 0
  %1435 = vmatpush1.bf16.msra.mxu0 %v1304
  %1436 = vmatprep.subr.bf16.mxu0 0
  %1437 = vmatpush1.bf16.msra.mxu0 %v1305
  %1438 = vmatprep.subr.bf16.mxu0 0
  %1439 = vmatpush1.bf16.msra.mxu0 %v1306
  %1440 = vmatprep.subr.bf16.mxu0 0
  %1441 = vmatpush1.bf16.msra.mxu0 %v1307
  %1442 = vmatprep.subr.bf16.mxu0 0
  %1443 = vmatpush1.bf16.msra.mxu0 %v1308
  %1444 = vmatprep.subr.bf16.mxu0 0
  %1445 = vmatpush1.bf16.msra.mxu0 %v1309
  %1446 = vmatprep.subr.bf16.mxu0 0
  %1447 = vmatpush1.bf16.msra.mxu0 %v1310
  %1448 = vmatprep.subr.bf16.mxu0 0
  %1449 = vmatpush1.bf16.msra.mxu0 %v1311
  %1450 = vmatprep.subr.bf16.mxu0 0
  %1451 = vmatpush1.bf16.msra.mxu0 %v1312
  %1452 = vmatprep.subr.bf16.mxu0 0
  %1453 = vmatpush1.bf16.msra.mxu0 %v1313
  %1454 = vmatprep.subr.bf16.mxu0 0
  %1455 = vmatpush1.bf16.msra.mxu0 %v1314
  %1456 = vmatprep.subr.bf16.mxu0 0
  %1457 = vmatpush1.bf16.msra.mxu0 %v1315
  %1458 = vmatprep.subr.bf16.mxu0 0
  %1459 = vmatpush1.bf16.msra.mxu0 %v1316
  %1460 = vmatprep.subr.bf16.mxu0 0
  %1461 = vmatpush1.bf16.msra.mxu0 %v1317
  %1462 = vmatprep.mubr.bf16.mxu0 %v791
  %1463 = vmatmul.mubr.bf16.gmra.mrb[0].mxu0 %v790
  %v1464 = vpop.f32.mrb[0].mxu0
  %v1465 = vadd.f32 0.0, %v1464
  %v1466 = vpop.f32.mrb[0].mxu0
  %v1467 = vpop.f32.mrb[0].mxu0
  %v1468 = vadd.f32 0.0, %v1467
  %v1469 = vpop.f32.mrb[0].mxu0
  %1470 = vmatprep.mubr.bf16.mxu0 %v799
  %1471 = vmatmul.mubr.bf16.gmra.mrb[0].mxu0 %v798
  %v1472 = vpop.f32.mrb[0].mxu0
  %v1473 = vadd.f32 0.0, %v1472
  %v1474 = vpop.f32.mrb[0].mxu0
  %v1475 = vpop.f32.mrb[0].mxu0
  %v1476 = vadd.f32 0.0, %v1475
  %v1477 = vpop.f32.mrb[0].mxu0
  %1478 = vmatprep.mubr.bf16.mxu0 %v807
  %1479 = vmatmul.mubr.bf16.gmra.mrb[0].mxu0 %v806
  %v1480 = vpop.f32.mrb[0].mxu0
  %v1481 = vadd.f32 0.0, %v1480
  %v1482 = vpop.f32.mrb[0].mxu0
  %v1483 = vpop.f32.mrb[0].mxu0
  %v1484 = vadd.f32 0.0, %v1483
  %v1485 = vpop.f32.mrb[0].mxu0
  %1486 = vmatprep.mubr.bf16.mxu0 %v815
  %1487 = vmatmul.mubr.bf16.gmra.mrb[0].mxu0 %v814
  %v1488 = vpop.f32.mrb[0].mxu0
  %v1489 = vadd.f32 0.0, %v1488
  %v1490 = vpop.f32.mrb[0].mxu0
  %v1491 = vpop.f32.mrb[0].mxu0
  %v1492 = vadd.f32 0.0, %v1491
  %v1493 = vpop.f32.mrb[0].mxu0
  %1494 = vmatprep.mubr.bf16.mxu0 %v823
  %1495 = vmatmul.mubr.bf16.gmra.mrb[0].mxu0 %v822
  %v1496 = vpop.f32.mrb[0].mxu0
  %v1497 = vadd.f32 0.0, %v1496
  %v1498 = vpop.f32.mrb[0].mxu0
  %v1499 = vpop.f32.mrb[0].mxu0
  %v1500 = vadd.f32 0.0, %v1499
  %v1501 = vpop.f32.mrb[0].mxu0
  %1502 = vmatprep.mubr.bf16.mxu0 %v831
  %1503 = vmatmul.mubr.bf16.gmra.mrb[0].mxu0 %v830
  %v1504 = vpop.f32.mrb[0].mxu0
  %v1505 = vadd.f32 0.0, %v1504
  %v1506 = vpop.f32.mrb[0].mxu0
  %v1507 = vpop.f32.mrb[0].mxu0
  %v1508 = vadd.f32 0.0, %v1507
  %v1509 = vpop.f32.mrb[0].mxu0
  %1510 = vmatprep.mubr.bf16.mxu0 %v839
  %1511 = vmatmul.mubr.bf16.gmra.mrb[0].mxu0 %v838
  %v1512 = vpop.f32.mrb[0].mxu0
  %v1513 = vadd.f32 0.0, %v1512
  %v1514 = vpop.f32.mrb[0].mxu0
  %v1515 = vpop.f32.mrb[0].mxu0
  %v1516 = vadd.f32 0.0, %v1515
  %v1517 = vpop.f32.mrb[0].mxu0
  %1518 = vmatprep.mubr.bf16.mxu0 %v847
  %1519 = vmatmul.mubr.bf16.gmra.mrb[0].mxu0 %v846
  %v1520 = vpop.f32.mrb[0].mxu0
  %v1521 = vadd.f32 0.0, %v1520
  %v1522 = vpop.f32.mrb[0].mxu0
  %v1523 = vpop.f32.mrb[0].mxu0
  %v1524 = vadd.f32 0.0, %v1523
  %v1525 = vpop.f32.mrb[0].mxu0
  %1526 = vmatprep.mubr.bf16.mxu0 %v855
  %1527 = vmatmul.mubr.bf16.gmra.mrb[0].mxu0 %v854
  %v1528 = vpop.f32.mrb[0].mxu0
  %v1529 = vadd.f32 0.0, %v1528
  %v1530 = vpop.f32.mrb[0].mxu0
  %v1531 = vpop.f32.mrb[0].mxu0
  %v1532 = vadd.f32 0.0, %v1531
  %v1533 = vpop.f32.mrb[0].mxu0
  %1534 = vmatprep.mubr.bf16.mxu0 %v863
  %1535 = vmatmul.mubr.bf16.gmra.mrb[0].mxu0 %v862
  %v1536 = vpop.f32.mrb[0].mxu0
  %v1537 = vadd.f32 0.0, %v1536
  %v1538 = vpop.f32.mrb[0].mxu0
  %v1539 = vpop.f32.mrb[0].mxu0
  %v1540 = vadd.f32 0.0, %v1539
  %v1541 = vpop.f32.mrb[0].mxu0
  %1542 = vmatprep.mubr.bf16.mxu0 %v871
  %1543 = vmatmul.mubr.bf16.gmra.mrb[0].mxu0 %v870
  %v1544 = vpop.f32.mrb[0].mxu0
  %v1545 = vadd.f32 0.0, %v1544
  %v1546 = vpop.f32.mrb[0].mxu0
  %v1547 = vpop.f32.mrb[0].mxu0
  %v1548 = vadd.f32 0.0, %v1547
  %v1549 = vpop.f32.mrb[0].mxu0
  %1550 = vmatprep.mubr.bf16.mxu0 %v879
  %1551 = vmatmul.mubr.bf16.gmra.mrb[0].mxu0 %v878
  %v1552 = vpop.f32.mrb[0].mxu0
  %v1553 = vadd.f32 0.0, %v1552
  %v1554 = vpop.f32.mrb[0].mxu0
  %v1555 = vpop.f32.mrb[0].mxu0
  %v1556 = vadd.f32 0.0, %v1555
  %v1557 = vpop.f32.mrb[0].mxu0
  %1558 = vmatprep.mubr.bf16.mxu0 %v887
  %1559 = vmatmul.mubr.bf16.gmra.mrb[0].mxu0 %v886
  %v1560 = vpop.f32.mrb[0].mxu0
  %v1561 = vadd.f32 0.0, %v1560
  %v1562 = vpop.f32.mrb[0].mxu0
  %v1563 = vpop.f32.mrb[0].mxu0
  %v1564 = vadd.f32 0.0, %v1563
  %v1565 = vpop.f32.mrb[0].mxu0
  %1566 = vmatprep.mubr.bf16.mxu0 %v895
  %1567 = vmatmul.mubr.bf16.gmra.mrb[0].mxu0 %v894
  %v1568 = vpop.f32.mrb[0].mxu0
  %v1569 = vadd.f32 0.0, %v1568
  %v1570 = vpop.f32.mrb[0].mxu0
  %v1571 = vpop.f32.mrb[0].mxu0
  %v1572 = vadd.f32 0.0, %v1571
  %v1573 = vpop.f32.mrb[0].mxu0
  %1574 = vmatprep.mubr.bf16.mxu0 %v903
  %1575 = vmatmul.mubr.bf16.gmra.mrb[0].mxu0 %v902
  %v1576 = vpop.f32.mrb[0].mxu0
  %v1577 = vadd.f32 0.0, %v1576
  %v1578 = vpop.f32.mrb[0].mxu0
  %v1579 = vpop.f32.mrb[0].mxu0
  %v1580 = vadd.f32 0.0, %v1579
  %v1581 = vpop.f32.mrb[0].mxu0
  %1582 = vmatprep.mubr.bf16.mxu0 %v911
  %1583 = vmatmul.mubr.bf16.gmra.mrb[0].mxu0 %v910
  %v1584 = vpop.f32.mrb[0].mxu0
  %v1585 = vadd.f32 0.0, %v1584
  %v1586 = vpop.f32.mrb[0].mxu0
  %v1587 = vpop.f32.mrb[0].mxu0
  %v1588 = vadd.f32 0.0, %v1587
  %v1589 = vpop.f32.mrb[0].mxu0
  %1590 = vdwg.mxu0
  %1591 = vmatprep.subr.bf16.mxu0 0
  %1592 = vmatpush1.bf16.msra.mxu0 %v1318
  %1593 = vmatprep.subr.bf16.mxu0 0
  %1594 = vmatpush1.bf16.msra.mxu0 %v1319
  %1595 = vmatprep.subr.bf16.mxu0 0
  %1596 = vmatpush1.bf16.msra.mxu0 %v1320
  %1597 = vmatprep.subr.bf16.mxu0 0
  %1598 = vmatpush1.bf16.msra.mxu0 %v1321
  %1599 = vmatprep.subr.bf16.mxu0 0
  %1600 = vmatpush1.bf16.msra.mxu0 %v1322
  %1601 = vmatprep.subr.bf16.mxu0 0
  %1602 = vmatpush1.bf16.msra.mxu0 %v1323
  %1603 = vmatprep.subr.bf16.mxu0 0
  %1604 = vmatpush1.bf16.msra.mxu0 %v1324
  %1605 = vmatprep.subr.bf16.mxu0 0
  %1606 = vmatpush1.bf16.msra.mxu0 %v1325
  %1607 = vmatprep.subr.bf16.mxu0 0
  %1608 = vmatpush1.bf16.msra.mxu0 %v1326
  %1609 = vmatprep.subr.bf16.mxu0 0
  %1610 = vmatpush1.bf16.msra.mxu0 %v1327
  %1611 = vmatprep.subr.bf16.mxu0 0
  %1612 = vmatpush1.bf16.msra.mxu0 %v1328
  %1613 = vmatprep.subr.bf16.mxu0 0
  %1614 = vmatpush1.bf16.msra.mxu0 %v1329
  %1615 = vmatprep.subr.bf16.mxu0 0
  %1616 = vmatpush1.bf16.msra.mxu0 %v1330
  %1617 = vmatprep.subr.bf16.mxu0 0
  %1618 = vmatpush1.bf16.msra.mxu0 %v1331
  %1619 = vmatprep.subr.bf16.mxu0 0
  %1620 = vmatpush1.bf16.msra.mxu0 %v1332
  %1621 = vmatprep.subr.bf16.mxu0 0
  %1622 = vmatpush1.bf16.msra.mxu0 %v1333
  %1623 = vmatprep.mubr.bf16.mxu0 %v793
  %1624 = vmatmul.mubr.bf16.gmra.mrb[0].mxu0 %v792
  %v1625 = vpop.f32.mrb[0].mxu0
  %v1626 = vadd.f32 %v1465, %v1625
  %v1627 = vpop.f32.mrb[0].mxu0
  %v1628 = vpop.f32.mrb[0].mxu0
  %v1629 = vadd.f32 %v1468, %v1628
  %v1630 = vpop.f32.mrb[0].mxu0
  %1631 = vmatprep.mubr.bf16.mxu0 %v801
  %1632 = vmatmul.mubr.bf16.gmra.mrb[0].mxu0 %v800
  %v1633 = vpop.f32.mrb[0].mxu0
  %v1634 = vadd.f32 %v1473, %v1633
  %v1635 = vpop.f32.mrb[0].mxu0
  %v1636 = vpop.f32.mrb[0].mxu0
  %v1637 = vadd.f32 %v1476, %v1636
  %v1638 = vpop.f32.mrb[0].mxu0
  %1639 = vmatprep.mubr.bf16.mxu0 %v809
  %1640 = vmatmul.mubr.bf16.gmra.mrb[0].mxu0 %v808
  %v1641 = vpop.f32.mrb[0].mxu0
  %v1642 = vadd.f32 %v1481, %v1641
  %v1643 = vpop.f32.mrb[0].mxu0
  %v1644 = vpop.f32.mrb[0].mxu0
  %v1645 = vadd.f32 %v1484, %v1644
  %v1646 = vpop.f32.mrb[0].mxu0
  %1647 = vmatprep.mubr.bf16.mxu0 %v817
  %1648 = vmatmul.mubr.bf16.gmra.mrb[0].mxu0 %v816
  %v1649 = vpop.f32.mrb[0].mxu0
  %v1650 = vadd.f32 %v1489, %v1649
  %v1651 = vpop.f32.mrb[0].mxu0
  %v1652 = vpop.f32.mrb[0].mxu0
  %v1653 = vadd.f32 %v1492, %v1652
  %v1654 = vpop.f32.mrb[0].mxu0
  %1655 = vmatprep.mubr.bf16.mxu0 %v825
  %1656 = vmatmul.mubr.bf16.gmra.mrb[0].mxu0 %v824
  %v1657 = vpop.f32.mrb[0].mxu0
  %v1658 = vadd.f32 %v1497, %v1657
  %v1659 = vpop.f32.mrb[0].mxu0
  %v1660 = vpop.f32.mrb[0].mxu0
  %v1661 = vadd.f32 %v1500, %v1660
  %v1662 = vpop.f32.mrb[0].mxu0
  %1663 = vmatprep.mubr.bf16.mxu0 %v833
  %1664 = vmatmul.mubr.bf16.gmra.mrb[0].mxu0 %v832
  %v1665 = vpop.f32.mrb[0].mxu0
  %v1666 = vadd.f32 %v1505, %v1665
  %v1667 = vpop.f32.mrb[0].mxu0
  %v1668 = vpop.f32.mrb[0].mxu0
  %v1669 = vadd.f32 %v1508, %v1668
  %v1670 = vpop.f32.mrb[0].mxu0
  %1671 = vmatprep.mubr.bf16.mxu0 %v841
  %1672 = vmatmul.mubr.bf16.gmra.mrb[0].mxu0 %v840
  %v1673 = vpop.f32.mrb[0].mxu0
  %v1674 = vadd.f32 %v1513, %v1673
  %v1675 = vpop.f32.mrb[0].mxu0
  %v1676 = vpop.f32.mrb[0].mxu0
  %v1677 = vadd.f32 %v1516, %v1676
  %v1678 = vpop.f32.mrb[0].mxu0
  %1679 = vmatprep.mubr.bf16.mxu0 %v849
  %1680 = vmatmul.mubr.bf16.gmra.mrb[0].mxu0 %v848
  %v1681 = vpop.f32.mrb[0].mxu0
  %v1682 = vadd.f32 %v1521, %v1681
  %v1683 = vpop.f32.mrb[0].mxu0
  %v1684 = vpop.f32.mrb[0].mxu0
  %v1685 = vadd.f32 %v1524, %v1684
  %v1686 = vpop.f32.mrb[0].mxu0
  %1687 = vmatprep.mubr.bf16.mxu0 %v857
  %1688 = vmatmul.mubr.bf16.gmra.mrb[0].mxu0 %v856
  %v1689 = vpop.f32.mrb[0].mxu0
  %v1690 = vadd.f32 %v1529, %v1689
  %v1691 = vpop.f32.mrb[0].mxu0
  %v1692 = vpop.f32.mrb[0].mxu0
  %v1693 = vadd.f32 %v1532, %v1692
  %v1694 = vpop.f32.mrb[0].mxu0
  %1695 = vmatprep.mubr.bf16.mxu0 %v865
  %1696 = vmatmul.mubr.bf16.gmra.mrb[0].mxu0 %v864
  %v1697 = vpop.f32.mrb[0].mxu0
  %v1698 = vadd.f32 %v1537, %v1697
  %v1699 = vpop.f32.mrb[0].mxu0
  %v1700 = vpop.f32.mrb[0].mxu0
  %v1701 = vadd.f32 %v1540, %v1700
  %v1702 = vpop.f32.mrb[0].mxu0
  %1703 = vmatprep.mubr.bf16.mxu0 %v873
  %1704 = vmatmul.mubr.bf16.gmra.mrb[0].mxu0 %v872
  %v1705 = vpop.f32.mrb[0].mxu0
  %v1706 = vadd.f32 %v1545, %v1705
  %v1707 = vpop.f32.mrb[0].mxu0
  %v1708 = vpop.f32.mrb[0].mxu0
  %v1709 = vadd.f32 %v1548, %v1708
  %v1710 = vpop.f32.mrb[0].mxu0
  %1711 = vmatprep.mubr.bf16.mxu0 %v881
  %1712 = vmatmul.mubr.bf16.gmra.mrb[0].mxu0 %v880
  %v1713 = vpop.f32.mrb[0].mxu0
  %v1714 = vadd.f32 %v1553, %v1713
  %v1715 = vpop.f32.mrb[0].mxu0
  %v1716 = vpop.f32.mrb[0].mxu0
  %v1717 = vadd.f32 %v1556, %v1716
  %v1718 = vpop.f32.mrb[0].mxu0
  %1719 = vmatprep.mubr.bf16.mxu0 %v889
  %1720 = vmatmul.mubr.bf16.gmra.mrb[0].mxu0 %v888
  %v1721 = vpop.f32.mrb[0].mxu0
  %v1722 = vadd.f32 %v1561, %v1721
  %v1723 = vpop.f32.mrb[0].mxu0
  %v1724 = vpop.f32.mrb[0].mxu0
  %v1725 = vadd.f32 %v1564, %v1724
  %v1726 = vpop.f32.mrb[0].mxu0
  %1727 = vmatprep.mubr.bf16.mxu0 %v897
  %1728 = vmatmul.mubr.bf16.gmra.mrb[0].mxu0 %v896
  %v1729 = vpop.f32.mrb[0].mxu0
  %v1730 = vadd.f32 %v1569, %v1729
  %v1731 = vpop.f32.mrb[0].mxu0
  %v1732 = vpop.f32.mrb[0].mxu0
  %v1733 = vadd.f32 %v1572, %v1732
  %v1734 = vpop.f32.mrb[0].mxu0
  %1735 = vmatprep.mubr.bf16.mxu0 %v905
  %1736 = vmatmul.mubr.bf16.gmra.mrb[0].mxu0 %v904
  %v1737 = vpop.f32.mrb[0].mxu0
  %v1738 = vadd.f32 %v1577, %v1737
  %v1739 = vpop.f32.mrb[0].mxu0
  %v1740 = vpop.f32.mrb[0].mxu0
  %v1741 = vadd.f32 %v1580, %v1740
  %v1742 = vpop.f32.mrb[0].mxu0
  %1743 = vmatprep.mubr.bf16.mxu0 %v913
  %1744 = vmatmul.mubr.bf16.gmra.mrb[0].mxu0 %v912
  %v1745 = vpop.f32.mrb[0].mxu0
  %v1746 = vadd.f32 %v1585, %v1745
  %v1747 = vpop.f32.mrb[0].mxu0
  %v1748 = vpop.f32.mrb[0].mxu0
  %v1749 = vadd.f32 %v1588, %v1748
  %v1750 = vpop.f32.mrb[0].mxu0
  %1751 = vdwg.mxu0
  %1752 = vmatprep.subr.bf16.mxu0 0
  %1753 = vmatpush1.bf16.msra.mxu0 %v1334
  %1754 = vmatprep.subr.bf16.mxu0 0
  %1755 = vmatpush1.bf16.msra.mxu0 %v1335
  %1756 = vmatprep.subr.bf16.mxu0 0
  %1757 = vmatpush1.bf16.msra.mxu0 %v1336
  %1758 = vmatprep.subr.bf16.mxu0 0
  %1759 = vmatpush1.bf16.msra.mxu0 %v1337
  %1760 = vmatprep.subr.bf16.mxu0 0
  %1761 = vmatpush1.bf16.msra.mxu0 %v1338
  %1762 = vmatprep.subr.bf16.mxu0 0
  %1763 = vmatpush1.bf16.msra.mxu0 %v1339
  %1764 = vmatprep.subr.bf16.mxu0 0
  %1765 = vmatpush1.bf16.msra.mxu0 %v1340
  %1766 = vmatprep.subr.bf16.mxu0 0
  %1767 = vmatpush1.bf16.msra.mxu0 %v1341
  %1768 = vmatprep.subr.bf16.mxu0 0
  %1769 = vmatpush1.bf16.msra.mxu0 %v1342
  %1770 = vmatprep.subr.bf16.mxu0 0
  %1771 = vmatpush1.bf16.msra.mxu0 %v1343
  %1772 = vmatprep.subr.bf16.mxu0 0
  %1773 = vmatpush1.bf16.msra.mxu0 %v1344
  %1774 = vmatprep.subr.bf16.mxu0 0
  %1775 = vmatpush1.bf16.msra.mxu0 %v1345
  %1776 = vmatprep.subr.bf16.mxu0 0
  %1777 = vmatpush1.bf16.msra.mxu0 %v1346
  %1778 = vmatprep.subr.bf16.mxu0 0
  %1779 = vmatpush1.bf16.msra.mxu0 %v1347
  %1780 = vmatprep.subr.bf16.mxu0 0
  %1781 = vmatpush1.bf16.msra.mxu0 %v1348
  %1782 = vmatprep.subr.bf16.mxu0 0
  %1783 = vmatpush1.bf16.msra.mxu0 %v1349
  %1784 = vmatprep.mubr.bf16.mxu0 %v795
  %1785 = vmatmul.mubr.bf16.gmra.mrb[0].mxu0 %v794
  %v1786 = vpop.f32.mrb[0].mxu0
  %v1787 = vadd.f32 %v1626, %v1786
  %v1788 = vpop.f32.mrb[0].mxu0
  %v1789 = vpop.f32.mrb[0].mxu0
  %v1790 = vadd.f32 %v1629, %v1789
  %v1791 = vpop.f32.mrb[0].mxu0
  %1792 = vmatprep.mubr.bf16.mxu0 %v803
  %1793 = vmatmul.mubr.bf16.gmra.mrb[0].mxu0 %v802
  %v1794 = vpop.f32.mrb[0].mxu0
  %v1795 = vadd.f32 %v1634, %v1794
  %v1796 = vpop.f32.mrb[0].mxu0
  %v1797 = vpop.f32.mrb[0].mxu0
  %v1798 = vadd.f32 %v1637, %v1797
  %v1799 = vpop.f32.mrb[0].mxu0
  %1800 = vmatprep.mubr.bf16.mxu0 %v811
  %1801 = vmatmul.mubr.bf16.gmra.mrb[0].mxu0 %v810
  %v1802 = vpop.f32.mrb[0].mxu0
  %v1803 = vadd.f32 %v1642, %v1802
  %v1804 = vpop.f32.mrb[0].mxu0
  %v1805 = vpop.f32.mrb[0].mxu0
  %v1806 = vadd.f32 %v1645, %v1805
  %v1807 = vpop.f32.mrb[0].mxu0
  %1808 = vmatprep.mubr.bf16.mxu0 %v819
  %1809 = vmatmul.mubr.bf16.gmra.mrb[0].mxu0 %v818
  %v1810 = vpop.f32.mrb[0].mxu0
  %v1811 = vadd.f32 %v1650, %v1810
  %v1812 = vpop.f32.mrb[0].mxu0
  %v1813 = vpop.f32.mrb[0].mxu0
  %v1814 = vadd.f32 %v1653, %v1813
  %v1815 = vpop.f32.mrb[0].mxu0
  %1816 = vmatprep.mubr.bf16.mxu0 %v827
  %1817 = vmatmul.mubr.bf16.gmra.mrb[0].mxu0 %v826
  %v1818 = vpop.f32.mrb[0].mxu0
  %v1819 = vadd.f32 %v1658, %v1818
  %v1820 = vpop.f32.mrb[0].mxu0
  %v1821 = vpop.f32.mrb[0].mxu0
  %v1822 = vadd.f32 %v1661, %v1821
  %v1823 = vpop.f32.mrb[0].mxu0
  %1824 = vmatprep.mubr.bf16.mxu0 %v835
  %1825 = vmatmul.mubr.bf16.gmra.mrb[0].mxu0 %v834
  %v1826 = vpop.f32.mrb[0].mxu0
  %v1827 = vadd.f32 %v1666, %v1826
  %v1828 = vpop.f32.mrb[0].mxu0
  %v1829 = vpop.f32.mrb[0].mxu0
  %v1830 = vadd.f32 %v1669, %v1829
  %v1831 = vpop.f32.mrb[0].mxu0
  %1832 = vmatprep.mubr.bf16.mxu0 %v843
  %1833 = vmatmul.mubr.bf16.gmra.mrb[0].mxu0 %v842
  %v1834 = vpop.f32.mrb[0].mxu0
  %v1835 = vadd.f32 %v1674, %v1834
  %v1836 = vpop.f32.mrb[0].mxu0
  %v1837 = vpop.f32.mrb[0].mxu0
  %v1838 = vadd.f32 %v1677, %v1837
  %v1839 = vpop.f32.mrb[0].mxu0
  %1840 = vmatprep.mubr.bf16.mxu0 %v851
  %1841 = vmatmul.mubr.bf16.gmra.mrb[0].mxu0 %v850
  %v1842 = vpop.f32.mrb[0].mxu0
  %v1843 = vadd.f32 %v1682, %v1842
  %v1844 = vpop.f32.mrb[0].mxu0
  %v1845 = vpop.f32.mrb[0].mxu0
  %v1846 = vadd.f32 %v1685, %v1845
  %v1847 = vpop.f32.mrb[0].mxu0
  %1848 = vmatprep.mubr.bf16.mxu0 %v859
  %1849 = vmatmul.mubr.bf16.gmra.mrb[0].mxu0 %v858
  %v1850 = vpop.f32.mrb[0].mxu0
  %v1851 = vadd.f32 %v1690, %v1850
  %v1852 = vpop.f32.mrb[0].mxu0
  %v1853 = vpop.f32.mrb[0].mxu0
  %v1854 = vadd.f32 %v1693, %v1853
  %v1855 = vpop.f32.mrb[0].mxu0
  %1856 = vmatprep.mubr.bf16.mxu0 %v867
  %1857 = vmatmul.mubr.bf16.gmra.mrb[0].mxu0 %v866
  %v1858 = vpop.f32.mrb[0].mxu0
  %v1859 = vadd.f32 %v1698, %v1858
  %v1860 = vpop.f32.mrb[0].mxu0
  %v1861 = vpop.f32.mrb[0].mxu0
  %v1862 = vadd.f32 %v1701, %v1861
  %v1863 = vpop.f32.mrb[0].mxu0
  %1864 = vmatprep.mubr.bf16.mxu0 %v875
  %1865 = vmatmul.mubr.bf16.gmra.mrb[0].mxu0 %v874
  %v1866 = vpop.f32.mrb[0].mxu0
  %v1867 = vadd.f32 %v1706, %v1866
  %v1868 = vpop.f32.mrb[0].mxu0
  %v1869 = vpop.f32.mrb[0].mxu0
  %v1870 = vadd.f32 %v1709, %v1869
  %v1871 = vpop.f32.mrb[0].mxu0
  %1872 = vmatprep.mubr.bf16.mxu0 %v883
  %1873 = vmatmul.mubr.bf16.gmra.mrb[0].mxu0 %v882
  %v1874 = vpop.f32.mrb[0].mxu0
  %v1875 = vadd.f32 %v1714, %v1874
  %v1876 = vpop.f32.mrb[0].mxu0
  %v1877 = vpop.f32.mrb[0].mxu0
  %v1878 = vadd.f32 %v1717, %v1877
  %v1879 = vpop.f32.mrb[0].mxu0
  %1880 = vmatprep.mubr.bf16.mxu0 %v891
  %1881 = vmatmul.mubr.bf16.gmra.mrb[0].mxu0 %v890
  %v1882 = vpop.f32.mrb[0].mxu0
  %v1883 = vadd.f32 %v1722, %v1882
  %v1884 = vpop.f32.mrb[0].mxu0
  %v1885 = vpop.f32.mrb[0].mxu0
  %v1886 = vadd.f32 %v1725, %v1885
  %v1887 = vpop.f32.mrb[0].mxu0
  %1888 = vmatprep.mubr.bf16.mxu0 %v899
  %1889 = vmatmul.mubr.bf16.gmra.mrb[0].mxu0 %v898
  %v1890 = vpop.f32.mrb[0].mxu0
  %v1891 = vadd.f32 %v1730, %v1890
  %v1892 = vpop.f32.mrb[0].mxu0
  %v1893 = vpop.f32.mrb[0].mxu0
  %v1894 = vadd.f32 %v1733, %v1893
  %v1895 = vpop.f32.mrb[0].mxu0
  %1896 = vmatprep.mubr.bf16.mxu0 %v907
  %1897 = vmatmul.mubr.bf16.gmra.mrb[0].mxu0 %v906
  %v1898 = vpop.f32.mrb[0].mxu0
  %v1899 = vadd.f32 %v1738, %v1898
  %v1900 = vpop.f32.mrb[0].mxu0
  %v1901 = vpop.f32.mrb[0].mxu0
  %v1902 = vadd.f32 %v1741, %v1901
  %v1903 = vpop.f32.mrb[0].mxu0
  %1904 = vmatprep.mubr.bf16.mxu0 %v915
  %1905 = vmatmul.mubr.bf16.gmra.mrb[0].mxu0 %v914
  %v1906 = vpop.f32.mrb[0].mxu0
  %v1907 = vadd.f32 %v1746, %v1906
  %v1908 = vpop.f32.mrb[0].mxu0
  %v1909 = vpop.f32.mrb[0].mxu0
  %v1910 = vadd.f32 %v1749, %v1909
  %v1911 = vpop.f32.mrb[0].mxu0
  %1912 = vdwg.mxu0
  %1913 = vmatprep.subr.bf16.mxu0 0
  %1914 = vmatpush1.bf16.msra.mxu0 %v1350
  %1915 = vmatprep.subr.bf16.mxu0 0
  %1916 = vmatpush1.bf16.msra.mxu0 %v1351
  %1917 = vmatprep.subr.bf16.mxu0 0
  %1918 = vmatpush1.bf16.msra.mxu0 %v1352
  %1919 = vmatprep.subr.bf16.mxu0 0
  %1920 = vmatpush1.bf16.msra.mxu0 %v1353
  %1921 = vmatprep.subr.bf16.mxu0 0
  %1922 = vmatpush1.bf16.msra.mxu0 %v1354
  %1923 = vmatprep.subr.bf16.mxu0 0
  %1924 = vmatpush1.bf16.msra.mxu0 %v1355
  %1925 = vmatprep.subr.bf16.mxu0 0
  %1926 = vmatpush1.bf16.msra.mxu0 %v1356
  %1927 = vmatprep.subr.bf16.mxu0 0
  %1928 = vmatpush1.bf16.msra.mxu0 %v1357
  %1929 = vmatprep.subr.bf16.mxu0 0
  %1930 = vmatpush1.bf16.msra.mxu0 %v1358
  %1931 = vmatprep.subr.bf16.mxu0 0
  %1932 = vmatpush1.bf16.msra.mxu0 %v1359
  %1933 = vmatprep.subr.bf16.mxu0 0
  %1934 = vmatpush1.bf16.msra.mxu0 %v1360
  %1935 = vmatprep.subr.bf16.mxu0 0
  %1936 = vmatpush1.bf16.msra.mxu0 %v1361
  %1937 = vmatprep.subr.bf16.mxu0 0
  %1938 = vmatpush1.bf16.msra.mxu0 %v1362
  %1939 = vmatprep.subr.bf16.mxu0 0
  %1940 = vmatpush1.bf16.msra.mxu0 %v1363
  %1941 = vmatprep.subr.bf16.mxu0 0
  %1942 = vmatpush1.bf16.msra.mxu0 %v1364
  %1943 = vmatprep.subr.bf16.mxu0 0
  %1944 = vmatpush1.bf16.msra.mxu0 %v1365
  %1945 = vmatprep.mubr.bf16.mxu0 %v797
  %1946 = vmatmul.mubr.bf16.gmra.mrb[0].mxu0 %v796
  %v1947 = vpop.f32.mrb[0].mxu0
  %v1948 = vadd.f32 %v1787, %v1947
  %v1949 = vpop.f32.mrb[0].mxu0
  %v1950 = vpop.f32.mrb[0].mxu0
  %v1951 = vadd.f32 %v1790, %v1950
  %v1952 = vpop.f32.mrb[0].mxu0
  %1953 = vmatprep.mubr.bf16.mxu0 %v805
  %1954 = vmatmul.mubr.bf16.gmra.mrb[0].mxu0 %v804
  %v1955 = vpop.f32.mrb[0].mxu0
  %v1956 = vadd.f32 %v1795, %v1955
  %v1957 = vpop.f32.mrb[0].mxu0
  %v1958 = vpop.f32.mrb[0].mxu0
  %v1959 = vadd.f32 %v1798, %v1958
  %v1960 = vpop.f32.mrb[0].mxu0
  %1961 = vmatprep.mubr.bf16.mxu0 %v813
  %1962 = vmatmul.mubr.bf16.gmra.mrb[0].mxu0 %v812
  %v1963 = vpop.f32.mrb[0].mxu0
  %v1964 = vadd.f32 %v1803, %v1963
  %v1965 = vpop.f32.mrb[0].mxu0
  %v1966 = vpop.f32.mrb[0].mxu0
  %v1967 = vadd.f32 %v1806, %v1966
  %v1968 = vpop.f32.mrb[0].mxu0
  %1969 = vmatprep.mubr.bf16.mxu0 %v821
  %1970 = vmatmul.mubr.bf16.gmra.mrb[0].mxu0 %v820
  %v1971 = vpop.f32.mrb[0].mxu0
  %v1972 = vadd.f32 %v1811, %v1971
  %v1973 = vpop.f32.mrb[0].mxu0
  %v1974 = vpop.f32.mrb[0].mxu0
  %v1975 = vadd.f32 %v1814, %v1974
  %v1976 = vpop.f32.mrb[0].mxu0
  %1977 = vmatprep.mubr.bf16.mxu0 %v829
  %1978 = vmatmul.mubr.bf16.gmra.mrb[0].mxu0 %v828
  %v1979 = vpop.f32.mrb[0].mxu0
  %v1980 = vadd.f32 %v1819, %v1979
  %v1981 = vpop.f32.mrb[0].mxu0
  %v1982 = vpop.f32.mrb[0].mxu0
  %v1983 = vadd.f32 %v1822, %v1982
  %v1984 = vpop.f32.mrb[0].mxu0
  %1985 = vmatprep.mubr.bf16.mxu0 %v837
  %1986 = vmatmul.mubr.bf16.gmra.mrb[0].mxu0 %v836
  %v1987 = vpop.f32.mrb[0].mxu0
  %v1988 = vadd.f32 %v1827, %v1987
  %v1989 = vpop.f32.mrb[0].mxu0
  %v1990 = vpop.f32.mrb[0].mxu0
  %v1991 = vadd.f32 %v1830, %v1990
  %v1992 = vpop.f32.mrb[0].mxu0
  %1993 = vmatprep.mubr.bf16.mxu0 %v845
  %1994 = vmatmul.mubr.bf16.gmra.mrb[0].mxu0 %v844
  %v1995 = vpop.f32.mrb[0].mxu0
  %v1996 = vadd.f32 %v1835, %v1995
  %v1997 = vpop.f32.mrb[0].mxu0
  %v1998 = vpop.f32.mrb[0].mxu0
  %v1999 = vadd.f32 %v1838, %v1998
  %v2000 = vpop.f32.mrb[0].mxu0
  %2001 = vmatprep.mubr.bf16.mxu0 %v853
  %2002 = vmatmul.mubr.bf16.gmra.mrb[0].mxu0 %v852
  %v2003 = vpop.f32.mrb[0].mxu0
  %v2004 = vadd.f32 %v1843, %v2003
  %v2005 = vpop.f32.mrb[0].mxu0
  %v2006 = vpop.f32.mrb[0].mxu0
  %v2007 = vadd.f32 %v1846, %v2006
  %v2008 = vpop.f32.mrb[0].mxu0
  %2009 = vmatprep.mubr.bf16.mxu0 %v861
  %2010 = vmatmul.mubr.bf16.gmra.mrb[0].mxu0 %v860
  %v2011 = vpop.f32.mrb[0].mxu0
  %v2012 = vadd.f32 %v1851, %v2011
  %v2013 = vpop.f32.mrb[0].mxu0
  %v2014 = vpop.f32.mrb[0].mxu0
  %v2015 = vadd.f32 %v1854, %v2014
  %v2016 = vpop.f32.mrb[0].mxu0
  %2017 = vmatprep.mubr.bf16.mxu0 %v869
  %2018 = vmatmul.mubr.bf16.gmra.mrb[0].mxu0 %v868
  %v2019 = vpop.f32.mrb[0].mxu0
  %v2020 = vadd.f32 %v1859, %v2019
  %v2021 = vpop.f32.mrb[0].mxu0
  %v2022 = vpop.f32.mrb[0].mxu0
  %v2023 = vadd.f32 %v1862, %v2022
  %v2024 = vpop.f32.mrb[0].mxu0
  %2025 = vmatprep.mubr.bf16.mxu0 %v877
  %2026 = vmatmul.mubr.bf16.gmra.mrb[0].mxu0 %v876
  %v2027 = vpop.f32.mrb[0].mxu0
  %v2028 = vadd.f32 %v1867, %v2027
  %v2029 = vpop.f32.mrb[0].mxu0
  %v2030 = vpop.f32.mrb[0].mxu0
  %v2031 = vadd.f32 %v1870, %v2030
  %v2032 = vpop.f32.mrb[0].mxu0
  %2033 = vmatprep.mubr.bf16.mxu0 %v885
  %2034 = vmatmul.mubr.bf16.gmra.mrb[0].mxu0 %v884
  %v2035 = vpop.f32.mrb[0].mxu0
  %v2036 = vadd.f32 %v1875, %v2035
  %v2037 = vpop.f32.mrb[0].mxu0
  %v2038 = vpop.f32.mrb[0].mxu0
  %v2039 = vadd.f32 %v1878, %v2038
  %v2040 = vpop.f32.mrb[0].mxu0
  %2041 = vmatprep.mubr.bf16.mxu0 %v893
  %2042 = vmatmul.mubr.bf16.gmra.mrb[0].mxu0 %v892
  %v2043 = vpop.f32.mrb[0].mxu0
  %v2044 = vadd.f32 %v1883, %v2043
  %v2045 = vpop.f32.mrb[0].mxu0
  %v2046 = vpop.f32.mrb[0].mxu0
  %v2047 = vadd.f32 %v1886, %v2046
  %v2048 = vpop.f32.mrb[0].mxu0
  %2049 = vmatprep.mubr.bf16.mxu0 %v901
  %2050 = vmatmul.mubr.bf16.gmra.mrb[0].mxu0 %v900
  %v2051 = vpop.f32.mrb[0].mxu0
  %v2052 = vadd.f32 %v1891, %v2051
  %v2053 = vpop.f32.mrb[0].mxu0
  %v2054 = vpop.f32.mrb[0].mxu0
  %v2055 = vadd.f32 %v1894, %v2054
  %v2056 = vpop.f32.mrb[0].mxu0
  %2057 = vmatprep.mubr.bf16.mxu0 %v909
  %2058 = vmatmul.mubr.bf16.gmra.mrb[0].mxu0 %v908
  %v2059 = vpop.f32.mrb[0].mxu0
  %v2060 = vadd.f32 %v1899, %v2059
  %v2061 = vpop.f32.mrb[0].mxu0
  %v2062 = vpop.f32.mrb[0].mxu0
  %v2063 = vadd.f32 %v1902, %v2062
  %v2064 = vpop.f32.mrb[0].mxu0
  %2065 = vmatprep.mubr.bf16.mxu0 %v917
  %2066 = vmatmul.mubr.bf16.gmra.mrb[0].mxu0 %v916
  %v2067 = vpop.f32.mrb[0].mxu0
  %v2068 = vadd.f32 %v1907, %v2067
  %v2069 = vpop.f32.mrb[0].mxu0
  %v2070 = vpop.f32.mrb[0].mxu0
  %v2071 = vadd.f32 %v1910, %v2070
  %v2072 = vpop.f32.mrb[0].mxu0
  %2073 = vdwg.mxu0
  %v2074 = vmax.f32 %v1948, 0.0
  %v2075 = vmax.f32 %v1951, 0.0
  %v2076 = vmax.f32 %v1956, 0.0
  %v2077 = vmax.f32 %v1959, 0.0
  %v2078 = vmax.f32 %v1964, 0.0
  %v2079 = vmax.f32 %v1967, 0.0
  %v2080 = vmax.f32 %v1972, 0.0
  %v2081 = vmax.f32 %v1975, 0.0
  %v2082 = vmax.f32 %v1980, 0.0
  %v2083 = vmax.f32 %v1983, 0.0
  %v2084 = vmax.f32 %v1988, 0.0
  %v2085 = vmax.f32 %v1991, 0.0
  %v2086 = vmax.f32 %v1996, 0.0
  %v2087 = vmax.f32 %v1999, 0.0
  %v2088 = vmax.f32 %v2004, 0.0
  %v2089 = vmax.f32 %v2007, 0.0
  %v2090 = vmax.f32 %v2012, 0.0
  %v2091 = vmax.f32 %v2015, 0.0
  %v2092 = vmax.f32 %v2020, 0.0
  %v2093 = vmax.f32 %v2023, 0.0
  %v2094 = vmax.f32 %v2028, 0.0
  %v2095 = vmax.f32 %v2031, 0.0
  %v2096 = vmax.f32 %v2036, 0.0
  %v2097 = vmax.f32 %v2039, 0.0
  %v2098 = vmax.f32 %v2044, 0.0
  %v2099 = vmax.f32 %v2047, 0.0
  %v2100 = vmax.f32 %v2052, 0.0
  %v2101 = vmax.f32 %v2055, 0.0
  %v2102 = vmax.f32 %v2060, 0.0
  %v2103 = vmax.f32 %v2063, 0.0
  %v2104 = vmax.f32 %v2068, 0.0
  %v2105 = vmax.f32 %v2071, 0.0
  %v2106 = vld [vmem:[%s3] sm:$0xff]
  %v2107 = vld [vmem:[%s3 + $0x8] sm:$0xff]
  %v2108 = vld [vmem:[%s3 + $0x10] sm:$0xff]
  %v2109 = vld [vmem:[%s3 + $0x18] sm:$0xff]
  %v2110 = vld [vmem:[%s3 + $0x20] sm:$0xff]
  %v2111 = vld [vmem:[%s3 + $0x28] sm:$0xff]
  %v2112 = vld [vmem:[%s3 + $0x30] sm:$0xff]
  %v2113 = vld [vmem:[%s3 + $0x38] sm:$0xff]
  %v2114 = vld [vmem:[%s3 + $0x40] sm:$0xff]
  %v2115 = vld [vmem:[%s3 + $0x48] sm:$0xff]
  %v2116 = vld [vmem:[%s3 + $0x50] sm:$0xff]
  %v2117 = vld [vmem:[%s3 + $0x58] sm:$0xff]
  %v2118 = vld [vmem:[%s3 + $0x60] sm:$0xff]
  %v2119 = vld [vmem:[%s3 + $0x68] sm:$0xff]
  %v2120 = vld [vmem:[%s3 + $0x70] sm:$0xff]
  %v2121 = vld [vmem:[%s3 + $0x78] sm:$0xff]
  %v2122 = vld [vmem:[%s3 + $0x80] sm:$0xff]
  %v2123 = vld [vmem:[%s3 + $0x88] sm:$0xff]
  %v2124 = vld [vmem:[%s3 + $0x90] sm:$0xff]
  %v2125 = vld [vmem:[%s3 + $0x98] sm:$0xff]
  %v2126 = vld [vmem:[%s3 + $0xa0] sm:$0xff]
  %v2127 = vld [vmem:[%s3 + $0xa8] sm:$0xff]
  %v2128 = vld [vmem:[%s3 + $0xb0] sm:$0xff]
  %v2129 = vld [vmem:[%s3 + $0xb8] sm:$0xff]
  %v2130 = vld [vmem:[%s3 + $0xc0] sm:$0xff]
  %v2131 = vld [vmem:[%s3 + $0xc8] sm:$0xff]
  %v2132 = vld [vmem:[%s3 + $0xd0] sm:$0xff]
  %v2133 = vld [vmem:[%s3 + $0xd8] sm:$0xff]
  %v2134 = vld [vmem:[%s3 + $0xe0] sm:$0xff]
  %v2135 = vld [vmem:[%s3 + $0xe8] sm:$0xff]
  %v2136 = vld [vmem:[%s3 + $0xf0] sm:$0xff]
  %v2137 = vld [vmem:[%s3 + $0xf8] sm:$0xff]
  %v2138 = vld [vmem:[%s3 + $0x100] sm:$0xff]
  %v2139 = vld [vmem:[%s3 + $0x108] sm:$0xff]
  %v2140 = vld [vmem:[%s3 + $0x110] sm:$0xff]
  %v2141 = vld [vmem:[%s3 + $0x118] sm:$0xff]
  %v2142 = vld [vmem:[%s3 + $0x120] sm:$0xff]
  %v2143 = vld [vmem:[%s3 + $0x128] sm:$0xff]
  %v2144 = vld [vmem:[%s3 + $0x130] sm:$0xff]
  %v2145 = vld [vmem:[%s3 + $0x138] sm:$0xff]
  %v2146 = vld [vmem:[%s3 + $0x140] sm:$0xff]
  %v2147 = vld [vmem:[%s3 + $0x148] sm:$0xff]
  %v2148 = vld [vmem:[%s3 + $0x150] sm:$0xff]
  %v2149 = vld [vmem:[%s3 + $0x158] sm:$0xff]
  %v2150 = vld [vmem:[%s3 + $0x160] sm:$0xff]
  %v2151 = vld [vmem:[%s3 + $0x168] sm:$0xff]
  %v2152 = vld [vmem:[%s3 + $0x170] sm:$0xff]
  %v2153 = vld [vmem:[%s3 + $0x178] sm:$0xff]
  %v2154 = vld [vmem:[%s3 + $0x180] sm:$0xff]
  %v2155 = vld [vmem:[%s3 + $0x188] sm:$0xff]
  %v2156 = vld [vmem:[%s3 + $0x190] sm:$0xff]
  %v2157 = vld [vmem:[%s3 + $0x198] sm:$0xff]
  %v2158 = vld [vmem:[%s3 + $0x1a0] sm:$0xff]
  %v2159 = vld [vmem:[%s3 + $0x1a8] sm:$0xff]
  %v2160 = vld [vmem:[%s3 + $0x1b0] sm:$0xff]
  %v2161 = vld [vmem:[%s3 + $0x1b8] sm:$0xff]
  %v2162 = vld [vmem:[%s3 + $0x1c0] sm:$0xff]
  %v2163 = vld [vmem:[%s3 + $0x1c8] sm:$0xff]
  %v2164 = vld [vmem:[%s3 + $0x1d0] sm:$0xff]
  %v2165 = vld [vmem:[%s3 + $0x1d8] sm:$0xff]
  %v2166 = vld [vmem:[%s3 + $0x1e0] sm:$0xff]
  %v2167 = vld [vmem:[%s3 + $0x1e8] sm:$0xff]
  %v2168 = vld [vmem:[%s3 + $0x1f0] sm:$0xff]
  %v2169 = vld [vmem:[%s3 + $0x1f8] sm:$0xff]
  %v2170 = vld [vmem:[%s3 + $0x200] sm:$0xff]
  %v2171 = vld [vmem:[%s3 + $0x208] sm:$0xff]
  %v2172 = vld [vmem:[%s3 + $0x210] sm:$0xff]
  %v2173 = vld [vmem:[%s3 + $0x218] sm:$0xff]
  %v2174 = vld [vmem:[%s3 + $0x220] sm:$0xff]
  %v2175 = vld [vmem:[%s3 + $0x228] sm:$0xff]
  %v2176 = vld [vmem:[%s3 + $0x230] sm:$0xff]
  %v2177 = vld [vmem:[%s3 + $0x238] sm:$0xff]
  %v2178 = vld [vmem:[%s3 + $0x240] sm:$0xff]
  %v2179 = vld [vmem:[%s3 + $0x248] sm:$0xff]
  %v2180 = vld [vmem:[%s3 + $0x250] sm:$0xff]
  %v2181 = vld [vmem:[%s3 + $0x258] sm:$0xff]
  %v2182 = vld [vmem:[%s3 + $0x260] sm:$0xff]
  %v2183 = vld [vmem:[%s3 + $0x268] sm:$0xff]
  %v2184 = vld [vmem:[%s3 + $0x270] sm:$0xff]
  %v2185 = vld [vmem:[%s3 + $0x278] sm:$0xff]
  %v2186 = vld [vmem:[%s3 + $0x280] sm:$0xff]
  %v2187 = vld [vmem:[%s3 + $0x288] sm:$0xff]
  %v2188 = vld [vmem:[%s3 + $0x290] sm:$0xff]
  %v2189 = vld [vmem:[%s3 + $0x298] sm:$0xff]
  %v2190 = vld [vmem:[%s3 + $0x2a0] sm:$0xff]
  %v2191 = vld [vmem:[%s3 + $0x2a8] sm:$0xff]
  %v2192 = vld [vmem:[%s3 + $0x2b0] sm:$0xff]
  %v2193 = vld [vmem:[%s3 + $0x2b8] sm:$0xff]
  %v2194 = vld [vmem:[%s3 + $0x2c0] sm:$0xff]
  %v2195 = vld [vmem:[%s3 + $0x2c8] sm:$0xff]
  %v2196 = vld [vmem:[%s3 + $0x2d0] sm:$0xff]
  %v2197 = vld [vmem:[%s3 + $0x2d8] sm:$0xff]
  %v2198 = vld [vmem:[%s3 + $0x2e0] sm:$0xff]
  %v2199 = vld [vmem:[%s3 + $0x2e8] sm:$0xff]
  %v2200 = vld [vmem:[%s3 + $0x2f0] sm:$0xff]
  %v2201 = vld [vmem:[%s3 + $0x2f8] sm:$0xff]
  %v2202 = vld [vmem:[%s3 + $0x300] sm:$0xff]
  %v2203 = vld [vmem:[%s3 + $0x308] sm:$0xff]
  %v2204 = vld [vmem:[%s3 + $0x310] sm:$0xff]
  %v2205 = vld [vmem:[%s3 + $0x318] sm:$0xff]
  %v2206 = vld [vmem:[%s3 + $0x320] sm:$0xff]
  %v2207 = vld [vmem:[%s3 + $0x328] sm:$0xff]
  %v2208 = vld [vmem:[%s3 + $0x330] sm:$0xff]
  %v2209 = vld [vmem:[%s3 + $0x338] sm:$0xff]
  %v2210 = vld [vmem:[%s3 + $0x340] sm:$0xff]
  %v2211 = vld [vmem:[%s3 + $0x348] sm:$0xff]
  %v2212 = vld [vmem:[%s3 + $0x350] sm:$0xff]
  %v2213 = vld [vmem:[%s3 + $0x358] sm:$0xff]
  %v2214 = vld [vmem:[%s3 + $0x360] sm:$0xff]
  %v2215 = vld [vmem:[%s3 + $0x368] sm:$0xff]
  %v2216 = vld [vmem:[%s3 + $0x370] sm:$0xff]
  %v2217 = vld [vmem:[%s3 + $0x378] sm:$0xff]
  %v2218 = vld [vmem:[%s3 + $0x380] sm:$0xff]
  %v2219 = vld [vmem:[%s3 + $0x388] sm:$0xff]
  %v2220 = vld [vmem:[%s3 + $0x390] sm:$0xff]
  %v2221 = vld [vmem:[%s3 + $0x398] sm:$0xff]
  %v2222 = vld [vmem:[%s3 + $0x3a0] sm:$0xff]
  %v2223 = vld [vmem:[%s3 + $0x3a8] sm:$0xff]
  %v2224 = vld [vmem:[%s3 + $0x3b0] sm:$0xff]
  %v2225 = vld [vmem:[%s3 + $0x3b8] sm:$0xff]
  %v2226 = vld [vmem:[%s3 + $0x3c0] sm:$0xff]
  %v2227 = vld [vmem:[%s3 + $0x3c8] sm:$0xff]
  %v2228 = vld [vmem:[%s3 + $0x3d0] sm:$0xff]
  %v2229 = vld [vmem:[%s3 + $0x3d8] sm:$0xff]
  %v2230 = vld [vmem:[%s3 + $0x3e0] sm:$0xff]
  %v2231 = vld [vmem:[%s3 + $0x3e8] sm:$0xff]
  %v2232 = vld [vmem:[%s3 + $0x3f0] sm:$0xff]
  %v2233 = vld [vmem:[%s3 + $0x3f8] sm:$0xff]
  %v2234 = vpack.c.bf16 %v2075, %v2074
  %v2235 = vpack.c.bf16 %v2077, %v2076
  %v2236 = vpack.c.bf16 %v2079, %v2078
  %v2237 = vpack.c.bf16 %v2081, %v2080
  %v2238 = vpack.c.bf16 %v2083, %v2082
  %v2239 = vpack.c.bf16 %v2085, %v2084
  %v2240 = vpack.c.bf16 %v2087, %v2086
  %v2241 = vpack.c.bf16 %v2089, %v2088
  %v2242 = vpack.c.bf16 %v2091, %v2090
  %v2243 = vpack.c.bf16 %v2093, %v2092
  %v2244 = vpack.c.bf16 %v2095, %v2094
  %v2245 = vpack.c.bf16 %v2097, %v2096
  %v2246 = vpack.c.bf16 %v2099, %v2098
  %v2247 = vpack.c.bf16 %v2101, %v2100
  %v2248 = vpack.c.bf16 %v2103, %v2102
  %v2249 = vpack.c.bf16 %v2105, %v2104
  %v2378 = vunpack.c.l.b16 %v2106
  %v2379 = vunpack.c.h.b16 %v2106
  %v2380 = vunpack.c.l.b16 %v2107
  %v2381 = vunpack.c.h.b16 %v2107
  %v2382 = vunpack.c.l.b16 %v2108
  %v2383 = vunpack.c.h.b16 %v2108
  %v2384 = vunpack.c.l.b16 %v2109
  %v2385 = vunpack.c.h.b16 %v2109
  %v2386 = vunpack.c.l.b16 %v2110
  %v2387 = vunpack.c.h.b16 %v2110
  %v2388 = vunpack.c.l.b16 %v2111
  %v2389 = vunpack.c.h.b16 %v2111
  %v2390 = vunpack.c.l.b16 %v2112
  %v2391 = vunpack.c.h.b16 %v2112
  %v2392 = vunpack.c.l.b16 %v2113
  %v2393 = vunpack.c.h.b16 %v2113
  %v2394 = vunpack.c.l.b16 %v2114
  %v2395 = vunpack.c.h.b16 %v2114
  %v2396 = vunpack.c.l.b16 %v2115
  %v2397 = vunpack.c.h.b16 %v2115
  %v2398 = vunpack.c.l.b16 %v2116
  %v2399 = vunpack.c.h.b16 %v2116
  %v2400 = vunpack.c.l.b16 %v2117
  %v2401 = vunpack.c.h.b16 %v2117
  %v2402 = vunpack.c.l.b16 %v2118
  %v2403 = vunpack.c.h.b16 %v2118
  %v2404 = vunpack.c.l.b16 %v2119
  %v2405 = vunpack.c.h.b16 %v2119
  %v2406 = vunpack.c.l.b16 %v2120
  %v2407 = vunpack.c.h.b16 %v2120
  %v2408 = vunpack.c.l.b16 %v2121
  %v2409 = vunpack.c.h.b16 %v2121
  %v2410 = vunpack.c.l.b16 %v2122
  %v2411 = vunpack.c.h.b16 %v2122
  %v2412 = vunpack.c.l.b16 %v2123
  %v2413 = vunpack.c.h.b16 %v2123
  %v2414 = vunpack.c.l.b16 %v2124
  %v2415 = vunpack.c.h.b16 %v2124
  %v2416 = vunpack.c.l.b16 %v2125
  %v2417 = vunpack.c.h.b16 %v2125
  %v2418 = vunpack.c.l.b16 %v2126
  %v2419 = vunpack.c.h.b16 %v2126
  %v2420 = vunpack.c.l.b16 %v2127
  %v2421 = vunpack.c.h.b16 %v2127
  %v2422 = vunpack.c.l.b16 %v2128
  %v2423 = vunpack.c.h.b16 %v2128
  %v2424 = vunpack.c.l.b16 %v2129
  %v2425 = vunpack.c.h.b16 %v2129
  %v2426 = vunpack.c.l.b16 %v2130
  %v2427 = vunpack.c.h.b16 %v2130
  %v2428 = vunpack.c.l.b16 %v2131
  %v2429 = vunpack.c.h.b16 %v2131
  %v2430 = vunpack.c.l.b16 %v2132
  %v2431 = vunpack.c.h.b16 %v2132
  %v2432 = vunpack.c.l.b16 %v2133
  %v2433 = vunpack.c.h.b16 %v2133
  %v2434 = vunpack.c.l.b16 %v2134
  %v2435 = vunpack.c.h.b16 %v2134
  %v2436 = vunpack.c.l.b16 %v2135
  %v2437 = vunpack.c.h.b16 %v2135
  %v2438 = vunpack.c.l.b16 %v2136
  %v2439 = vunpack.c.h.b16 %v2136
  %v2440 = vunpack.c.l.b16 %v2137
  %v2441 = vunpack.c.h.b16 %v2137
  %v2442 = vunpack.c.l.b16 %v2138
  %v2443 = vunpack.c.h.b16 %v2138
  %v2444 = vunpack.c.l.b16 %v2139
  %v2445 = vunpack.c.h.b16 %v2139
  %v2446 = vunpack.c.l.b16 %v2140
  %v2447 = vunpack.c.h.b16 %v2140
  %v2448 = vunpack.c.l.b16 %v2141
  %v2449 = vunpack.c.h.b16 %v2141
  %v2450 = vunpack.c.l.b16 %v2142
  %v2451 = vunpack.c.h.b16 %v2142
  %v2452 = vunpack.c.l.b16 %v2143
  %v2453 = vunpack.c.h.b16 %v2143
  %v2454 = vunpack.c.l.b16 %v2144
  %v2455 = vunpack.c.h.b16 %v2144
  %v2456 = vunpack.c.l.b16 %v2145
  %v2457 = vunpack.c.h.b16 %v2145
  %v2458 = vunpack.c.l.b16 %v2146
  %v2459 = vunpack.c.h.b16 %v2146
  %v2460 = vunpack.c.l.b16 %v2147
  %v2461 = vunpack.c.h.b16 %v2147
  %v2462 = vunpack.c.l.b16 %v2148
  %v2463 = vunpack.c.h.b16 %v2148
  %v2464 = vunpack.c.l.b16 %v2149
  %v2465 = vunpack.c.h.b16 %v2149
  %v2466 = vunpack.c.l.b16 %v2150
  %v2467 = vunpack.c.h.b16 %v2150
  %v2468 = vunpack.c.l.b16 %v2151
  %v2469 = vunpack.c.h.b16 %v2151
  %v2470 = vunpack.c.l.b16 %v2152
  %v2471 = vunpack.c.h.b16 %v2152
  %v2472 = vunpack.c.l.b16 %v2153
  %v2473 = vunpack.c.h.b16 %v2153
  %v2474 = vunpack.c.l.b16 %v2154
  %v2475 = vunpack.c.h.b16 %v2154
  %v2476 = vunpack.c.l.b16 %v2155
  %v2477 = vunpack.c.h.b16 %v2155
  %v2478 = vunpack.c.l.b16 %v2156
  %v2479 = vunpack.c.h.b16 %v2156
  %v2480 = vunpack.c.l.b16 %v2157
  %v2481 = vunpack.c.h.b16 %v2157
  %v2482 = vunpack.c.l.b16 %v2158
  %v2483 = vunpack.c.h.b16 %v2158
  %v2484 = vunpack.c.l.b16 %v2159
  %v2485 = vunpack.c.h.b16 %v2159
  %v2486 = vunpack.c.l.b16 %v2160
  %v2487 = vunpack.c.h.b16 %v2160
  %v2488 = vunpack.c.l.b16 %v2161
  %v2489 = vunpack.c.h.b16 %v2161
  %v2490 = vunpack.c.l.b16 %v2162
  %v2491 = vunpack.c.h.b16 %v2162
  %v2492 = vunpack.c.l.b16 %v2163
  %v2493 = vunpack.c.h.b16 %v2163
  %v2494 = vunpack.c.l.b16 %v2164
  %v2495 = vunpack.c.h.b16 %v2164
  %v2496 = vunpack.c.l.b16 %v2165
  %v2497 = vunpack.c.h.b16 %v2165
  %v2498 = vunpack.c.l.b16 %v2166
  %v2499 = vunpack.c.h.b16 %v2166
  %v2500 = vunpack.c.l.b16 %v2167
  %v2501 = vunpack.c.h.b16 %v2167
  %v2502 = vunpack.c.l.b16 %v2168
  %v2503 = vunpack.c.h.b16 %v2168
  %v2504 = vunpack.c.l.b16 %v2169
  %v2505 = vunpack.c.h.b16 %v2169
  %v2506 = vunpack.c.l.b16 %v2170
  %v2507 = vunpack.c.h.b16 %v2170
  %v2508 = vunpack.c.l.b16 %v2171
  %v2509 = vunpack.c.h.b16 %v2171
  %v2510 = vunpack.c.l.b16 %v2172
  %v2511 = vunpack.c.h.b16 %v2172
  %v2512 = vunpack.c.l.b16 %v2173
  %v2513 = vunpack.c.h.b16 %v2173
  %v2514 = vunpack.c.l.b16 %v2174
  %v2515 = vunpack.c.h.b16 %v2174
  %v2516 = vunpack.c.l.b16 %v2175
  %v2517 = vunpack.c.h.b16 %v2175
  %v2518 = vunpack.c.l.b16 %v2176
  %v2519 = vunpack.c.h.b16 %v2176
  %v2520 = vunpack.c.l.b16 %v2177
  %v2521 = vunpack.c.h.b16 %v2177
  %v2522 = vunpack.c.l.b16 %v2178
  %v2523 = vunpack.c.h.b16 %v2178
  %v2524 = vunpack.c.l.b16 %v2179
  %v2525 = vunpack.c.h.b16 %v2179
  %v2526 = vunpack.c.l.b16 %v2180
  %v2527 = vunpack.c.h.b16 %v2180
  %v2528 = vunpack.c.l.b16 %v2181
  %v2529 = vunpack.c.h.b16 %v2181
  %v2530 = vunpack.c.l.b16 %v2182
  %v2531 = vunpack.c.h.b16 %v2182
  %v2532 = vunpack.c.l.b16 %v2183
  %v2533 = vunpack.c.h.b16 %v2183
  %v2534 = vunpack.c.l.b16 %v2184
  %v2535 = vunpack.c.h.b16 %v2184
  %v2536 = vunpack.c.l.b16 %v2185
  %v2537 = vunpack.c.h.b16 %v2185
  %v2538 = vunpack.c.l.b16 %v2186
  %v2539 = vunpack.c.h.b16 %v2186
  %v2540 = vunpack.c.l.b16 %v2187
  %v2541 = vunpack.c.h.b16 %v2187
  %v2542 = vunpack.c.l.b16 %v2188
  %v2543 = vunpack.c.h.b16 %v2188
  %v2544 = vunpack.c.l.b16 %v2189
  %v2545 = vunpack.c.h.b16 %v2189
  %v2546 = vunpack.c.l.b16 %v2190
  %v2547 = vunpack.c.h.b16 %v2190
  %v2548 = vunpack.c.l.b16 %v2191
  %v2549 = vunpack.c.h.b16 %v2191
  %v2550 = vunpack.c.l.b16 %v2192
  %v2551 = vunpack.c.h.b16 %v2192
  %v2552 = vunpack.c.l.b16 %v2193
  %v2553 = vunpack.c.h.b16 %v2193
  %v2554 = vunpack.c.l.b16 %v2194
  %v2555 = vunpack.c.h.b16 %v2194
  %v2556 = vunpack.c.l.b16 %v2195
  %v2557 = vunpack.c.h.b16 %v2195
  %v2558 = vunpack.c.l.b16 %v2196
  %v2559 = vunpack.c.h.b16 %v2196
  %v2560 = vunpack.c.l.b16 %v2197
  %v2561 = vunpack.c.h.b16 %v2197
  %v2562 = vunpack.c.l.b16 %v2198
  %v2563 = vunpack.c.h.b16 %v2198
  %v2564 = vunpack.c.l.b16 %v2199
  %v2565 = vunpack.c.h.b16 %v2199
  %v2566 = vunpack.c.l.b16 %v2200
  %v2567 = vunpack.c.h.b16 %v2200
  %v2568 = vunpack.c.l.b16 %v2201
  %v2569 = vunpack.c.h.b16 %v2201
  %v2570 = vunpack.c.l.b16 %v2202
  %v2571 = vunpack.c.h.b16 %v2202
  %v2572 = vunpack.c.l.b16 %v2203
  %v2573 = vunpack.c.h.b16 %v2203
  %v2574 = vunpack.c.l.b16 %v2204
  %v2575 = vunpack.c.h.b16 %v2204
  %v2576 = vunpack.c.l.b16 %v2205
  %v2577 = vunpack.c.h.b16 %v2205
  %v2578 = vunpack.c.l.b16 %v2206
  %v2579 = vunpack.c.h.b16 %v2206
  %v2580 = vunpack.c.l.b16 %v2207
  %v2581 = vunpack.c.h.b16 %v2207
  %v2582 = vunpack.c.l.b16 %v2208
  %v2583 = vunpack.c.h.b16 %v2208
  %v2584 = vunpack.c.l.b16 %v2209
  %v2585 = vunpack.c.h.b16 %v2209
  %v2586 = vunpack.c.l.b16 %v2210
  %v2587 = vunpack.c.h.b16 %v2210
  %v2588 = vunpack.c.l.b16 %v2211
  %v2589 = vunpack.c.h.b16 %v2211
  %v2590 = vunpack.c.l.b16 %v2212
  %v2591 = vunpack.c.h.b16 %v2212
  %v2592 = vunpack.c.l.b16 %v2213
  %v2593 = vunpack.c.h.b16 %v2213
  %v2594 = vunpack.c.l.b16 %v2214
  %v2595 = vunpack.c.h.b16 %v2214
  %v2596 = vunpack.c.l.b16 %v2215
  %v2597 = vunpack.c.h.b16 %v2215
  %v2598 = vunpack.c.l.b16 %v2216
  %v2599 = vunpack.c.h.b16 %v2216
  %v2600 = vunpack.c.l.b16 %v2217
  %v2601 = vunpack.c.h.b16 %v2217
  %v2602 = vunpack.c.l.b16 %v2218
  %v2603 = vunpack.c.h.b16 %v2218
  %v2604 = vunpack.c.l.b16 %v2219
  %v2605 = vunpack.c.h.b16 %v2219
  %v2606 = vunpack.c.l.b16 %v2220
  %v2607 = vunpack.c.h.b16 %v2220
  %v2608 = vunpack.c.l.b16 %v2221
  %v2609 = vunpack.c.h.b16 %v2221
  %v2610 = vunpack.c.l.b16 %v2222
  %v2611 = vunpack.c.h.b16 %v2222
  %v2612 = vunpack.c.l.b16 %v2223
  %v2613 = vunpack.c.h.b16 %v2223
  %v2614 = vunpack.c.l.b16 %v2224
  %v2615 = vunpack.c.h.b16 %v2224
  %v2616 = vunpack.c.l.b16 %v2225
  %v2617 = vunpack.c.h.b16 %v2225
  %v2618 = vunpack.c.l.b16 %v2226
  %v2619 = vunpack.c.h.b16 %v2226
  %v2620 = vunpack.c.l.b16 %v2227
  %v2621 = vunpack.c.h.b16 %v2227
  %v2622 = vunpack.c.l.b16 %v2228
  %v2623 = vunpack.c.h.b16 %v2228
  %v2624 = vunpack.c.l.b16 %v2229
  %v2625 = vunpack.c.h.b16 %v2229
  %v2626 = vunpack.c.l.b16 %v2230
  %v2627 = vunpack.c.h.b16 %v2230
  %v2628 = vunpack.c.l.b16 %v2231
  %v2629 = vunpack.c.h.b16 %v2231
  %v2630 = vunpack.c.l.b16 %v2232
  %v2631 = vunpack.c.h.b16 %v2232
  %v2632 = vunpack.c.l.b16 %v2233
  %v2633 = vunpack.c.h.b16 %v2233
  %v2634 = vpack.c.b16 %v2380, %v2378
  %v2635 = vpack.c.b16 %v2381, %v2379
  %v2636 = vpack.c.b16 %v2384, %v2382
  %v2637 = vpack.c.b16 %v2385, %v2383
  %v2638 = vpack.c.b16 %v2388, %v2386
  %v2639 = vpack.c.b16 %v2389, %v2387
  %v2640 = vpack.c.b16 %v2392, %v2390
  %v2641 = vpack.c.b16 %v2393, %v2391
  %v2642 = vpack.c.b16 %v2396, %v2394
  %v2643 = vpack.c.b16 %v2397, %v2395
  %v2644 = vpack.c.b16 %v2400, %v2398
  %v2645 = vpack.c.b16 %v2401, %v2399
  %v2646 = vpack.c.b16 %v2404, %v2402
  %v2647 = vpack.c.b16 %v2405, %v2403
  %v2648 = vpack.c.b16 %v2408, %v2406
  %v2649 = vpack.c.b16 %v2409, %v2407
  %v2650 = vpack.c.b16 %v2412, %v2410
  %v2651 = vpack.c.b16 %v2413, %v2411
  %v2652 = vpack.c.b16 %v2416, %v2414
  %v2653 = vpack.c.b16 %v2417, %v2415
  %v2654 = vpack.c.b16 %v2420, %v2418
  %v2655 = vpack.c.b16 %v2421, %v2419
  %v2656 = vpack.c.b16 %v2424, %v2422
  %v2657 = vpack.c.b16 %v2425, %v2423
  %v2658 = vpack.c.b16 %v2428, %v2426
  %v2659 = vpack.c.b16 %v2429, %v2427
  %v2660 = vpack.c.b16 %v2432, %v2430
  %v2661 = vpack.c.b16 %v2433, %v2431
  %v2662 = vpack.c.b16 %v2436, %v2434
  %v2663 = vpack.c.b16 %v2437, %v2435
  %v2664 = vpack.c.b16 %v2440, %v2438
  %v2665 = vpack.c.b16 %v2441, %v2439
  %v2666 = vpack.c.b16 %v2444, %v2442
  %v2667 = vpack.c.b16 %v2445, %v2443
  %v2668 = vpack.c.b16 %v2448, %v2446
  %v2669 = vpack.c.b16 %v2449, %v2447
  %v2670 = vpack.c.b16 %v2452, %v2450
  %v2671 = vpack.c.b16 %v2453, %v2451
  %v2672 = vpack.c.b16 %v2456, %v2454
  %v2673 = vpack.c.b16 %v2457, %v2455
  %v2674 = vpack.c.b16 %v2460, %v2458
  %v2675 = vpack.c.b16 %v2461, %v2459
  %v2676 = vpack.c.b16 %v2464, %v2462
  %v2677 = vpack.c.b16 %v2465, %v2463
  %v2678 = vpack.c.b16 %v2468, %v2466
  %v2679 = vpack.c.b16 %v2469, %v2467
  %v2680 = vpack.c.b16 %v2472, %v2470
  %v2681 = vpack.c.b16 %v2473, %v2471
  %v2682 = vpack.c.b16 %v2476, %v2474
  %v2683 = vpack.c.b16 %v2477, %v2475
  %v2684 = vpack.c.b16 %v2480, %v2478
  %v2685 = vpack.c.b16 %v2481, %v2479
  %v2686 = vpack.c.b16 %v2484, %v2482
  %v2687 = vpack.c.b16 %v2485, %v2483
  %v2688 = vpack.c.b16 %v2488, %v2486
  %v2689 = vpack.c.b16 %v2489, %v2487
  %v2690 = vpack.c.b16 %v2492, %v2490
  %v2691 = vpack.c.b16 %v2493, %v2491
  %v2692 = vpack.c.b16 %v2496, %v2494
  %v2693 = vpack.c.b16 %v2497, %v2495
  %v2694 = vpack.c.b16 %v2500, %v2498
  %v2695 = vpack.c.b16 %v2501, %v2499
  %v2696 = vpack.c.b16 %v2504, %v2502
  %v2697 = vpack.c.b16 %v2505, %v2503
  %v2698 = vpack.c.b16 %v2508, %v2506
  %v2699 = vpack.c.b16 %v2509, %v2507
  %v2700 = vpack.c.b16 %v2512, %v2510
  %v2701 = vpack.c.b16 %v2513, %v2511
  %v2702 = vpack.c.b16 %v2516, %v2514
  %v2703 = vpack.c.b16 %v2517, %v2515
  %v2704 = vpack.c.b16 %v2520, %v2518
  %v2705 = vpack.c.b16 %v2521, %v2519
  %v2706 = vpack.c.b16 %v2524, %v2522
  %v2707 = vpack.c.b16 %v2525, %v2523
  %v2708 = vpack.c.b16 %v2528, %v2526
  %v2709 = vpack.c.b16 %v2529, %v2527
  %v2710 = vpack.c.b16 %v2532, %v2530
  %v2711 = vpack.c.b16 %v2533, %v2531
  %v2712 = vpack.c.b16 %v2536, %v2534
  %v2713 = vpack.c.b16 %v2537, %v2535
  %v2714 = vpack.c.b16 %v2540, %v2538
  %v2715 = vpack.c.b16 %v2541, %v2539
  %v2716 = vpack.c.b16 %v2544, %v2542
  %v2717 = vpack.c.b16 %v2545, %v2543
  %v2718 = vpack.c.b16 %v2548, %v2546
  %v2719 = vpack.c.b16 %v2549, %v2547
  %v2720 = vpack.c.b16 %v2552, %v2550
  %v2721 = vpack.c.b16 %v2553, %v2551
  %v2722 = vpack.c.b16 %v2556, %v2554
  %v2723 = vpack.c.b16 %v2557, %v2555
  %v2724 = vpack.c.b16 %v2560, %v2558
  %v2725 = vpack.c.b16 %v2561, %v2559
  %v2726 = vpack.c.b16 %v2564, %v2562
  %v2727 = vpack.c.b16 %v2565, %v2563
  %v2728 = vpack.c.b16 %v2568, %v2566
  %v2729 = vpack.c.b16 %v2569, %v2567
  %v2730 = vpack.c.b16 %v2572, %v2570
  %v2731 = vpack.c.b16 %v2573, %v2571
  %v2732 = vpack.c.b16 %v2576, %v2574
  %v2733 = vpack.c.b16 %v2577, %v2575
  %v2734 = vpack.c.b16 %v2580, %v2578
  %v2735 = vpack.c.b16 %v2581, %v2579
  %v2736 = vpack.c.b16 %v2584, %v2582
  %v2737 = vpack.c.b16 %v2585, %v2583
  %v2738 = vpack.c.b16 %v2588, %v2586
  %v2739 = vpack.c.b16 %v2589, %v2587
  %v2740 = vpack.c.b16 %v2592, %v2590
  %v2741 = vpack.c.b16 %v2593, %v2591
  %v2742 = vpack.c.b16 %v2596, %v2594
  %v2743 = vpack.c.b16 %v2597, %v2595
  %v2744 = vpack.c.b16 %v2600, %v2598
  %v2745 = vpack.c.b16 %v2601, %v2599
  %v2746 = vpack.c.b16 %v2604, %v2602
  %v2747 = vpack.c.b16 %v2605, %v2603
  %v2748 = vpack.c.b16 %v2608, %v2606
  %v2749 = vpack.c.b16 %v2609, %v2607
  %v2750 = vpack.c.b16 %v2612, %v2610
  %v2751 = vpack.c.b16 %v2613, %v2611
  %v2752 = vpack.c.b16 %v2616, %v2614
  %v2753 = vpack.c.b16 %v2617, %v2615
  %v2754 = vpack.c.b16 %v2620, %v2618
  %v2755 = vpack.c.b16 %v2621, %v2619
  %v2756 = vpack.c.b16 %v2624, %v2622
  %v2757 = vpack.c.b16 %v2625, %v2623
  %v2758 = vpack.c.b16 %v2628, %v2626
  %v2759 = vpack.c.b16 %v2629, %v2627
  %v2760 = vpack.c.b16 %v2632, %v2630
  %v2761 = vpack.c.b16 %v2633, %v2631
  %2890 = vmatprep.subr.bf16.mxu0 0
  %2891 = vmatpush1.bf16.msra.mxu0 %v2234
  %2892 = vmatprep.subr.bf16.mxu0 0
  %2893 = vmatpush1.bf16.msra.mxu0 %v2235
  %2894 = vmatprep.subr.bf16.mxu0 0
  %2895 = vmatpush1.bf16.msra.mxu0 %v2236
  %2896 = vmatprep.subr.bf16.mxu0 0
  %2897 = vmatpush1.bf16.msra.mxu0 %v2237
  %2898 = vmatprep.subr.bf16.mxu0 0
  %2899 = vmatpush1.bf16.msra.mxu0 %v2238
  %2900 = vmatprep.subr.bf16.mxu0 0
  %2901 = vmatpush1.bf16.msra.mxu0 %v2239
  %2902 = vmatprep.subr.bf16.mxu0 0
  %2903 = vmatpush1.bf16.msra.mxu0 %v2240
  %2904 = vmatprep.subr.bf16.mxu0 0
  %2905 = vmatpush1.bf16.msra.mxu0 %v2241
  %2906 = vmatprep.subr.bf16.mxu0 0
  %2907 = vmatpush1.bf16.msra.mxu0 %v2242
  %2908 = vmatprep.subr.bf16.mxu0 0
  %2909 = vmatpush1.bf16.msra.mxu0 %v2243
  %2910 = vmatprep.subr.bf16.mxu0 0
  %2911 = vmatpush1.bf16.msra.mxu0 %v2244
  %2912 = vmatprep.subr.bf16.mxu0 0
  %2913 = vmatpush1.bf16.msra.mxu0 %v2245
  %2914 = vmatprep.subr.bf16.mxu0 0
  %2915 = vmatpush1.bf16.msra.mxu0 %v2246
  %2916 = vmatprep.subr.bf16.mxu0 0
  %2917 = vmatpush1.bf16.msra.mxu0 %v2247
  %2918 = vmatprep.subr.bf16.mxu0 0
  %2919 = vmatpush1.bf16.msra.mxu0 %v2248
  %2920 = vmatprep.subr.bf16.mxu0 0
  %2921 = vmatpush1.bf16.msra.mxu0 %v2249
  %2922 = vmatprep.mubr.bf16.mxu0 %v2635
  %2923 = vmatmul.mubr.bf16.gmra.mrb[0].mxu0 %v2634
  %v2924 = vpop.f32.mrb[0].mxu0
  %v2925 = vadd.f32 0.0, %v2924
  %v2926 = vpop.f32.mrb[0].mxu0
  %v2927 = vpop.f32.mrb[0].mxu0
  %v2928 = vadd.f32 0.0, %v2927
  %v2929 = vpop.f32.mrb[0].mxu0
  %2930 = vmatprep.mubr.bf16.mxu0 %v2637
  %2931 = vmatmul.mubr.bf16.gmra.mrb[0].mxu0 %v2636
  %v2932 = vpop.f32.mrb[0].mxu0
  %v2933 = vadd.f32 0.0, %v2932
  %v2934 = vpop.f32.mrb[0].mxu0
  %v2935 = vpop.f32.mrb[0].mxu0
  %v2936 = vadd.f32 0.0, %v2935
  %v2937 = vpop.f32.mrb[0].mxu0
  %2938 = vmatprep.mubr.bf16.mxu0 %v2639
  %2939 = vmatmul.mubr.bf16.gmra.mrb[0].mxu0 %v2638
  %v2940 = vpop.f32.mrb[0].mxu0
  %v2941 = vadd.f32 0.0, %v2940
  %v2942 = vpop.f32.mrb[0].mxu0
  %v2943 = vpop.f32.mrb[0].mxu0
  %v2944 = vadd.f32 0.0, %v2943
  %v2945 = vpop.f32.mrb[0].mxu0
  %2946 = vmatprep.mubr.bf16.mxu0 %v2641
  %2947 = vmatmul.mubr.bf16.gmra.mrb[0].mxu0 %v2640
  %v2948 = vpop.f32.mrb[0].mxu0
  %v2949 = vadd.f32 0.0, %v2948
  %v2950 = vpop.f32.mrb[0].mxu0
  %v2951 = vpop.f32.mrb[0].mxu0
  %v2952 = vadd.f32 0.0, %v2951
  %v2953 = vpop.f32.mrb[0].mxu0
  %2954 = vmatprep.mubr.bf16.mxu0 %v2643
  %2955 = vmatmul.mubr.bf16.gmra.mrb[0].mxu0 %v2642
  %v2956 = vpop.f32.mrb[0].mxu0
  %v2957 = vadd.f32 0.0, %v2956
  %v2958 = vpop.f32.mrb[0].mxu0
  %v2959 = vpop.f32.mrb[0].mxu0
  %v2960 = vadd.f32 0.0, %v2959
  %v2961 = vpop.f32.mrb[0].mxu0
  %2962 = vmatprep.mubr.bf16.mxu0 %v2645
  %2963 = vmatmul.mubr.bf16.gmra.mrb[0].mxu0 %v2644
  %v2964 = vpop.f32.mrb[0].mxu0
  %v2965 = vadd.f32 0.0, %v2964
  %v2966 = vpop.f32.mrb[0].mxu0
  %v2967 = vpop.f32.mrb[0].mxu0
  %v2968 = vadd.f32 0.0, %v2967
  %v2969 = vpop.f32.mrb[0].mxu0
  %2970 = vmatprep.mubr.bf16.mxu0 %v2647
  %2971 = vmatmul.mubr.bf16.gmra.mrb[0].mxu0 %v2646
  %v2972 = vpop.f32.mrb[0].mxu0
  %v2973 = vadd.f32 0.0, %v2972
  %v2974 = vpop.f32.mrb[0].mxu0
  %v2975 = vpop.f32.mrb[0].mxu0
  %v2976 = vadd.f32 0.0, %v2975
  %v2977 = vpop.f32.mrb[0].mxu0
  %2978 = vmatprep.mubr.bf16.mxu0 %v2649
  %2979 = vmatmul.mubr.bf16.gmra.mrb[0].mxu0 %v2648
  %v2980 = vpop.f32.mrb[0].mxu0
  %v2981 = vadd.f32 0.0, %v2980
  %v2982 = vpop.f32.mrb[0].mxu0
  %v2983 = vpop.f32.mrb[0].mxu0
  %v2984 = vadd.f32 0.0, %v2983
  %v2985 = vpop.f32.mrb[0].mxu0
  %2986 = vmatprep.mubr.bf16.mxu0 %v2651
  %2987 = vmatmul.mubr.bf16.gmra.mrb[0].mxu0 %v2650
  %v2988 = vpop.f32.mrb[0].mxu0
  %v2989 = vadd.f32 0.0, %v2988
  %v2990 = vpop.f32.mrb[0].mxu0
  %v2991 = vpop.f32.mrb[0].mxu0
  %v2992 = vadd.f32 0.0, %v2991
  %v2993 = vpop.f32.mrb[0].mxu0
  %2994 = vmatprep.mubr.bf16.mxu0 %v2653
  %2995 = vmatmul.mubr.bf16.gmra.mrb[0].mxu0 %v2652
  %v2996 = vpop.f32.mrb[0].mxu0
  %v2997 = vadd.f32 0.0, %v2996
  %v2998 = vpop.f32.mrb[0].mxu0
  %v2999 = vpop.f32.mrb[0].mxu0
  %v3000 = vadd.f32 0.0, %v2999
  %v3001 = vpop.f32.mrb[0].mxu0
  %3002 = vmatprep.mubr.bf16.mxu0 %v2655
  %3003 = vmatmul.mubr.bf16.gmra.mrb[0].mxu0 %v2654
  %v3004 = vpop.f32.mrb[0].mxu0
  %v3005 = vadd.f32 0.0, %v3004
  %v3006 = vpop.f32.mrb[0].mxu0
  %v3007 = vpop.f32.mrb[0].mxu0
  %v3008 = vadd.f32 0.0, %v3007
  %v3009 = vpop.f32.mrb[0].mxu0
  %3010 = vmatprep.mubr.bf16.mxu0 %v2657
  %3011 = vmatmul.mubr.bf16.gmra.mrb[0].mxu0 %v2656
  %v3012 = vpop.f32.mrb[0].mxu0
  %v3013 = vadd.f32 0.0, %v3012
  %v3014 = vpop.f32.mrb[0].mxu0
  %v3015 = vpop.f32.mrb[0].mxu0
  %v3016 = vadd.f32 0.0, %v3015
  %v3017 = vpop.f32.mrb[0].mxu0
  %3018 = vmatprep.mubr.bf16.mxu0 %v2659
  %3019 = vmatmul.mubr.bf16.gmra.mrb[0].mxu0 %v2658
  %v3020 = vpop.f32.mrb[0].mxu0
  %v3021 = vadd.f32 0.0, %v3020
  %v3022 = vpop.f32.mrb[0].mxu0
  %v3023 = vpop.f32.mrb[0].mxu0
  %v3024 = vadd.f32 0.0, %v3023
  %v3025 = vpop.f32.mrb[0].mxu0
  %3026 = vmatprep.mubr.bf16.mxu0 %v2661
  %3027 = vmatmul.mubr.bf16.gmra.mrb[0].mxu0 %v2660
  %v3028 = vpop.f32.mrb[0].mxu0
  %v3029 = vadd.f32 0.0, %v3028
  %v3030 = vpop.f32.mrb[0].mxu0
  %v3031 = vpop.f32.mrb[0].mxu0
  %v3032 = vadd.f32 0.0, %v3031
  %v3033 = vpop.f32.mrb[0].mxu0
  %3034 = vmatprep.mubr.bf16.mxu0 %v2663
  %3035 = vmatmul.mubr.bf16.gmra.mrb[0].mxu0 %v2662
  %v3036 = vpop.f32.mrb[0].mxu0
  %v3037 = vadd.f32 0.0, %v3036
  %v3038 = vpop.f32.mrb[0].mxu0
  %v3039 = vpop.f32.mrb[0].mxu0
  %v3040 = vadd.f32 0.0, %v3039
  %v3041 = vpop.f32.mrb[0].mxu0
  %3042 = vmatprep.mubr.bf16.mxu0 %v2665
  %3043 = vmatmul.mubr.bf16.gmra.mrb[0].mxu0 %v2664
  %v3044 = vpop.f32.mrb[0].mxu0
  %v3045 = vadd.f32 0.0, %v3044
  %v3046 = vpop.f32.mrb[0].mxu0
  %v3047 = vpop.f32.mrb[0].mxu0
  %v3048 = vadd.f32 0.0, %v3047
  %v3049 = vpop.f32.mrb[0].mxu0
  %3050 = vmatprep.mubr.bf16.mxu0 %v2667
  %3051 = vmatmul.mubr.bf16.gmra.mrb[0].mxu0 %v2666
  %v3052 = vpop.f32.mrb[0].mxu0
  %v3053 = vadd.f32 0.0, %v3052
  %v3054 = vpop.f32.mrb[0].mxu0
  %v3055 = vpop.f32.mrb[0].mxu0
  %v3056 = vadd.f32 0.0, %v3055
  %v3057 = vpop.f32.mrb[0].mxu0
  %3058 = vmatprep.mubr.bf16.mxu0 %v2669
  %3059 = vmatmul.mubr.bf16.gmra.mrb[0].mxu0 %v2668
  %v3060 = vpop.f32.mrb[0].mxu0
  %v3061 = vadd.f32 0.0, %v3060
  %v3062 = vpop.f32.mrb[0].mxu0
  %v3063 = vpop.f32.mrb[0].mxu0
  %v3064 = vadd.f32 0.0, %v3063
  %v3065 = vpop.f32.mrb[0].mxu0
  %3066 = vmatprep.mubr.bf16.mxu0 %v2671
  %3067 = vmatmul.mubr.bf16.gmra.mrb[0].mxu0 %v2670
  %v3068 = vpop.f32.mrb[0].mxu0
  %v3069 = vadd.f32 0.0, %v3068
  %v3070 = vpop.f32.mrb[0].mxu0
  %v3071 = vpop.f32.mrb[0].mxu0
  %v3072 = vadd.f32 0.0, %v3071
  %v3073 = vpop.f32.mrb[0].mxu0
  %3074 = vmatprep.mubr.bf16.mxu0 %v2673
  %3075 = vmatmul.mubr.bf16.gmra.mrb[0].mxu0 %v2672
  %v3076 = vpop.f32.mrb[0].mxu0
  %v3077 = vadd.f32 0.0, %v3076
  %v3078 = vpop.f32.mrb[0].mxu0
  %v3079 = vpop.f32.mrb[0].mxu0
  %v3080 = vadd.f32 0.0, %v3079
  %v3081 = vpop.f32.mrb[0].mxu0
  %3082 = vmatprep.mubr.bf16.mxu0 %v2675
  %3083 = vmatmul.mubr.bf16.gmra.mrb[0].mxu0 %v2674
  %v3084 = vpop.f32.mrb[0].mxu0
  %v3085 = vadd.f32 0.0, %v3084
  %v3086 = vpop.f32.mrb[0].mxu0
  %v3087 = vpop.f32.mrb[0].mxu0
  %v3088 = vadd.f32 0.0, %v3087
  %v3089 = vpop.f32.mrb[0].mxu0
  %3090 = vmatprep.mubr.bf16.mxu0 %v2677
  %3091 = vmatmul.mubr.bf16.gmra.mrb[0].mxu0 %v2676
  %v3092 = vpop.f32.mrb[0].mxu0
  %v3093 = vadd.f32 0.0, %v3092
  %v3094 = vpop.f32.mrb[0].mxu0
  %v3095 = vpop.f32.mrb[0].mxu0
  %v3096 = vadd.f32 0.0, %v3095
  %v3097 = vpop.f32.mrb[0].mxu0
  %3098 = vmatprep.mubr.bf16.mxu0 %v2679
  %3099 = vmatmul.mubr.bf16.gmra.mrb[0].mxu0 %v2678
  %v3100 = vpop.f32.mrb[0].mxu0
  %v3101 = vadd.f32 0.0, %v3100
  %v3102 = vpop.f32.mrb[0].mxu0
  %v3103 = vpop.f32.mrb[0].mxu0
  %v3104 = vadd.f32 0.0, %v3103
  %v3105 = vpop.f32.mrb[0].mxu0
  %3106 = vmatprep.mubr.bf16.mxu0 %v2681
  %3107 = vmatmul.mubr.bf16.gmra.mrb[0].mxu0 %v2680
  %v3108 = vpop.f32.mrb[0].mxu0
  %v3109 = vadd.f32 0.0, %v3108
  %v3110 = vpop.f32.mrb[0].mxu0
  %v3111 = vpop.f32.mrb[0].mxu0
  %v3112 = vadd.f32 0.0, %v3111
  %v3113 = vpop.f32.mrb[0].mxu0
  %3114 = vmatprep.mubr.bf16.mxu0 %v2683
  %3115 = vmatmul.mubr.bf16.gmra.mrb[0].mxu0 %v2682
  %v3116 = vpop.f32.mrb[0].mxu0
  %v3117 = vadd.f32 0.0, %v3116
  %v3118 = vpop.f32.mrb[0].mxu0
  %v3119 = vpop.f32.mrb[0].mxu0
  %v3120 = vadd.f32 0.0, %v3119
  %v3121 = vpop.f32.mrb[0].mxu0
  %3122 = vmatprep.mubr.bf16.mxu0 %v2685
  %3123 = vmatmul.mubr.bf16.gmra.mrb[0].mxu0 %v2684
  %v3124 = vpop.f32.mrb[0].mxu0
  %v3125 = vadd.f32 0.0, %v3124
  %v3126 = vpop.f32.mrb[0].mxu0
  %v3127 = vpop.f32.mrb[0].mxu0
  %v3128 = vadd.f32 0.0, %v3127
  %v3129 = vpop.f32.mrb[0].mxu0
  %3130 = vmatprep.mubr.bf16.mxu0 %v2687
  %3131 = vmatmul.mubr.bf16.gmra.mrb[0].mxu0 %v2686
  %v3132 = vpop.f32.mrb[0].mxu0
  %v3133 = vadd.f32 0.0, %v3132
  %v3134 = vpop.f32.mrb[0].mxu0
  %v3135 = vpop.f32.mrb[0].mxu0
  %v3136 = vadd.f32 0.0, %v3135
  %v3137 = vpop.f32.mrb[0].mxu0
  %3138 = vmatprep.mubr.bf16.mxu0 %v2689
  %3139 = vmatmul.mubr.bf16.gmra.mrb[0].mxu0 %v2688
  %v3140 = vpop.f32.mrb[0].mxu0
  %v3141 = vadd.f32 0.0, %v3140
  %v3142 = vpop.f32.mrb[0].mxu0
  %v3143 = vpop.f32.mrb[0].mxu0
  %v3144 = vadd.f32 0.0, %v3143
  %v3145 = vpop.f32.mrb[0].mxu0
  %3146 = vmatprep.mubr.bf16.mxu0 %v2691
  %3147 = vmatmul.mubr.bf16.gmra.mrb[0].mxu0 %v2690
  %v3148 = vpop.f32.mrb[0].mxu0
  %v3149 = vadd.f32 0.0, %v3148
  %v3150 = vpop.f32.mrb[0].mxu0
  %v3151 = vpop.f32.mrb[0].mxu0
  %v3152 = vadd.f32 0.0, %v3151
  %v3153 = vpop.f32.mrb[0].mxu0
  %3154 = vmatprep.mubr.bf16.mxu0 %v2693
  %3155 = vmatmul.mubr.bf16.gmra.mrb[0].mxu0 %v2692
  %v3156 = vpop.f32.mrb[0].mxu0
  %v3157 = vadd.f32 0.0, %v3156
  %v3158 = vpop.f32.mrb[0].mxu0
  %v3159 = vpop.f32.mrb[0].mxu0
  %v3160 = vadd.f32 0.0, %v3159
  %v3161 = vpop.f32.mrb[0].mxu0
  %3162 = vmatprep.mubr.bf16.mxu0 %v2695
  %3163 = vmatmul.mubr.bf16.gmra.mrb[0].mxu0 %v2694
  %v3164 = vpop.f32.mrb[0].mxu0
  %v3165 = vadd.f32 0.0, %v3164
  %v3166 = vpop.f32.mrb[0].mxu0
  %v3167 = vpop.f32.mrb[0].mxu0
  %v3168 = vadd.f32 0.0, %v3167
  %v3169 = vpop.f32.mrb[0].mxu0
  %3170 = vmatprep.mubr.bf16.mxu0 %v2697
  %3171 = vmatmul.mubr.bf16.gmra.mrb[0].mxu0 %v2696
  %v3172 = vpop.f32.mrb[0].mxu0
  %v3173 = vadd.f32 0.0, %v3172
  %v3174 = vpop.f32.mrb[0].mxu0
  %v3175 = vpop.f32.mrb[0].mxu0
  %v3176 = vadd.f32 0.0, %v3175
  %v3177 = vpop.f32.mrb[0].mxu0
  %3178 = vmatprep.mubr.bf16.mxu0 %v2699
  %3179 = vmatmul.mubr.bf16.gmra.mrb[0].mxu0 %v2698
  %v3180 = vpop.f32.mrb[0].mxu0
  %v3181 = vadd.f32 0.0, %v3180
  %v3182 = vpop.f32.mrb[0].mxu0
  %v3183 = vpop.f32.mrb[0].mxu0
  %v3184 = vadd.f32 0.0, %v3183
  %v3185 = vpop.f32.mrb[0].mxu0
  %3186 = vmatprep.mubr.bf16.mxu0 %v2701
  %3187 = vmatmul.mubr.bf16.gmra.mrb[0].mxu0 %v2700
  %v3188 = vpop.f32.mrb[0].mxu0
  %v3189 = vadd.f32 0.0, %v3188
  %v3190 = vpop.f32.mrb[0].mxu0
  %v3191 = vpop.f32.mrb[0].mxu0
  %v3192 = vadd.f32 0.0, %v3191
  %v3193 = vpop.f32.mrb[0].mxu0
  %3194 = vmatprep.mubr.bf16.mxu0 %v2703
  %3195 = vmatmul.mubr.bf16.gmra.mrb[0].mxu0 %v2702
  %v3196 = vpop.f32.mrb[0].mxu0
  %v3197 = vadd.f32 0.0, %v3196
  %v3198 = vpop.f32.mrb[0].mxu0
  %v3199 = vpop.f32.mrb[0].mxu0
  %v3200 = vadd.f32 0.0, %v3199
  %v3201 = vpop.f32.mrb[0].mxu0
  %3202 = vmatprep.mubr.bf16.mxu0 %v2705
  %3203 = vmatmul.mubr.bf16.gmra.mrb[0].mxu0 %v2704
  %v3204 = vpop.f32.mrb[0].mxu0
  %v3205 = vadd.f32 0.0, %v3204
  %v3206 = vpop.f32.mrb[0].mxu0
  %v3207 = vpop.f32.mrb[0].mxu0
  %v3208 = vadd.f32 0.0, %v3207
  %v3209 = vpop.f32.mrb[0].mxu0
  %3210 = vmatprep.mubr.bf16.mxu0 %v2707
  %3211 = vmatmul.mubr.bf16.gmra.mrb[0].mxu0 %v2706
  %v3212 = vpop.f32.mrb[0].mxu0
  %v3213 = vadd.f32 0.0, %v3212
  %v3214 = vpop.f32.mrb[0].mxu0
  %v3215 = vpop.f32.mrb[0].mxu0
  %v3216 = vadd.f32 0.0, %v3215
  %v3217 = vpop.f32.mrb[0].mxu0
  %3218 = vmatprep.mubr.bf16.mxu0 %v2709
  %3219 = vmatmul.mubr.bf16.gmra.mrb[0].mxu0 %v2708
  %v3220 = vpop.f32.mrb[0].mxu0
  %v3221 = vadd.f32 0.0, %v3220
  %v3222 = vpop.f32.mrb[0].mxu0
  %v3223 = vpop.f32.mrb[0].mxu0
  %v3224 = vadd.f32 0.0, %v3223
  %v3225 = vpop.f32.mrb[0].mxu0
  %3226 = vmatprep.mubr.bf16.mxu0 %v2711
  %3227 = vmatmul.mubr.bf16.gmra.mrb[0].mxu0 %v2710
  %v3228 = vpop.f32.mrb[0].mxu0
  %v3229 = vadd.f32 0.0, %v3228
  %v3230 = vpop.f32.mrb[0].mxu0
  %v3231 = vpop.f32.mrb[0].mxu0
  %v3232 = vadd.f32 0.0, %v3231
  %v3233 = vpop.f32.mrb[0].mxu0
  %3234 = vmatprep.mubr.bf16.mxu0 %v2713
  %3235 = vmatmul.mubr.bf16.gmra.mrb[0].mxu0 %v2712
  %v3236 = vpop.f32.mrb[0].mxu0
  %v3237 = vadd.f32 0.0, %v3236
  %v3238 = vpop.f32.mrb[0].mxu0
  %v3239 = vpop.f32.mrb[0].mxu0
  %v3240 = vadd.f32 0.0, %v3239
  %v3241 = vpop.f32.mrb[0].mxu0
  %3242 = vmatprep.mubr.bf16.mxu0 %v2715
  %3243 = vmatmul.mubr.bf16.gmra.mrb[0].mxu0 %v2714
  %v3244 = vpop.f32.mrb[0].mxu0
  %v3245 = vadd.f32 0.0, %v3244
  %v3246 = vpop.f32.mrb[0].mxu0
  %v3247 = vpop.f32.mrb[0].mxu0
  %v3248 = vadd.f32 0.0, %v3247
  %v3249 = vpop.f32.mrb[0].mxu0
  %3250 = vmatprep.mubr.bf16.mxu0 %v2717
  %3251 = vmatmul.mubr.bf16.gmra.mrb[0].mxu0 %v2716
  %v3252 = vpop.f32.mrb[0].mxu0
  %v3253 = vadd.f32 0.0, %v3252
  %v3254 = vpop.f32.mrb[0].mxu0
  %v3255 = vpop.f32.mrb[0].mxu0
  %v3256 = vadd.f32 0.0, %v3255
  %v3257 = vpop.f32.mrb[0].mxu0
  %3258 = vmatprep.mubr.bf16.mxu0 %v2719
  %3259 = vmatmul.mubr.bf16.gmra.mrb[0].mxu0 %v2718
  %v3260 = vpop.f32.mrb[0].mxu0
  %v3261 = vadd.f32 0.0, %v3260
  %v3262 = vpop.f32.mrb[0].mxu0
  %v3263 = vpop.f32.mrb[0].mxu0
  %v3264 = vadd.f32 0.0, %v3263
  %v3265 = vpop.f32.mrb[0].mxu0
  %3266 = vmatprep.mubr.bf16.mxu0 %v2721
  %3267 = vmatmul.mubr.bf16.gmra.mrb[0].mxu0 %v2720
  %v3268 = vpop.f32.mrb[0].mxu0
  %v3269 = vadd.f32 0.0, %v3268
  %v3270 = vpop.f32.mrb[0].mxu0
  %v3271 = vpop.f32.mrb[0].mxu0
  %v3272 = vadd.f32 0.0, %v3271
  %v3273 = vpop.f32.mrb[0].mxu0
  %3274 = vmatprep.mubr.bf16.mxu0 %v2723
  %3275 = vmatmul.mubr.bf16.gmra.mrb[0].mxu0 %v2722
  %v3276 = vpop.f32.mrb[0].mxu0
  %v3277 = vadd.f32 0.0, %v3276
  %v3278 = vpop.f32.mrb[0].mxu0
  %v3279 = vpop.f32.mrb[0].mxu0
  %v3280 = vadd.f32 0.0, %v3279
  %v3281 = vpop.f32.mrb[0].mxu0
  %3282 = vmatprep.mubr.bf16.mxu0 %v2725
  %3283 = vmatmul.mubr.bf16.gmra.mrb[0].mxu0 %v2724
  %v3284 = vpop.f32.mrb[0].mxu0
  %v3285 = vadd.f32 0.0, %v3284
  %v3286 = vpop.f32.mrb[0].mxu0
  %v3287 = vpop.f32.mrb[0].mxu0
  %v3288 = vadd.f32 0.0, %v3287
  %v3289 = vpop.f32.mrb[0].mxu0
  %3290 = vmatprep.mubr.bf16.mxu0 %v2727
  %3291 = vmatmul.mubr.bf16.gmra.mrb[0].mxu0 %v2726
  %v3292 = vpop.f32.mrb[0].mxu0
  %v3293 = vadd.f32 0.0, %v3292
  %v3294 = vpop.f32.mrb[0].mxu0
  %v3295 = vpop.f32.mrb[0].mxu0
  %v3296 = vadd.f32 0.0, %v3295
  %v3297 = vpop.f32.mrb[0].mxu0
  %3298 = vmatprep.mubr.bf16.mxu0 %v2729
  %3299 = vmatmul.mubr.bf16.gmra.mrb[0].mxu0 %v2728
  %v3300 = vpop.f32.mrb[0].mxu0
  %v3301 = vadd.f32 0.0, %v3300
  %v3302 = vpop.f32.mrb[0].mxu0
  %v3303 = vpop.f32.mrb[0].mxu0
  %v3304 = vadd.f32 0.0, %v3303
  %v3305 = vpop.f32.mrb[0].mxu0
  %3306 = vmatprep.mubr.bf16.mxu0 %v2731
  %3307 = vmatmul.mubr.bf16.gmra.mrb[0].mxu0 %v2730
  %v3308 = vpop.f32.mrb[0].mxu0
  %v3309 = vadd.f32 0.0, %v3308
  %v3310 = vpop.f32.mrb[0].mxu0
  %v3311 = vpop.f32.mrb[0].mxu0
  %v3312 = vadd.f32 0.0, %v3311
  %v3313 = vpop.f32.mrb[0].mxu0
  %3314 = vmatprep.mubr.bf16.mxu0 %v2733
  %3315 = vmatmul.mubr.bf16.gmra.mrb[0].mxu0 %v2732
  %v3316 = vpop.f32.mrb[0].mxu0
  %v3317 = vadd.f32 0.0, %v3316
  %v3318 = vpop.f32.mrb[0].mxu0
  %v3319 = vpop.f32.mrb[0].mxu0
  %v3320 = vadd.f32 0.0, %v3319
  %v3321 = vpop.f32.mrb[0].mxu0
  %3322 = vmatprep.mubr.bf16.mxu0 %v2735
  %3323 = vmatmul.mubr.bf16.gmra.mrb[0].mxu0 %v2734
  %v3324 = vpop.f32.mrb[0].mxu0
  %v3325 = vadd.f32 0.0, %v3324
  %v3326 = vpop.f32.mrb[0].mxu0
  %v3327 = vpop.f32.mrb[0].mxu0
  %v3328 = vadd.f32 0.0, %v3327
  %v3329 = vpop.f32.mrb[0].mxu0
  %3330 = vmatprep.mubr.bf16.mxu0 %v2737
  %3331 = vmatmul.mubr.bf16.gmra.mrb[0].mxu0 %v2736
  %v3332 = vpop.f32.mrb[0].mxu0
  %v3333 = vadd.f32 0.0, %v3332
  %v3334 = vpop.f32.mrb[0].mxu0
  %v3335 = vpop.f32.mrb[0].mxu0
  %v3336 = vadd.f32 0.0, %v3335
  %v3337 = vpop.f32.mrb[0].mxu0
  %3338 = vmatprep.mubr.bf16.mxu0 %v2739
  %3339 = vmatmul.mubr.bf16.gmra.mrb[0].mxu0 %v2738
  %v3340 = vpop.f32.mrb[0].mxu0
  %v3341 = vadd.f32 0.0, %v3340
  %v3342 = vpop.f32.mrb[0].mxu0
  %v3343 = vpop.f32.mrb[0].mxu0
  %v3344 = vadd.f32 0.0, %v3343
  %v3345 = vpop.f32.mrb[0].mxu0
  %3346 = vmatprep.mubr.bf16.mxu0 %v2741
  %3347 = vmatmul.mubr.bf16.gmra.mrb[0].mxu0 %v2740
  %v3348 = vpop.f32.mrb[0].mxu0
  %v3349 = vadd.f32 0.0, %v3348
  %v3350 = vpop.f32.mrb[0].mxu0
  %v3351 = vpop.f32.mrb[0].mxu0
  %v3352 = vadd.f32 0.0, %v3351
  %v3353 = vpop.f32.mrb[0].mxu0
  %3354 = vmatprep.mubr.bf16.mxu0 %v2743
  %3355 = vmatmul.mubr.bf16.gmra.mrb[0].mxu0 %v2742
  %v3356 = vpop.f32.mrb[0].mxu0
  %v3357 = vadd.f32 0.0, %v3356
  %v3358 = vpop.f32.mrb[0].mxu0
  %v3359 = vpop.f32.mrb[0].mxu0
  %v3360 = vadd.f32 0.0, %v3359
  %v3361 = vpop.f32.mrb[0].mxu0
  %3362 = vmatprep.mubr.bf16.mxu0 %v2745
  %3363 = vmatmul.mubr.bf16.gmra.mrb[0].mxu0 %v2744
  %v3364 = vpop.f32.mrb[0].mxu0
  %v3365 = vadd.f32 0.0, %v3364
  %v3366 = vpop.f32.mrb[0].mxu0
  %v3367 = vpop.f32.mrb[0].mxu0
  %v3368 = vadd.f32 0.0, %v3367
  %v3369 = vpop.f32.mrb[0].mxu0
  %3370 = vmatprep.mubr.bf16.mxu0 %v2747
  %3371 = vmatmul.mubr.bf16.gmra.mrb[0].mxu0 %v2746
  %v3372 = vpop.f32.mrb[0].mxu0
  %v3373 = vadd.f32 0.0, %v3372
  %v3374 = vpop.f32.mrb[0].mxu0
  %v3375 = vpop.f32.mrb[0].mxu0
  %v3376 = vadd.f32 0.0, %v3375
  %v3377 = vpop.f32.mrb[0].mxu0
  %3378 = vmatprep.mubr.bf16.mxu0 %v2749
  %3379 = vmatmul.mubr.bf16.gmra.mrb[0].mxu0 %v2748
  %v3380 = vpop.f32.mrb[0].mxu0
  %v3381 = vadd.f32 0.0, %v3380
  %v3382 = vpop.f32.mrb[0].mxu0
  %v3383 = vpop.f32.mrb[0].mxu0
  %v3384 = vadd.f32 0.0, %v3383
  %v3385 = vpop.f32.mrb[0].mxu0
  %3386 = vmatprep.mubr.bf16.mxu0 %v2751
  %3387 = vmatmul.mubr.bf16.gmra.mrb[0].mxu0 %v2750
  %v3388 = vpop.f32.mrb[0].mxu0
  %v3389 = vadd.f32 0.0, %v3388
  %v3390 = vpop.f32.mrb[0].mxu0
  %v3391 = vpop.f32.mrb[0].mxu0
  %v3392 = vadd.f32 0.0, %v3391
  %v3393 = vpop.f32.mrb[0].mxu0
  %3394 = vmatprep.mubr.bf16.mxu0 %v2753
  %3395 = vmatmul.mubr.bf16.gmra.mrb[0].mxu0 %v2752
  %v3396 = vpop.f32.mrb[0].mxu0
  %v3397 = vadd.f32 0.0, %v3396
  %v3398 = vpop.f32.mrb[0].mxu0
  %v3399 = vpop.f32.mrb[0].mxu0
  %v3400 = vadd.f32 0.0, %v3399
  %v3401 = vpop.f32.mrb[0].mxu0
  %3402 = vmatprep.mubr.bf16.mxu0 %v2755
  %3403 = vmatmul.mubr.bf16.gmra.mrb[0].mxu0 %v2754
  %v3404 = vpop.f32.mrb[0].mxu0
  %v3405 = vadd.f32 0.0, %v3404
  %v3406 = vpop.f32.mrb[0].mxu0
  %v3407 = vpop.f32.mrb[0].mxu0
  %v3408 = vadd.f32 0.0, %v3407
  %v3409 = vpop.f32.mrb[0].mxu0
  %3410 = vmatprep.mubr.bf16.mxu0 %v2757
  %3411 = vmatmul.mubr.bf16.gmra.mrb[0].mxu0 %v2756
  %v3412 = vpop.f32.mrb[0].mxu0
  %v3413 = vadd.f32 0.0, %v3412
  %v3414 = vpop.f32.mrb[0].mxu0
  %v3415 = vpop.f32.mrb[0].mxu0
  %v3416 = vadd.f32 0.0, %v3415
  %v3417 = vpop.f32.mrb[0].mxu0
  %3418 = vmatprep.mubr.bf16.mxu0 %v2759
  %3419 = vmatmul.mubr.bf16.gmra.mrb[0].mxu0 %v2758
  %v3420 = vpop.f32.mrb[0].mxu0
  %v3421 = vadd.f32 0.0, %v3420
  %v3422 = vpop.f32.mrb[0].mxu0
  %v3423 = vpop.f32.mrb[0].mxu0
  %v3424 = vadd.f32 0.0, %v3423
  %v3425 = vpop.f32.mrb[0].mxu0
  %3426 = vmatprep.mubr.bf16.mxu0 %v2761
  %3427 = vmatmul.mubr.bf16.gmra.mrb[0].mxu0 %v2760
  %v3428 = vpop.f32.mrb[0].mxu0
  %v3429 = vadd.f32 0.0, %v3428
  %v3430 = vpop.f32.mrb[0].mxu0
  %v3431 = vpop.f32.mrb[0].mxu0
  %v3432 = vadd.f32 0.0, %v3431
  %v3433 = vpop.f32.mrb[0].mxu0
  %3434 = vdwg.mxu0
  %v3435 = vmax.f32 %v2925, 0.0
  %v3436 = vmax.f32 %v2928, 0.0
  %v3437 = vmax.f32 %v2933, 0.0
  %v3438 = vmax.f32 %v2936, 0.0
  %v3439 = vmax.f32 %v2941, 0.0
  %v3440 = vmax.f32 %v2944, 0.0
  %v3441 = vmax.f32 %v2949, 0.0
  %v3442 = vmax.f32 %v2952, 0.0
  %v3443 = vmax.f32 %v2957, 0.0
  %v3444 = vmax.f32 %v2960, 0.0
  %v3445 = vmax.f32 %v2965, 0.0
  %v3446 = vmax.f32 %v2968, 0.0
  %v3447 = vmax.f32 %v2973, 0.0
  %v3448 = vmax.f32 %v2976, 0.0
  %v3449 = vmax.f32 %v2981, 0.0
  %v3450 = vmax.f32 %v2984, 0.0
  %v3451 = vmax.f32 %v2989, 0.0
  %v3452 = vmax.f32 %v2992, 0.0
  %v3453 = vmax.f32 %v2997, 0.0
  %v3454 = vmax.f32 %v3000, 0.0
  %v3455 = vmax.f32 %v3005, 0.0
  %v3456 = vmax.f32 %v3008, 0.0
  %v3457 = vmax.f32 %v3013, 0.0
  %v3458 = vmax.f32 %v3016, 0.0
  %v3459 = vmax.f32 %v3021, 0.0
  %v3460 = vmax.f32 %v3024, 0.0
  %v3461 = vmax.f32 %v3029, 0.0
  %v3462 = vmax.f32 %v3032, 0.0
  %v3463 = vmax.f32 %v3037, 0.0
  %v3464 = vmax.f32 %v3040, 0.0
  %v3465 = vmax.f32 %v3045, 0.0
  %v3466 = vmax.f32 %v3048, 0.0
  %v3467 = vmax.f32 %v3053, 0.0
  %v3468 = vmax.f32 %v3056, 0.0
  %v3469 = vmax.f32 %v3061, 0.0
  %v3470 = vmax.f32 %v3064, 0.0
  %v3471 = vmax.f32 %v3069, 0.0
  %v3472 = vmax.f32 %v3072, 0.0
  %v3473 = vmax.f32 %v3077, 0.0
  %v3474 = vmax.f32 %v3080, 0.0
  %v3475 = vmax.f32 %v3085, 0.0
  %v3476 = vmax.f32 %v3088, 0.0
  %v3477 = vmax.f32 %v3093, 0.0
  %v3478 = vmax.f32 %v3096, 0.0
  %v3479 = vmax.f32 %v3101, 0.0
  %v3480 = vmax.f32 %v3104, 0.0
  %v3481 = vmax.f32 %v3109, 0.0
  %v3482 = vmax.f32 %v3112, 0.0
  %v3483 = vmax.f32 %v3117, 0.0
  %v3484 = vmax.f32 %v3120, 0.0
  %v3485 = vmax.f32 %v3125, 0.0
  %v3486 = vmax.f32 %v3128, 0.0
  %v3487 = vmax.f32 %v3133, 0.0
  %v3488 = vmax.f32 %v3136, 0.0
  %v3489 = vmax.f32 %v3141, 0.0
  %v3490 = vmax.f32 %v3144, 0.0
  %v3491 = vmax.f32 %v3149, 0.0
  %v3492 = vmax.f32 %v3152, 0.0
  %v3493 = vmax.f32 %v3157, 0.0
  %v3494 = vmax.f32 %v3160, 0.0
  %v3495 = vmax.f32 %v3165, 0.0
  %v3496 = vmax.f32 %v3168, 0.0
  %v3497 = vmax.f32 %v3173, 0.0
  %v3498 = vmax.f32 %v3176, 0.0
  %v3499 = vmax.f32 %v3181, 0.0
  %v3500 = vmax.f32 %v3184, 0.0
  %v3501 = vmax.f32 %v3189, 0.0
  %v3502 = vmax.f32 %v3192, 0.0
  %v3503 = vmax.f32 %v3197, 0.0
  %v3504 = vmax.f32 %v3200, 0.0
  %v3505 = vmax.f32 %v3205, 0.0
  %v3506 = vmax.f32 %v3208, 0.0
  %v3507 = vmax.f32 %v3213, 0.0
  %v3508 = vmax.f32 %v3216, 0.0
  %v3509 = vmax.f32 %v3221, 0.0
  %v3510 = vmax.f32 %v3224, 0.0
  %v3511 = vmax.f32 %v3229, 0.0
  %v3512 = vmax.f32 %v3232, 0.0
  %v3513 = vmax.f32 %v3237, 0.0
  %v3514 = vmax.f32 %v3240, 0.0
  %v3515 = vmax.f32 %v3245, 0.0
  %v3516 = vmax.f32 %v3248, 0.0
  %v3517 = vmax.f32 %v3253, 0.0
  %v3518 = vmax.f32 %v3256, 0.0
  %v3519 = vmax.f32 %v3261, 0.0
  %v3520 = vmax.f32 %v3264, 0.0
  %v3521 = vmax.f32 %v3269, 0.0
  %v3522 = vmax.f32 %v3272, 0.0
  %v3523 = vmax.f32 %v3277, 0.0
  %v3524 = vmax.f32 %v3280, 0.0
  %v3525 = vmax.f32 %v3285, 0.0
  %v3526 = vmax.f32 %v3288, 0.0
  %v3527 = vmax.f32 %v3293, 0.0
  %v3528 = vmax.f32 %v3296, 0.0
  %v3529 = vmax.f32 %v3301, 0.0
  %v3530 = vmax.f32 %v3304, 0.0
  %v3531 = vmax.f32 %v3309, 0.0
  %v3532 = vmax.f32 %v3312, 0.0
  %v3533 = vmax.f32 %v3317, 0.0
  %v3534 = vmax.f32 %v3320, 0.0
  %v3535 = vmax.f32 %v3325, 0.0
  %v3536 = vmax.f32 %v3328, 0.0
  %v3537 = vmax.f32 %v3333, 0.0
  %v3538 = vmax.f32 %v3336, 0.0
  %v3539 = vmax.f32 %v3341, 0.0
  %v3540 = vmax.f32 %v3344, 0.0
  %v3541 = vmax.f32 %v3349, 0.0
  %v3542 = vmax.f32 %v3352, 0.0
  %v3543 = vmax.f32 %v3357, 0.0
  %v3544 = vmax.f32 %v3360, 0.0
  %v3545 = vmax.f32 %v3365, 0.0
  %v3546 = vmax.f32 %v3368, 0.0
  %v3547 = vmax.f32 %v3373, 0.0
  %v3548 = vmax.f32 %v3376, 0.0
  %v3549 = vmax.f32 %v3381, 0.0
  %v3550 = vmax.f32 %v3384, 0.0
  %v3551 = vmax.f32 %v3389, 0.0
  %v3552 = vmax.f32 %v3392, 0.0
  %v3553 = vmax.f32 %v3397, 0.0
  %v3554 = vmax.f32 %v3400, 0.0
  %v3555 = vmax.f32 %v3405, 0.0
  %v3556 = vmax.f32 %v3408, 0.0
  %v3557 = vmax.f32 %v3413, 0.0
  %v3558 = vmax.f32 %v3416, 0.0
  %v3559 = vmax.f32 %v3421, 0.0
  %v3560 = vmax.f32 %v3424, 0.0
  %v3561 = vmax.f32 %v3429, 0.0
  %v3562 = vmax.f32 %v3432, 0.0
  %v3563 = vadd.f32 %v3435, %v150
  %v3564 = vadd.f32 %v3436, %v151
  %v3565 = vadd.f32 %v3437, %v152
  %v3566 = vadd.f32 %v3438, %v153
  %v3567 = vadd.f32 %v3439, %v154
  %v3568 = vadd.f32 %v3440, %v155
  %v3569 = vadd.f32 %v3441, %v156
  %v3570 = vadd.f32 %v3442, %v157
  %v3571 = vadd.f32 %v3443, %v158
  %v3572 = vadd.f32 %v3444, %v159
  %v3573 = vadd.f32 %v3445, %v160
  %v3574 = vadd.f32 %v3446, %v161
  %v3575 = vadd.f32 %v3447, %v162
  %v3576 = vadd.f32 %v3448, %v163
  %v3577 = vadd.f32 %v3449, %v164
  %v3578 = vadd.f32 %v3450, %v165
  %v3579 = vadd.f32 %v3451, %v166
  %v3580 = vadd.f32 %v3452, %v167
  %v3581 = vadd.f32 %v3453, %v168
  %v3582 = vadd.f32 %v3454, %v169
  %v3583 = vadd.f32 %v3455, %v170
  %v3584 = vadd.f32 %v3456, %v171
  %v3585 = vadd.f32 %v3457, %v172
  %v3586 = vadd.f32 %v3458, %v173
  %v3587 = vadd.f32 %v3459, %v174
  %v3588 = vadd.f32 %v3460, %v175
  %v3589 = vadd.f32 %v3461, %v176
  %v3590 = vadd.f32 %v3462, %v177
  %v3591 = vadd.f32 %v3463, %v178
  %v3592 = vadd.f32 %v3464, %v179
  %v3593 = vadd.f32 %v3465, %v180
  %v3594 = vadd.f32 %v3466, %v181
  %v3595 = vadd.f32 %v3467, %v182
  %v3596 = vadd.f32 %v3468, %v183
  %v3597 = vadd.f32 %v3469, %v184
  %v3598 = vadd.f32 %v3470, %v185
  %v3599 = vadd.f32 %v3471, %v186
  %v3600 = vadd.f32 %v3472, %v187
  %v3601 = vadd.f32 %v3473, %v188
  %v3602 = vadd.f32 %v3474, %v189
  %v3603 = vadd.f32 %v3475, %v190
  %v3604 = vadd.f32 %v3476, %v191
  %v3605 = vadd.f32 %v3477, %v192
  %v3606 = vadd.f32 %v3478, %v193
  %v3607 = vadd.f32 %v3479, %v194
  %v3608 = vadd.f32 %v3480, %v195
  %v3609 = vadd.f32 %v3481, %v196
  %v3610 = vadd.f32 %v3482, %v197
  %v3611 = vadd.f32 %v3483, %v198
  %v3612 = vadd.f32 %v3484, %v199
  %v3613 = vadd.f32 %v3485, %v200
  %v3614 = vadd.f32 %v3486, %v201
  %v3615 = vadd.f32 %v3487, %v202
  %v3616 = vadd.f32 %v3488, %v203
  %v3617 = vadd.f32 %v3489, %v204
  %v3618 = vadd.f32 %v3490, %v205
  %v3619 = vadd.f32 %v3491, %v206
  %v3620 = vadd.f32 %v3492, %v207
  %v3621 = vadd.f32 %v3493, %v208
  %v3622 = vadd.f32 %v3494, %v209
  %v3623 = vadd.f32 %v3495, %v210
  %v3624 = vadd.f32 %v3496, %v211
  %v3625 = vadd.f32 %v3497, %v212
  %v3626 = vadd.f32 %v3498, %v213
  %v3627 = vadd.f32 %v3499, %v214
  %v3628 = vadd.f32 %v3500, %v215
  %v3629 = vadd.f32 %v3501, %v216
  %v3630 = vadd.f32 %v3502, %v217
  %v3631 = vadd.f32 %v3503, %v218
  %v3632 = vadd.f32 %v3504, %v219
  %v3633 = vadd.f32 %v3505, %v220
  %v3634 = vadd.f32 %v3506, %v221
  %v3635 = vadd.f32 %v3507, %v222
  %v3636 = vadd.f32 %v3508, %v223
  %v3637 = vadd.f32 %v3509, %v224
  %v3638 = vadd.f32 %v3510, %v225
  %v3639 = vadd.f32 %v3511, %v226
  %v3640 = vadd.f32 %v3512, %v227
  %v3641 = vadd.f32 %v3513, %v228
  %v3642 = vadd.f32 %v3514, %v229
  %v3643 = vadd.f32 %v3515, %v230
  %v3644 = vadd.f32 %v3516, %v231
  %v3645 = vadd.f32 %v3517, %v232
  %v3646 = vadd.f32 %v3518, %v233
  %v3647 = vadd.f32 %v3519, %v234
  %v3648 = vadd.f32 %v3520, %v235
  %v3649 = vadd.f32 %v3521, %v236
  %v3650 = vadd.f32 %v3522, %v237
  %v3651 = vadd.f32 %v3523, %v238
  %v3652 = vadd.f32 %v3524, %v239
  %v3653 = vadd.f32 %v3525, %v240
  %v3654 = vadd.f32 %v3526, %v241
  %v3655 = vadd.f32 %v3527, %v242
  %v3656 = vadd.f32 %v3528, %v243
  %v3657 = vadd.f32 %v3529, %v244
  %v3658 = vadd.f32 %v3530, %v245
  %v3659 = vadd.f32 %v3531, %v246
  %v3660 = vadd.f32 %v3532, %v247
  %v3661 = vadd.f32 %v3533, %v248
  %v3662 = vadd.f32 %v3534, %v249
  %v3663 = vadd.f32 %v3535, %v250
  %v3664 = vadd.f32 %v3536, %v251
  %v3665 = vadd.f32 %v3537, %v252
  %v3666 = vadd.f32 %v3538, %v253
  %v3667 = vadd.f32 %v3539, %v254
  %v3668 = vadd.f32 %v3540, %v255
  %v3669 = vadd.f32 %v3541, %v256
  %v3670 = vadd.f32 %v3542, %v257
  %v3671 = vadd.f32 %v3543, %v258
  %v3672 = vadd.f32 %v3544, %v259
  %v3673 = vadd.f32 %v3545, %v260
  %v3674 = vadd.f32 %v3546, %v261
  %v3675 = vadd.f32 %v3547, %v262
  %v3676 = vadd.f32 %v3548, %v263
  %v3677 = vadd.f32 %v3549, %v264
  %v3678 = vadd.f32 %v3550, %v265
  %v3679 = vadd.f32 %v3551, %v266
  %v3680 = vadd.f32 %v3552, %v267
  %v3681 = vadd.f32 %v3553, %v268
  %v3682 = vadd.f32 %v3554, %v269
  %v3683 = vadd.f32 %v3555, %v270
  %v3684 = vadd.f32 %v3556, %v271
  %v3685 = vadd.f32 %v3557, %v272
  %v3686 = vadd.f32 %v3558, %v273
  %v3687 = vadd.f32 %v3559, %v274
  %v3688 = vadd.f32 %v3560, %v275
  %v3689 = vadd.f32 %v3561, %v276
  %v3690 = vadd.f32 %v3562, %v277
  %v3691 = vmul.f32 %v3563, %v3563
  %v3692 = vmul.f32 %v3564, %v3564
  %v3693 = vmul.f32 %v3565, %v3565
  %v3694 = vmul.f32 %v3566, %v3566
  %v3695 = vmul.f32 %v3567, %v3567
  %v3696 = vmul.f32 %v3568, %v3568
  %v3697 = vmul.f32 %v3569, %v3569
  %v3698 = vmul.f32 %v3570, %v3570
  %v3699 = vmul.f32 %v3571, %v3571
  %v3700 = vmul.f32 %v3572, %v3572
  %v3701 = vmul.f32 %v3573, %v3573
  %v3702 = vmul.f32 %v3574, %v3574
  %v3703 = vmul.f32 %v3575, %v3575
  %v3704 = vmul.f32 %v3576, %v3576
  %v3705 = vmul.f32 %v3577, %v3577
  %v3706 = vmul.f32 %v3578, %v3578
  %v3707 = vmul.f32 %v3579, %v3579
  %v3708 = vmul.f32 %v3580, %v3580
  %v3709 = vmul.f32 %v3581, %v3581
  %v3710 = vmul.f32 %v3582, %v3582
  %v3711 = vmul.f32 %v3583, %v3583
  %v3712 = vmul.f32 %v3584, %v3584
  %v3713 = vmul.f32 %v3585, %v3585
  %v3714 = vmul.f32 %v3586, %v3586
  %v3715 = vmul.f32 %v3587, %v3587
  %v3716 = vmul.f32 %v3588, %v3588
  %v3717 = vmul.f32 %v3589, %v3589
  %v3718 = vmul.f32 %v3590, %v3590
  %v3719 = vmul.f32 %v3591, %v3591
  %v3720 = vmul.f32 %v3592, %v3592
  %v3721 = vmul.f32 %v3593, %v3593
  %v3722 = vmul.f32 %v3594, %v3594
  %v3723 = vmul.f32 %v3595, %v3595
  %v3724 = vmul.f32 %v3596, %v3596
  %v3725 = vmul.f32 %v3597, %v3597
  %v3726 = vmul.f32 %v3598, %v3598
  %v3727 = vmul.f32 %v3599, %v3599
  %v3728 = vmul.f32 %v3600, %v3600
  %v3729 = vmul.f32 %v3601, %v3601
  %v3730 = vmul.f32 %v3602, %v3602
  %v3731 = vmul.f32 %v3603, %v3603
  %v3732 = vmul.f32 %v3604, %v3604
  %v3733 = vmul.f32 %v3605, %v3605
  %v3734 = vmul.f32 %v3606, %v3606
  %v3735 = vmul.f32 %v3607, %v3607
  %v3736 = vmul.f32 %v3608, %v3608
  %v3737 = vmul.f32 %v3609, %v3609
  %v3738 = vmul.f32 %v3610, %v3610
  %v3739 = vmul.f32 %v3611, %v3611
  %v3740 = vmul.f32 %v3612, %v3612
  %v3741 = vmul.f32 %v3613, %v3613
  %v3742 = vmul.f32 %v3614, %v3614
  %v3743 = vmul.f32 %v3615, %v3615
  %v3744 = vmul.f32 %v3616, %v3616
  %v3745 = vmul.f32 %v3617, %v3617
  %v3746 = vmul.f32 %v3618, %v3618
  %v3747 = vmul.f32 %v3619, %v3619
  %v3748 = vmul.f32 %v3620, %v3620
  %v3749 = vmul.f32 %v3621, %v3621
  %v3750 = vmul.f32 %v3622, %v3622
  %v3751 = vmul.f32 %v3623, %v3623
  %v3752 = vmul.f32 %v3624, %v3624
  %v3753 = vmul.f32 %v3625, %v3625
  %v3754 = vmul.f32 %v3626, %v3626
  %v3755 = vmul.f32 %v3627, %v3627
  %v3756 = vmul.f32 %v3628, %v3628
  %v3757 = vmul.f32 %v3629, %v3629
  %v3758 = vmul.f32 %v3630, %v3630
  %v3759 = vmul.f32 %v3631, %v3631
  %v3760 = vmul.f32 %v3632, %v3632
  %v3761 = vmul.f32 %v3633, %v3633
  %v3762 = vmul.f32 %v3634, %v3634
  %v3763 = vmul.f32 %v3635, %v3635
  %v3764 = vmul.f32 %v3636, %v3636
  %v3765 = vmul.f32 %v3637, %v3637
  %v3766 = vmul.f32 %v3638, %v3638
  %v3767 = vmul.f32 %v3639, %v3639
  %v3768 = vmul.f32 %v3640, %v3640
  %v3769 = vmul.f32 %v3641, %v3641
  %v3770 = vmul.f32 %v3642, %v3642
  %v3771 = vmul.f32 %v3643, %v3643
  %v3772 = vmul.f32 %v3644, %v3644
  %v3773 = vmul.f32 %v3645, %v3645
  %v3774 = vmul.f32 %v3646, %v3646
  %v3775 = vmul.f32 %v3647, %v3647
  %v3776 = vmul.f32 %v3648, %v3648
  %v3777 = vmul.f32 %v3649, %v3649
  %v3778 = vmul.f32 %v3650, %v3650
  %v3779 = vmul.f32 %v3651, %v3651
  %v3780 = vmul.f32 %v3652, %v3652
  %v3781 = vmul.f32 %v3653, %v3653
  %v3782 = vmul.f32 %v3654, %v3654
  %v3783 = vmul.f32 %v3655, %v3655
  %v3784 = vmul.f32 %v3656, %v3656
  %v3785 = vmul.f32 %v3657, %v3657
  %v3786 = vmul.f32 %v3658, %v3658
  %v3787 = vmul.f32 %v3659, %v3659
  %v3788 = vmul.f32 %v3660, %v3660
  %v3789 = vmul.f32 %v3661, %v3661
  %v3790 = vmul.f32 %v3662, %v3662
  %v3791 = vmul.f32 %v3663, %v3663
  %v3792 = vmul.f32 %v3664, %v3664
  %v3793 = vmul.f32 %v3665, %v3665
  %v3794 = vmul.f32 %v3666, %v3666
  %v3795 = vmul.f32 %v3667, %v3667
  %v3796 = vmul.f32 %v3668, %v3668
  %v3797 = vmul.f32 %v3669, %v3669
  %v3798 = vmul.f32 %v3670, %v3670
  %v3799 = vmul.f32 %v3671, %v3671
  %v3800 = vmul.f32 %v3672, %v3672
  %v3801 = vmul.f32 %v3673, %v3673
  %v3802 = vmul.f32 %v3674, %v3674
  %v3803 = vmul.f32 %v3675, %v3675
  %v3804 = vmul.f32 %v3676, %v3676
  %v3805 = vmul.f32 %v3677, %v3677
  %v3806 = vmul.f32 %v3678, %v3678
  %v3807 = vmul.f32 %v3679, %v3679
  %v3808 = vmul.f32 %v3680, %v3680
  %v3809 = vmul.f32 %v3681, %v3681
  %v3810 = vmul.f32 %v3682, %v3682
  %v3811 = vmul.f32 %v3683, %v3683
  %v3812 = vmul.f32 %v3684, %v3684
  %v3813 = vmul.f32 %v3685, %v3685
  %v3814 = vmul.f32 %v3686, %v3686
  %v3815 = vmul.f32 %v3687, %v3687
  %v3816 = vmul.f32 %v3688, %v3688
  %v3817 = vmul.f32 %v3689, %v3689
  %v3818 = vmul.f32 %v3690, %v3690
  %v3819 = vadd.f32 %v3691, %v3692
  %v3820 = vadd.f32 %v3819, %v3693
  %v3821 = vadd.f32 %v3820, %v3694
  %v3822 = vadd.f32 %v3821, %v3695
  %v3823 = vadd.f32 %v3822, %v3696
  %v3824 = vadd.f32 %v3823, %v3697
  %v3825 = vadd.f32 %v3824, %v3698
  %v3826 = vadd.f32 %v3825, %v3699
  %v3827 = vadd.f32 %v3826, %v3700
  %v3828 = vadd.f32 %v3827, %v3701
  %v3829 = vadd.f32 %v3828, %v3702
  %v3830 = vadd.f32 %v3829, %v3703
  %v3831 = vadd.f32 %v3830, %v3704
  %v3832 = vadd.f32 %v3831, %v3705
  %v3833 = vadd.f32 %v3832, %v3706
  %v3834 = vadd.f32 %v3833, %v3707
  %v3835 = vadd.f32 %v3834, %v3708
  %v3836 = vadd.f32 %v3835, %v3709
  %v3837 = vadd.f32 %v3836, %v3710
  %v3838 = vadd.f32 %v3837, %v3711
  %v3839 = vadd.f32 %v3838, %v3712
  %v3840 = vadd.f32 %v3839, %v3713
  %v3841 = vadd.f32 %v3840, %v3714
  %v3842 = vadd.f32 %v3841, %v3715
  %v3843 = vadd.f32 %v3842, %v3716
  %v3844 = vadd.f32 %v3843, %v3717
  %v3845 = vadd.f32 %v3844, %v3718
  %v3846 = vadd.f32 %v3845, %v3719
  %v3847 = vadd.f32 %v3846, %v3720
  %v3848 = vadd.f32 %v3847, %v3721
  %v3849 = vadd.f32 %v3848, %v3722
  %v3850 = vadd.f32 %v3849, %v3723
  %v3851 = vadd.f32 %v3850, %v3724
  %v3852 = vadd.f32 %v3851, %v3725
  %v3853 = vadd.f32 %v3852, %v3726
  %v3854 = vadd.f32 %v3853, %v3727
  %v3855 = vadd.f32 %v3854, %v3728
  %v3856 = vadd.f32 %v3855, %v3729
  %v3857 = vadd.f32 %v3856, %v3730
  %v3858 = vadd.f32 %v3857, %v3731
  %v3859 = vadd.f32 %v3858, %v3732
  %v3860 = vadd.f32 %v3859, %v3733
  %v3861 = vadd.f32 %v3860, %v3734
  %v3862 = vadd.f32 %v3861, %v3735
  %v3863 = vadd.f32 %v3862, %v3736
  %v3864 = vadd.f32 %v3863, %v3737
  %v3865 = vadd.f32 %v3864, %v3738
  %v3866 = vadd.f32 %v3865, %v3739
  %v3867 = vadd.f32 %v3866, %v3740
  %v3868 = vadd.f32 %v3867, %v3741
  %v3869 = vadd.f32 %v3868, %v3742
  %v3870 = vadd.f32 %v3869, %v3743
  %v3871 = vadd.f32 %v3870, %v3744
  %v3872 = vadd.f32 %v3871, %v3745
  %v3873 = vadd.f32 %v3872, %v3746
  %v3874 = vadd.f32 %v3873, %v3747
  %v3875 = vadd.f32 %v3874, %v3748
  %v3876 = vadd.f32 %v3875, %v3749
  %v3877 = vadd.f32 %v3876, %v3750
  %v3878 = vadd.f32 %v3877, %v3751
  %v3879 = vadd.f32 %v3878, %v3752
  %v3880 = vadd.f32 %v3879, %v3753
  %v3881 = vadd.f32 %v3880, %v3754
  %v3882 = vadd.f32 %v3881, %v3755
  %v3883 = vadd.f32 %v3882, %v3756
  %v3884 = vadd.f32 %v3883, %v3757
  %v3885 = vadd.f32 %v3884, %v3758
  %v3886 = vadd.f32 %v3885, %v3759
  %v3887 = vadd.f32 %v3886, %v3760
  %v3888 = vadd.f32 %v3887, %v3761
  %v3889 = vadd.f32 %v3888, %v3762
  %v3890 = vadd.f32 %v3889, %v3763
  %v3891 = vadd.f32 %v3890, %v3764
  %v3892 = vadd.f32 %v3891, %v3765
  %v3893 = vadd.f32 %v3892, %v3766
  %v3894 = vadd.f32 %v3893, %v3767
  %v3895 = vadd.f32 %v3894, %v3768
  %v3896 = vadd.f32 %v3895, %v3769
  %v3897 = vadd.f32 %v3896, %v3770
  %v3898 = vadd.f32 %v3897, %v3771
  %v3899 = vadd.f32 %v3898, %v3772
  %v3900 = vadd.f32 %v3899, %v3773
  %v3901 = vadd.f32 %v3900, %v3774
  %v3902 = vadd.f32 %v3901, %v3775
  %v3903 = vadd.f32 %v3902, %v3776
  %v3904 = vadd.f32 %v3903, %v3777
  %v3905 = vadd.f32 %v3904, %v3778
  %v3906 = vadd.f32 %v3905, %v3779
  %v3907 = vadd.f32 %v3906, %v3780
  %v3908 = vadd.f32 %v3907, %v3781
  %v3909 = vadd.f32 %v3908, %v3782
  %v3910 = vadd.f32 %v3909, %v3783
  %v3911 = vadd.f32 %v3910, %v3784
  %v3912 = vadd.f32 %v3911, %v3785
  %v3913 = vadd.f32 %v3912, %v3786
  %v3914 = vadd.f32 %v3913, %v3787
  %v3915 = vadd.f32 %v3914, %v3788
  %v3916 = vadd.f32 %v3915, %v3789
  %v3917 = vadd.f32 %v3916, %v3790
  %v3918 = vadd.f32 %v3917, %v3791
  %v3919 = vadd.f32 %v3918, %v3792
  %v3920 = vadd.f32 %v3919, %v3793
  %v3921 = vadd.f32 %v3920, %v3794
  %v3922 = vadd.f32 %v3921, %v3795
  %v3923 = vadd.f32 %v3922, %v3796
  %v3924 = vadd.f32 %v3923, %v3797
  %v3925 = vadd.f32 %v3924, %v3798
  %v3926 = vadd.f32 %v3925, %v3799
  %v3927 = vadd.f32 %v3926, %v3800
  %v3928 = vadd.f32 %v3927, %v3801
  %v3929 = vadd.f32 %v3928, %v3802
  %v3930 = vadd.f32 %v3929, %v3803
  %v3931 = vadd.f32 %v3930, %v3804
  %v3932 = vadd.f32 %v3931, %v3805
  %v3933 = vadd.f32 %v3932, %v3806
  %v3934 = vadd.f32 %v3933, %v3807
  %v3935 = vadd.f32 %v3934, %v3808
  %v3936 = vadd.f32 %v3935, %v3809
  %v3937 = vadd.f32 %v3936, %v3810
  %v3938 = vadd.f32 %v3937, %v3811
  %v3939 = vadd.f32 %v3938, %v3812
  %v3940 = vadd.f32 %v3939, %v3813
  %v3941 = vadd.f32 %v3940, %v3814
  %v3942 = vadd.f32 %v3941, %v3815
  %v3943 = vadd.f32 %v3942, %v3816
  %v3944 = vadd.f32 %v3943, %v3817
  %v3945 = vadd.f32 %v3944, %v3818
  %v3946 = vrot.slane %v3945, 4
  %v3947 = vadd.f32 %v3945, %v3946
  %v3948 = vrot.slane %v3947, 2
  %v3949 = vadd.f32 %v3947, %v3948
  %v3950 = vrot.slane %v3949, 1
  %v3951 = vadd.f32 %v3949, %v3950
  %v3952 = vmax.f32 %v3951, 1e-30
  %v3953 = vrsqrt.pop %v3952
  %v3954 = vmul.f32 %v3563, %v3953
  %v3955 = vmul.f32 %v3564, %v3953
  %v3956 = vmul.f32 %v3565, %v3953
  %v3957 = vmul.f32 %v3566, %v3953
  %v3958 = vmul.f32 %v3567, %v3953
  %v3959 = vmul.f32 %v3568, %v3953
  %v3960 = vmul.f32 %v3569, %v3953
  %v3961 = vmul.f32 %v3570, %v3953
  %v3962 = vmul.f32 %v3571, %v3953
  %v3963 = vmul.f32 %v3572, %v3953
  %v3964 = vmul.f32 %v3573, %v3953
  %v3965 = vmul.f32 %v3574, %v3953
  %v3966 = vmul.f32 %v3575, %v3953
  %v3967 = vmul.f32 %v3576, %v3953
  %v3968 = vmul.f32 %v3577, %v3953
  %v3969 = vmul.f32 %v3578, %v3953
  %v3970 = vmul.f32 %v3579, %v3953
  %v3971 = vmul.f32 %v3580, %v3953
  %v3972 = vmul.f32 %v3581, %v3953
  %v3973 = vmul.f32 %v3582, %v3953
  %v3974 = vmul.f32 %v3583, %v3953
  %v3975 = vmul.f32 %v3584, %v3953
  %v3976 = vmul.f32 %v3585, %v3953
  %v3977 = vmul.f32 %v3586, %v3953
  %v3978 = vmul.f32 %v3587, %v3953
  %v3979 = vmul.f32 %v3588, %v3953
  %v3980 = vmul.f32 %v3589, %v3953
  %v3981 = vmul.f32 %v3590, %v3953
  %v3982 = vmul.f32 %v3591, %v3953
  %v3983 = vmul.f32 %v3592, %v3953
  %v3984 = vmul.f32 %v3593, %v3953
  %v3985 = vmul.f32 %v3594, %v3953
  %v3986 = vmul.f32 %v3595, %v3953
  %v3987 = vmul.f32 %v3596, %v3953
  %v3988 = vmul.f32 %v3597, %v3953
  %v3989 = vmul.f32 %v3598, %v3953
  %v3990 = vmul.f32 %v3599, %v3953
  %v3991 = vmul.f32 %v3600, %v3953
  %v3992 = vmul.f32 %v3601, %v3953
  %v3993 = vmul.f32 %v3602, %v3953
  %v3994 = vmul.f32 %v3603, %v3953
  %v3995 = vmul.f32 %v3604, %v3953
  %v3996 = vmul.f32 %v3605, %v3953
  %v3997 = vmul.f32 %v3606, %v3953
  %v3998 = vmul.f32 %v3607, %v3953
  %v3999 = vmul.f32 %v3608, %v3953
  %v4000 = vmul.f32 %v3609, %v3953
  %v4001 = vmul.f32 %v3610, %v3953
  %v4002 = vmul.f32 %v3611, %v3953
  %v4003 = vmul.f32 %v3612, %v3953
  %v4004 = vmul.f32 %v3613, %v3953
  %v4005 = vmul.f32 %v3614, %v3953
  %v4006 = vmul.f32 %v3615, %v3953
  %v4007 = vmul.f32 %v3616, %v3953
  %v4008 = vmul.f32 %v3617, %v3953
  %v4009 = vmul.f32 %v3618, %v3953
  %v4010 = vmul.f32 %v3619, %v3953
  %v4011 = vmul.f32 %v3620, %v3953
  %v4012 = vmul.f32 %v3621, %v3953
  %v4013 = vmul.f32 %v3622, %v3953
  %v4014 = vmul.f32 %v3623, %v3953
  %v4015 = vmul.f32 %v3624, %v3953
  %v4016 = vmul.f32 %v3625, %v3953
  %v4017 = vmul.f32 %v3626, %v3953
  %v4018 = vmul.f32 %v3627, %v3953
  %v4019 = vmul.f32 %v3628, %v3953
  %v4020 = vmul.f32 %v3629, %v3953
  %v4021 = vmul.f32 %v3630, %v3953
  %v4022 = vmul.f32 %v3631, %v3953
  %v4023 = vmul.f32 %v3632, %v3953
  %v4024 = vmul.f32 %v3633, %v3953
  %v4025 = vmul.f32 %v3634, %v3953
  %v4026 = vmul.f32 %v3635, %v3953
  %v4027 = vmul.f32 %v3636, %v3953
  %v4028 = vmul.f32 %v3637, %v3953
  %v4029 = vmul.f32 %v3638, %v3953
  %v4030 = vmul.f32 %v3639, %v3953
  %v4031 = vmul.f32 %v3640, %v3953
  %v4032 = vmul.f32 %v3641, %v3953
  %v4033 = vmul.f32 %v3642, %v3953
  %v4034 = vmul.f32 %v3643, %v3953
  %v4035 = vmul.f32 %v3644, %v3953
  %v4036 = vmul.f32 %v3645, %v3953
  %v4037 = vmul.f32 %v3646, %v3953
  %v4038 = vmul.f32 %v3647, %v3953
  %v4039 = vmul.f32 %v3648, %v3953
  %v4040 = vmul.f32 %v3649, %v3953
  %v4041 = vmul.f32 %v3650, %v3953
  %v4042 = vmul.f32 %v3651, %v3953
  %v4043 = vmul.f32 %v3652, %v3953
  %v4044 = vmul.f32 %v3653, %v3953
  %v4045 = vmul.f32 %v3654, %v3953
  %v4046 = vmul.f32 %v3655, %v3953
  %v4047 = vmul.f32 %v3656, %v3953
  %v4048 = vmul.f32 %v3657, %v3953
  %v4049 = vmul.f32 %v3658, %v3953
  %v4050 = vmul.f32 %v3659, %v3953
  %v4051 = vmul.f32 %v3660, %v3953
  %v4052 = vmul.f32 %v3661, %v3953
  %v4053 = vmul.f32 %v3662, %v3953
  %v4054 = vmul.f32 %v3663, %v3953
  %v4055 = vmul.f32 %v3664, %v3953
  %v4056 = vmul.f32 %v3665, %v3953
  %v4057 = vmul.f32 %v3666, %v3953
  %v4058 = vmul.f32 %v3667, %v3953
  %v4059 = vmul.f32 %v3668, %v3953
  %v4060 = vmul.f32 %v3669, %v3953
  %v4061 = vmul.f32 %v3670, %v3953
  %v4062 = vmul.f32 %v3671, %v3953
  %v4063 = vmul.f32 %v3672, %v3953
  %v4064 = vmul.f32 %v3673, %v3953
  %v4065 = vmul.f32 %v3674, %v3953
  %v4066 = vmul.f32 %v3675, %v3953
  %v4067 = vmul.f32 %v3676, %v3953
  %v4068 = vmul.f32 %v3677, %v3953
  %v4069 = vmul.f32 %v3678, %v3953
  %v4070 = vmul.f32 %v3679, %v3953
  %v4071 = vmul.f32 %v3680, %v3953
  %v4072 = vmul.f32 %v3681, %v3953
  %v4073 = vmul.f32 %v3682, %v3953
  %v4074 = vmul.f32 %v3683, %v3953
  %v4075 = vmul.f32 %v3684, %v3953
  %v4076 = vmul.f32 %v3685, %v3953
  %v4077 = vmul.f32 %v3686, %v3953
  %v4078 = vmul.f32 %v3687, %v3953
  %v4079 = vmul.f32 %v3688, %v3953
  %v4080 = vmul.f32 %v3689, %v3953
  %v4081 = vmul.f32 %v3690, %v3953
  %v4082 = vpack.c.bf16 %v3955, %v3954
  %v4083 = vpack.c.bf16 %v3957, %v3956
  %v4084 = vpack.c.bf16 %v3959, %v3958
  %v4085 = vpack.c.bf16 %v3961, %v3960
  %v4086 = vpack.c.bf16 %v3963, %v3962
  %v4087 = vpack.c.bf16 %v3965, %v3964
  %v4088 = vpack.c.bf16 %v3967, %v3966
  %v4089 = vpack.c.bf16 %v3969, %v3968
  %v4090 = vpack.c.bf16 %v3971, %v3970
  %v4091 = vpack.c.bf16 %v3973, %v3972
  %v4092 = vpack.c.bf16 %v3975, %v3974
  %v4093 = vpack.c.bf16 %v3977, %v3976
  %v4094 = vpack.c.bf16 %v3979, %v3978
  %v4095 = vpack.c.bf16 %v3981, %v3980
  %v4096 = vpack.c.bf16 %v3983, %v3982
  %v4097 = vpack.c.bf16 %v3985, %v3984
  %v4098 = vpack.c.bf16 %v3987, %v3986
  %v4099 = vpack.c.bf16 %v3989, %v3988
  %v4100 = vpack.c.bf16 %v3991, %v3990
  %v4101 = vpack.c.bf16 %v3993, %v3992
  %v4102 = vpack.c.bf16 %v3995, %v3994
  %v4103 = vpack.c.bf16 %v3997, %v3996
  %v4104 = vpack.c.bf16 %v3999, %v3998
  %v4105 = vpack.c.bf16 %v4001, %v4000
  %v4106 = vpack.c.bf16 %v4003, %v4002
  %v4107 = vpack.c.bf16 %v4005, %v4004
  %v4108 = vpack.c.bf16 %v4007, %v4006
  %v4109 = vpack.c.bf16 %v4009, %v4008
  %v4110 = vpack.c.bf16 %v4011, %v4010
  %v4111 = vpack.c.bf16 %v4013, %v4012
  %v4112 = vpack.c.bf16 %v4015, %v4014
  %v4113 = vpack.c.bf16 %v4017, %v4016
  %v4114 = vpack.c.bf16 %v4019, %v4018
  %v4115 = vpack.c.bf16 %v4021, %v4020
  %v4116 = vpack.c.bf16 %v4023, %v4022
  %v4117 = vpack.c.bf16 %v4025, %v4024
  %v4118 = vpack.c.bf16 %v4027, %v4026
  %v4119 = vpack.c.bf16 %v4029, %v4028
  %v4120 = vpack.c.bf16 %v4031, %v4030
  %v4121 = vpack.c.bf16 %v4033, %v4032
  %v4122 = vpack.c.bf16 %v4035, %v4034
  %v4123 = vpack.c.bf16 %v4037, %v4036
  %v4124 = vpack.c.bf16 %v4039, %v4038
  %v4125 = vpack.c.bf16 %v4041, %v4040
  %v4126 = vpack.c.bf16 %v4043, %v4042
  %v4127 = vpack.c.bf16 %v4045, %v4044
  %v4128 = vpack.c.bf16 %v4047, %v4046
  %v4129 = vpack.c.bf16 %v4049, %v4048
  %v4130 = vpack.c.bf16 %v4051, %v4050
  %v4131 = vpack.c.bf16 %v4053, %v4052
  %v4132 = vpack.c.bf16 %v4055, %v4054
  %v4133 = vpack.c.bf16 %v4057, %v4056
  %v4134 = vpack.c.bf16 %v4059, %v4058
  %v4135 = vpack.c.bf16 %v4061, %v4060
  %v4136 = vpack.c.bf16 %v4063, %v4062
  %v4137 = vpack.c.bf16 %v4065, %v4064
  %v4138 = vpack.c.bf16 %v4067, %v4066
  %v4139 = vpack.c.bf16 %v4069, %v4068
  %v4140 = vpack.c.bf16 %v4071, %v4070
  %v4141 = vpack.c.bf16 %v4073, %v4072
  %v4142 = vpack.c.bf16 %v4075, %v4074
  %v4143 = vpack.c.bf16 %v4077, %v4076
  %v4144 = vpack.c.bf16 %v4079, %v4078
  %v4145 = vpack.c.bf16 %v4081, %v4080
  %s4146 = sld [smem:[#allocation2]]
  %v4147 = vld [vmem:[%s4] sm:$0xff]
  %v4148 = vld [vmem:[%s4 + $0x8] sm:$0xff]
  %v4149 = vld [vmem:[%s4 + $0x10] sm:$0xff]
  %v4150 = vld [vmem:[%s4 + $0x18] sm:$0xff]
  %v4155 = vunpack.c.l.b16 %v4147
  %v4156 = vunpack.c.h.b16 %v4147
  %v4157 = vunpack.c.l.b16 %v4148
  %v4158 = vunpack.c.h.b16 %v4148
  %v4159 = vunpack.c.l.b16 %v4149
  %v4160 = vunpack.c.h.b16 %v4149
  %v4161 = vunpack.c.l.b16 %v4150
  %v4162 = vunpack.c.h.b16 %v4150
  %v4163 = vpack.c.b16 %v4155, %v4155
  %v4164 = vpack.c.b16 %v4156, %v4156
  %v4165 = vpack.c.b16 %v4157, %v4157
  %v4166 = vpack.c.b16 %v4158, %v4158
  %v4167 = vpack.c.b16 %v4159, %v4159
  %v4168 = vpack.c.b16 %v4160, %v4160
  %v4169 = vpack.c.b16 %v4161, %v4161
  %v4170 = vpack.c.b16 %v4162, %v4162
  %4179 = vmatprep.subr.bf16.mxu0 0
  %4180 = vmatpush1.bf16.msra.mxu0 %v4082
  %4181 = vmatprep.subr.bf16.mxu0 0
  %4182 = vmatpush1.bf16.msra.mxu0 %v4083
  %4183 = vmatprep.subr.bf16.mxu0 0
  %4184 = vmatpush1.bf16.msra.mxu0 %v4084
  %4185 = vmatprep.subr.bf16.mxu0 0
  %4186 = vmatpush1.bf16.msra.mxu0 %v4085
  %4187 = vmatprep.subr.bf16.mxu0 0
  %4188 = vmatpush1.bf16.msra.mxu0 %v4086
  %4189 = vmatprep.subr.bf16.mxu0 0
  %4190 = vmatpush1.bf16.msra.mxu0 %v4087
  %4191 = vmatprep.subr.bf16.mxu0 0
  %4192 = vmatpush1.bf16.msra.mxu0 %v4088
  %4193 = vmatprep.subr.bf16.mxu0 0
  %4194 = vmatpush1.bf16.msra.mxu0 %v4089
  %4195 = vmatprep.subr.bf16.mxu0 0
  %4196 = vmatpush1.bf16.msra.mxu0 %v4090
  %4197 = vmatprep.subr.bf16.mxu0 0
  %4198 = vmatpush1.bf16.msra.mxu0 %v4091
  %4199 = vmatprep.subr.bf16.mxu0 0
  %4200 = vmatpush1.bf16.msra.mxu0 %v4092
  %4201 = vmatprep.subr.bf16.mxu0 0
  %4202 = vmatpush1.bf16.msra.mxu0 %v4093
  %4203 = vmatprep.subr.bf16.mxu0 0
  %4204 = vmatpush1.bf16.msra.mxu0 %v4094
  %4205 = vmatprep.subr.bf16.mxu0 0
  %4206 = vmatpush1.bf16.msra.mxu0 %v4095
  %4207 = vmatprep.subr.bf16.mxu0 0
  %4208 = vmatpush1.bf16.msra.mxu0 %v4096
  %4209 = vmatprep.subr.bf16.mxu0 0
  %4210 = vmatpush1.bf16.msra.mxu0 %v4097
  %4211 = vmatprep.mubr.bf16.mxu0 %v4164
  %4212 = vmatmul.mubr.bf16.gmra.mrb[0].mxu0 %v4163
  %v4213 = vpop.f32.mrb[0].mxu0
  %v4214 = vadd.f32 0.0, %v4213
  %v4215 = vpop.f32.mrb[0].mxu0
  %v4216 = vpop.f32.mrb[0].mxu0
  %v4217 = vpop.f32.mrb[0].mxu0
  %4218 = vdwg.mxu0
  %4219 = vmatprep.subr.bf16.mxu0 0
  %4220 = vmatpush1.bf16.msra.mxu0 %v4098
  %4221 = vmatprep.subr.bf16.mxu0 0
  %4222 = vmatpush1.bf16.msra.mxu0 %v4099
  %4223 = vmatprep.subr.bf16.mxu0 0
  %4224 = vmatpush1.bf16.msra.mxu0 %v4100
  %4225 = vmatprep.subr.bf16.mxu0 0
  %4226 = vmatpush1.bf16.msra.mxu0 %v4101
  %4227 = vmatprep.subr.bf16.mxu0 0
  %4228 = vmatpush1.bf16.msra.mxu0 %v4102
  %4229 = vmatprep.subr.bf16.mxu0 0
  %4230 = vmatpush1.bf16.msra.mxu0 %v4103
  %4231 = vmatprep.subr.bf16.mxu0 0
  %4232 = vmatpush1.bf16.msra.mxu0 %v4104
  %4233 = vmatprep.subr.bf16.mxu0 0
  %4234 = vmatpush1.bf16.msra.mxu0 %v4105
  %4235 = vmatprep.subr.bf16.mxu0 0
  %4236 = vmatpush1.bf16.msra.mxu0 %v4106
  %4237 = vmatprep.subr.bf16.mxu0 0
  %4238 = vmatpush1.bf16.msra.mxu0 %v4107
  %4239 = vmatprep.subr.bf16.mxu0 0
  %4240 = vmatpush1.bf16.msra.mxu0 %v4108
  %4241 = vmatprep.subr.bf16.mxu0 0
  %4242 = vmatpush1.bf16.msra.mxu0 %v4109
  %4243 = vmatprep.subr.bf16.mxu0 0
  %4244 = vmatpush1.bf16.msra.mxu0 %v4110
  %4245 = vmatprep.subr.bf16.mxu0 0
  %4246 = vmatpush1.bf16.msra.mxu0 %v4111
  %4247 = vmatprep.subr.bf16.mxu0 0
  %4248 = vmatpush1.bf16.msra.mxu0 %v4112
  %4249 = vmatprep.subr.bf16.mxu0 0
  %4250 = vmatpush1.bf16.msra.mxu0 %v4113
  %4251 = vmatprep.mubr.bf16.mxu0 %v4166
  %4252 = vmatmul.mubr.bf16.gmra.mrb[0].mxu0 %v4165
  %v4253 = vpop.f32.mrb[0].mxu0
  %v4254 = vadd.f32 %v4214, %v4253
  %v4255 = vpop.f32.mrb[0].mxu0
  %v4256 = vpop.f32.mrb[0].mxu0
  %v4257 = vpop.f32.mrb[0].mxu0
  %4258 = vdwg.mxu0
  %4259 = vmatprep.subr.bf16.mxu0 0
  %4260 = vmatpush1.bf16.msra.mxu0 %v4114
  %4261 = vmatprep.subr.bf16.mxu0 0
  %4262 = vmatpush1.bf16.msra.mxu0 %v4115
  %4263 = vmatprep.subr.bf16.mxu0 0
  %4264 = vmatpush1.bf16.msra.mxu0 %v4116
  %4265 = vmatprep.subr.bf16.mxu0 0
  %4266 = vmatpush1.bf16.msra.mxu0 %v4117
  %4267 = vmatprep.subr.bf16.mxu0 0
  %4268 = vmatpush1.bf16.msra.mxu0 %v4118
  %4269 = vmatprep.subr.bf16.mxu0 0
  %4270 = vmatpush1.bf16.msra.mxu0 %v4119
  %4271 = vmatprep.subr.bf16.mxu0 0
  %4272 = vmatpush1.bf16.msra.mxu0 %v4120
  %4273 = vmatprep.subr.bf16.mxu0 0
  %4274 = vmatpush1.bf16.msra.mxu0 %v4121
  %4275 = vmatprep.subr.bf16.mxu0 0
  %4276 = vmatpush1.bf16.msra.mxu0 %v4122
  %4277 = vmatprep.subr.bf16.mxu0 0
  %4278 = vmatpush1.bf16.msra.mxu0 %v4123
  %4279 = vmatprep.subr.bf16.mxu0 0
  %4280 = vmatpush1.bf16.msra.mxu0 %v4124
  %4281 = vmatprep.subr.bf16.mxu0 0
  %4282 = vmatpush1.bf16.msra.mxu0 %v4125
  %4283 = vmatprep.subr.bf16.mxu0 0
  %4284 = vmatpush1.bf16.msra.mxu0 %v4126
  %4285 = vmatprep.subr.bf16.mxu0 0
  %4286 = vmatpush1.bf16.msra.mxu0 %v4127
  %4287 = vmatprep.subr.bf16.mxu0 0
  %4288 = vmatpush1.bf16.msra.mxu0 %v4128
  %4289 = vmatprep.subr.bf16.mxu0 0
  %4290 = vmatpush1.bf16.msra.mxu0 %v4129
  %4291 = vmatprep.mubr.bf16.mxu0 %v4168
  %4292 = vmatmul.mubr.bf16.gmra.mrb[0].mxu0 %v4167
  %v4293 = vpop.f32.mrb[0].mxu0
  %v4294 = vadd.f32 %v4254, %v4293
  %v4295 = vpop.f32.mrb[0].mxu0
  %v4296 = vpop.f32.mrb[0].mxu0
  %v4297 = vpop.f32.mrb[0].mxu0
  %4298 = vdwg.mxu0
  %4299 = vmatprep.subr.bf16.mxu0 0
  %4300 = vmatpush1.bf16.msra.mxu0 %v4130
  %4301 = vmatprep.subr.bf16.mxu0 0
  %4302 = vmatpush1.bf16.msra.mxu0 %v4131
  %4303 = vmatprep.subr.bf16.mxu0 0
  %4304 = vmatpush1.bf16.msra.mxu0 %v4132
  %4305 = vmatprep.subr.bf16.mxu0 0
  %4306 = vmatpush1.bf16.msra.mxu0 %v4133
  %4307 = vmatprep.subr.bf16.mxu0 0
  %4308 = vmatpush1.bf16.msra.mxu0 %v4134
  %4309 = vmatprep.subr.bf16.mxu0 0
  %4310 = vmatpush1.bf16.msra.mxu0 %v4135
  %4311 = vmatprep.subr.bf16.mxu0 0
  %4312 = vmatpush1.bf16.msra.mxu0 %v4136
  %4313 = vmatprep.subr.bf16.mxu0 0
  %4314 = vmatpush1.bf16.msra.mxu0 %v4137
  %4315 = vmatprep.subr.bf16.mxu0 0
  %4316 = vmatpush1.bf16.msra.mxu0 %v4138
  %4317 = vmatprep.subr.bf16.mxu0 0
  %4318 = vmatpush1.bf16.msra.mxu0 %v4139
  %4319 = vmatprep.subr.bf16.mxu0 0
  %4320 = vmatpush1.bf16.msra.mxu0 %v4140
  %4321 = vmatprep.subr.bf16.mxu0 0
  %4322 = vmatpush1.bf16.msra.mxu0 %v4141
  %4323 = vmatprep.subr.bf16.mxu0 0
  %4324 = vmatpush1.bf16.msra.mxu0 %v4142
  %4325 = vmatprep.subr.bf16.mxu0 0
  %4326 = vmatpush1.bf16.msra.mxu0 %v4143
  %4327 = vmatprep.subr.bf16.mxu0 0
  %4328 = vmatpush1.bf16.msra.mxu0 %v4144
  %4329 = vmatprep.subr.bf16.mxu0 0
  %4330 = vmatpush1.bf16.msra.mxu0 %v4145
  %4331 = vmatprep.mubr.bf16.mxu0 %v4170
  %4332 = vmatmul.mubr.bf16.gmra.mrb[0].mxu0 %v4169
  %v4333 = vpop.f32.mrb[0].mxu0
  %v4334 = vadd.f32 %v4294, %v4333
  %v4335 = vpop.f32.mrb[0].mxu0
  %v4336 = vpop.f32.mrb[0].mxu0
  %v4337 = vpop.f32.mrb[0].mxu0
  %4338 = vdwg.mxu0
  %v4339 = vstv %s4146
  %v4340 = vmul.f32 %v4339, %v4334
  %4341 = vst [vmem:[%s5] sm:$0xff] %v4340
  // Predicated region
  $region22: #{custom_clip_forward.1} parent=0 // pred_check
    _
  $region23: #{custom_clip_forward.1} parent=0 // pred_check_branch
    %4343 = sbr.rel (0) target = $region25
  $region24: #{custom_clip_forward.1} parent=0 // pred_region
    _
  $region25: #{custom_clip_forward.1} parent=0 // pred_fallthru
    _
  // Predicated region
  $region26: #{custom_clip_forward.1} parent=0 // pred_check
    _
  $region27: #{custom_clip_forward.1} parent=0 // pred_check_branch
    %4345 = sbr.rel (0) target = $region29
  $region28: #{custom_clip_forward.1} parent=0 // pred_region
    _
  $region29: #{custom_clip_forward.1} parent=0 // pred_fallthru
    _

</llo_original>
